<compile_context>
chip_gen: v7x
topology: tpu7x:2x2x1
jax: 0.10.0
libtpu: 0.0.40
codegen_flags: <defaults>
</compile_context>

<pallas_src>
import jax
import jax.numpy as jnp
from jax import lax
from jax.experimental import pallas as pl
from jax.experimental.pallas import tpu as pltpu

# ---------------- hyperparameters (small, consistent with the module) --------
PRE_LENGTH   = 12          # unused in forward
EMBED_SIZE   = 16
SEQ_LENGTH   = 32
FEATURE_SIZE = 4
HIDDEN_SIZE  = 32          # unused in forward
PATCH_LEN    = 8
D_MODEL      = 16          # must equal EMBED_SIZE for the residual add
STRIDE       = 24
PATCH_NUM    = (SEQ_LENGTH - PATCH_LEN) // STRIDE + 1      # = 2
FREQ_SIZE    = EMBED_SIZE                                   # number_frequency = 1
A_DIM        = PATCH_NUM * FEATURE_SIZE                     # = 8  (channels N)
SCALE1       = 0.02
REVIN_EPS    = 1e-5
LEAKY_SLOPE  = 0.01
FC12_OUT     = 12

BATCH = 2
L_DIM = PATCH_LEN
N_DIM = A_DIM
E_DIM = EMBED_SIZE
D_DIM = D_MODEL
F32   = jnp.float32

# ---- packed seg1 slab layout (per batch: 16 rows x 64 cols) ------------------
C_XTX  = 0                          # cols [ 0:16)  X^T X                (D, D)
C_YTEE = D_DIM                      # cols [16:32)  X^T E E^T X          (D, D)
C_X2   = 2 * D_DIM                  # cols [32:48)  X2, rows 0:N         (N, D)
C_NORM = 3 * D_DIM                  # cols [48:56)  normed^T             (E, N)
C_STAT = 3 * D_DIM + N_DIM          # cols [56:64)  row0 = mean^T, row1 = std^T
SLAB_W = 3 * D_DIM + 2 * N_DIM      # 64


# ---------------- small dot helpers (run inside kernels on the MXU) ----------
def _mm(a, b):                         # a @ b
    return jnp.dot(a, b, preferred_element_type=jnp.float32)


def _mm_tn(a, b):                      # a^T @ b  (contract rows of both)
    return lax.dot_general(a, b, (((0,), (0,)), ((), ())),
                           preferred_element_type=jnp.float32)


def _mm_nt(a, b):                      # a @ b^T  (contract cols of both)
    return lax.dot_general(a, b, (((1,), (1,)), ((), ())),
                           preferred_element_type=jnp.float32)


def _lam_to_linv(lam):
    # LeakyReLU(eigvals) -> rsqrt(. + 0.1) * scale1     (EUP rsqrt, VPU select)
    lam = jnp.where(lam >= 0, lam, LEAKY_SLOPE * lam)
    return lax.rsqrt(lam + 0.1) * SCALE1


# ---------------- kernel 1: embed + RevIN norm + fc21/fc22 + Grams -----------
def seg1_kernel(x_ref, emb_ref, affw_ref, affb_ref,
                w21_ref, b21_ref, w22_ref, b22_ref, slab_ref):
    emb  = emb_ref[...]                 # (L, E)
    affw = affw_ref[...]                # (1, N)
    affb = affb_ref[...]                # (1, N)
    w21  = w21_ref[...]
    b21  = b21_ref[...]
    w22  = w22_ref[...]
    b22  = b22_ref[...]
    slab_ref[...] = jnp.zeros(slab_ref.shape, F32)      # clear unused regions
    for b in range(x_ref.shape[0]):                     # static unroll over batch
        x  = x_ref[b]                                   # (L, N)
        uT = _mm_tn(emb, x)                             # token embedding^T (E, N)
        # RevIN 'norm' statistics (mean/var over embed axis, unbiased=False)
        mean = jnp.mean(uT, axis=0, keepdims=True)      # (1, N)
        var  = jnp.mean((uT - mean) ** 2, axis=0, keepdims=True)
        std  = jnp.sqrt(var + REVIN_EPS)
        normT = (uT - mean) / std * affw + affb         # (E, N)
        # GC: fc21 / fc22   (X @ W + b, computed from the transposed layout)
        x1 = _mm_tn(normT, w21) + b21                   # X1  (N, D)
        x2 = _mm_tn(normT, w22) + b22                   # X2  (N, D)
        # LDGOSM pre-eigh pieces
        e    = jnp.maximum(x1, 0.0)                     # F.relu(X1)
        xtx  = _mm_tn(x1, x1)                           # X^T X            (D, D)
        ety  = _mm_tn(e, x1)                            # E^T X            (D, D)
        eety = _mm(e, ety)                              # E E^T X          (N, D)
        ytee = _mm_tn(x1, eety)                         # X^T E E^T X      (D, D)
        # pack everything this batch needs downstream into one slab
        slab_ref[b, :, C_XTX:C_XTX + D_DIM]      = xtx
        slab_ref[b, :, C_YTEE:C_YTEE + D_DIM]    = ytee
        slab_ref[b, 0:N_DIM, C_X2:C_X2 + D_DIM]  = x2
        slab_ref[b, :, C_NORM:C_NORM + N_DIM]    = normT
        slab_ref[b, 0:1, C_STAT:C_STAT + N_DIM]  = mean
        slab_ref[b, 1:2, C_STAT:C_STAT + N_DIM]  = std


# ---------------- kernel 2: regularized "result" for the second eigh ---------
def seg2_kernel(evals_ref, evecs_ref, slab_ref, res_ref):
    for b in range(evecs_ref.shape[0]):                 # static unroll over batch
        linv = _lam_to_linv(evals_ref[b])               # (1, D)
        dvec = evecs_ref[b]                             # eigenvectors as columns
        m = _mm_nt(dvec * linv, dvec)                   # D diag(linv) D^T (symmetric)
        slab_b = slab_ref[b]
        s = (slab_b[:, C_XTX:C_XTX + D_DIM] +
             slab_b[:, C_YTEE:C_YTEE + D_DIM])          # X^T X + X^T E E^T X
        res = _mm(_mm_tn(m, s), m)                      # M^T (.) M
        # torch.nan_to_num(nan=0, posinf=1e10, neginf=-1e10); clip also bounds
        # (physically unreachable) finite values beyond +-1e10.
        res = jnp.where(jnp.isnan(res), jnp.float32(0.0),
                        jnp.clip(res, -1e10, 1e10))
        res_ref[b] = res


# ---------------- kernel 3: GC tail + residual + RevIN denorm + fc12 ---------
def seg3_kernel(evals_ref, evecs_ref, evecs2_ref, slab_ref,
                w1_ref, b1_ref, w2_ref, b2_ref,
                affw_ref, affb_ref, w12t_ref, b12_ref, out_ref):
    w1   = w1_ref[...]                                  # (N, D)
    b1   = b1_ref[...]                                  # (1, D)
    w2   = w2_ref[...]
    b2   = b2_ref[...]
    affw = affw_ref[...]                                # (1, N)
    affb = affb_ref[...]
    w12t = w12t_ref[...]                                # (PATCH_NUM, 12)
    b12  = b12_ref[...]                                 # (1, 12)
    for b in range(evecs_ref.shape[0]):                 # static unroll over batch
        # recompute M (cheap) instead of round-tripping it through HBM
        linv = _lam_to_linv(evals_ref[b])
        dvec = evecs_ref[b]
        m = _mm_nt(dvec * linv, dvec)                   # symmetric (D, D)
        ev2 = evecs2_ref[b]
        # diag(W) with W = M @ ev2 * s ; M symmetric -> column sums of M*ev2
        dw = jnp.sum(m * ev2, axis=0, keepdims=True) * SCALE1        # (1, D)

        slab_b = slab_ref[b]
        x2    = slab_b[0:N_DIM, C_X2:C_X2 + D_DIM]      # (N, D)
        normT = slab_b[:, C_NORM:C_NORM + N_DIM]        # (E, N)
        meanT = slab_b[0:1, C_STAT:C_STAT + N_DIM]      # (1, N)
        stdT  = slab_b[1:2, C_STAT:C_STAT + N_DIM]      # (1, N)

        p  = x2 * dw                                    # P_real          (N, D)
        oa = _mm_tn(x2, p)                              # oa after permute: X2^T P
        pmax = jnp.max(p, axis=-1, keepdims=True)       # softmax(P, dim=-1)
        pe   = jnp.exp(p - pmax)
        prr  = pe / jnp.sum(pe, axis=-1, keepdims=True)

        dw10 = jnp.sum(prr * w1, axis=0, keepdims=True) # diag(prr^T @ w1) (1, D)
        dw20 = jnp.sum(prr * w2, axis=0, keepdims=True) # diag(prr^T @ w2) (1, D)
        o1 = oa * dw10 - b1
        o2 = o1 * dw20 - b2
        ob = _mm_nt(o2, p)                              # ob_real          (D, N)

        yT = ob + normT                                 # residual add (transposed)
        # RevIN 'denorm'
        yT = (yT - affb) / (affw + REVIN_EPS * REVIN_EPS)
        yT = yT * stdT + meanT                          # (E, N)

        # fc12 fused in: (B, feat, E, patch_num) @ W12^T + b12 as a VPU
        # weighted sum of the patch columns (patch_num = 2 -> K=2, no MXU).
        # TODO(synk): PyTorch casts to float64 (.double()) for fc12; TPU Pallas
        #             has no f64 support, so this runs in float32.
        for f in range(FEATURE_SIZE):
            col = f * PATCH_NUM
            acc = yT[:, col:col + 1] * w12t[0:1, :] + b12          # (E, 12)
            for pidx in range(1, PATCH_NUM):
                acc = acc + yT[:, col + pidx:col + pidx + 1] * w12t[pidx:pidx + 1, :]
            out_ref[b * FEATURE_SIZE + f] = acc


# ---------------- wrapper -----------------------------------------------------
def sgsc_forward(x, params):
    b = x.shape[0]
    assert x.shape == (b, L_DIM, N_DIM)

    emb  = params["embeddings"]                       # (L, E)
    affw = params["revin_w"].reshape(1, N_DIM)
    affb = params["revin_b"].reshape(1, N_DIM)
    w21  = params["fc21_w"]                           # (E, D)   (x @ w + b form)
    b21  = params["fc21_b"].reshape(1, D_DIM)
    w22  = params["fc22_w"]
    b22  = params["fc22_b"].reshape(1, D_DIM)
    w1_0 = params["w1"][0]                            # (N, D)
    b1_0 = params["b1"][0].reshape(1, D_DIM)
    w2_0 = params["w2"][0]
    b2_0 = params["b2"][0].reshape(1, D_DIM)
    w12t = params["fc12_w"].T                         # (patch_num, 12)
    b12  = params["fc12_b"].reshape(1, FC12_OUT)

    vmem = pl.BlockSpec(memory_space=pltpu.MemorySpace.VMEM)

    # --- segment 1 (single invocation, all batches) ---
    slab = pl.pallas_call(
        seg1_kernel,
        in_specs=[vmem] * 8,
        out_specs=vmem,
        out_shape=jax.ShapeDtypeStruct((b, D_DIM, SLAB_W), F32),
    )(x, emb, affw, affb, w21, b21, w22, b22)

    # eigh #1 (no Pallas equivalent)
    xtx = slab[:, :, C_XTX:C_XTX + D_DIM]
    evals, evecs = jnp.linalg.eigh(xtx)
    evals3 = evals.reshape(b, 1, D_DIM)

    # --- segment 2 ---
    res = pl.pallas_call(
        seg2_kernel,
        in_specs=[vmem] * 3,
        out_specs=vmem,
        out_shape=jax.ShapeDtypeStruct((b, D_DIM, D_DIM), F32),
    )(evals3, evecs, slab)

    # eigh #2 (no Pallas equivalent)
    _, evecs2 = jnp.linalg.eigh(res)

    # --- segment 3 (GC tail + residual + denorm + fc12, fused) ---
    out = pl.pallas_call(
        seg3_kernel,
        in_specs=[vmem] * 12,
        out_specs=vmem,
        out_shape=jax.ShapeDtypeStruct((b * FEATURE_SIZE, E_DIM, FC12_OUT), F32),
    )(evals3, evecs, evecs2, slab, w1_0, b1_0, w2_0, b2_0, affw, affb, w12t, b12)

    # (b*feat, E, 12) is row-major identical to (b, feat, E, 12): free reshape.
    return out.reshape(b, FEATURE_SIZE, E_DIM * FC12_OUT)


# ---------------- deterministic parameter init --------------------------------
def init_params(key):
    ks = jax.random.split(key, 12)
    p = {}
    p["embeddings"] = jax.random.normal(ks[0], (PATCH_LEN, EMBED_SIZE), F32)
    p["w1"] = SCALE1 * jax.random.normal(ks[1], (2, A_DIM, D_MODEL), F32)
    p["b1"] = SCALE1 * jax.random.normal(ks[2], (2, D_MODEL), F32)
    p["w2"] = SCALE1 * jax.random.normal(ks[3], (2, A_DIM, D_MODEL), F32)
    p["b2"] = SCALE1 * jax.random.normal(ks[4], (2, D_MODEL), F32)
    lim21 = 1.0 / (FREQ_SIZE ** 0.5)
    p["fc21_w"] = jax.random.uniform(ks[5], (FREQ_SIZE, D_MODEL), F32, -lim21, lim21)
    p["fc21_b"] = jax.random.uniform(ks[6], (D_MODEL,), F32, -lim21, lim21)
    p["fc22_w"] = jax.random.uniform(ks[7], (FREQ_SIZE, D_MODEL), F32, -lim21, lim21)
    p["fc22_b"] = jax.random.uniform(ks[8], (D_MODEL,), F32, -lim21, lim21)
    lim12 = 1.0 / (PATCH_NUM ** 0.5)
    p["fc12_w"] = jax.random.uniform(ks[9], (FC12_OUT, PATCH_NUM), F32, -lim12, lim12)
    p["fc12_b"] = jax.random.uniform(ks[10], (FC12_OUT,), F32, -lim12, lim12)
    # RevIN affine params (weight=1, bias=0 at init)
    p["revin_w"] = jnp.ones((N_DIM,), F32)
    p["revin_b"] = jnp.zeros((N_DIM,), F32)
    return p


if __name__ == "__main__":
    key = jax.random.PRNGKey(0)
    pkey, xkey = jax.random.split(key)
    params = init_params(pkey)
    # input: (B, patch_len, feature_size * patch_num) = (2, 8, 8)
    x = jax.random.normal(xkey, (BATCH, L_DIM, N_DIM), F32)

    out = jax.jit(sgsc_forward)(x, params)
    out = jax.block_until_ready(out)
    assert out.shape == (BATCH, FEATURE_SIZE, EMBED_SIZE * 12)
    assert bool(jnp.all(jnp.isfinite(out)))
    print("KERNEL_OK")
</pallas_src>

<mosaic_0001>
module attributes {stable_mosaic.version = 11 : i64} {
  func.func @seg1_kernel(%arg0: memref<2x8x8xf32, #tpu.memory_space<vmem>>, %arg1: memref<8x16xf32, #tpu.memory_space<vmem>>, %arg2: memref<1x8xf32, #tpu.memory_space<vmem>>, %arg3: memref<1x8xf32, #tpu.memory_space<vmem>>, %arg4: memref<16x16xf32, #tpu.memory_space<vmem>>, %arg5: memref<1x16xf32, #tpu.memory_space<vmem>>, %arg6: memref<16x16xf32, #tpu.memory_space<vmem>>, %arg7: memref<1x16xf32, #tpu.memory_space<vmem>>, %arg8: memref<2x16x64xf32, #tpu.memory_space<vmem>>) attributes {dimension_semantics = [], scalar_prefetch = 0 : i64, scratch_operands = 0 : i64, tpu.core_type = #tpu.core_type<tc>} {
    %c0 = arith.constant 0 : index
    %c0_0 = arith.constant 0 : index
    %0 = vector.load %arg1[%c0, %c0_0] : memref<8x16xf32, #tpu.memory_space<vmem>>, vector<8x16xf32>
    %c0_1 = arith.constant 0 : index
    %c0_2 = arith.constant 0 : index
    %1 = vector.load %arg2[%c0_1, %c0_2] : memref<1x8xf32, #tpu.memory_space<vmem>>, vector<1x8xf32>
    %c0_3 = arith.constant 0 : index
    %c0_4 = arith.constant 0 : index
    %2 = vector.load %arg3[%c0_3, %c0_4] : memref<1x8xf32, #tpu.memory_space<vmem>>, vector<1x8xf32>
    %c0_5 = arith.constant 0 : index
    %c0_6 = arith.constant 0 : index
    %3 = vector.load %arg4[%c0_5, %c0_6] : memref<16x16xf32, #tpu.memory_space<vmem>>, vector<16x16xf32>
    %c0_7 = arith.constant 0 : index
    %c0_8 = arith.constant 0 : index
    %4 = vector.load %arg5[%c0_7, %c0_8] : memref<1x16xf32, #tpu.memory_space<vmem>>, vector<1x16xf32>
    %c0_9 = arith.constant 0 : index
    %c0_10 = arith.constant 0 : index
    %5 = vector.load %arg6[%c0_9, %c0_10] : memref<16x16xf32, #tpu.memory_space<vmem>>, vector<16x16xf32>
    %c0_11 = arith.constant 0 : index
    %c0_12 = arith.constant 0 : index
    %6 = vector.load %arg7[%c0_11, %c0_12] : memref<1x16xf32, #tpu.memory_space<vmem>>, vector<1x16xf32>
    %cst = arith.constant 0.000000e+00 : f32
    %7 = vector.broadcast %cst : f32 to vector<2x16x64xf32>
    %c0_13 = arith.constant 0 : index
    %c0_14 = arith.constant 0 : index
    %c0_15 = arith.constant 0 : index
    %8 = vector.load %arg8[%c0_13, %c0_14, %c0_15] : memref<2x16x64xf32, #tpu.memory_space<vmem>>, vector<2x16x64xf32>
    tpu.vector_store %arg8[%c0_13, %c0_14, %c0_15], %7 {strides = array<i32>} : memref<2x16x64xf32, #tpu.memory_space<vmem>>, vector<2x16x64xf32>,
    %c0_16 = arith.constant 0 : index
    %c0_17 = arith.constant 0 : index
    %c0_18 = arith.constant 0 : index
    %9 = vector.load %arg0[%c0_16, %c0_17, %c0_18] : memref<2x8x8xf32, #tpu.memory_space<vmem>>, vector<1x8x8xf32>
    %10 = vector.shape_cast %9 : vector<1x8x8xf32> to vector<8x8xf32>
    %cst_19 = arith.constant dense<0.000000e+00> : vector<16x8xf32>
    %11 = tpu.matmul %0, %10, %cst_19 {dimension_numbers = #tpu.dot_dimension_numbers<[0], [0], [1], [1], [0, 1, 1, 1], [], []>} : vector<8x16xf32>, vector<8x8xf32>, vector<16x8xf32> -> vector<16x8xf32>
    %cst_20 = arith.constant dense<0.000000e+00> : vector<8xf32>
    %12 = vector.multi_reduction <add>, %11, %cst_20 [0] : vector<16x8xf32> to vector<8xf32>
    %13 = vector.shape_cast %12 : vector<8xf32> to vector<1x8xf32>
    %cst_21 = arith.constant 1.600000e+01 : f32
    %14 = vector.broadcast %cst_21 : f32 to vector<1x8xf32>
    %15 = arith.divf %13, %14 : vector<1x8xf32>
    %16 = vector.broadcast %15 : vector<1x8xf32> to vector<16x8xf32>
    %17 = arith.subf %11, %16 : vector<16x8xf32>
    %18 = arith.mulf %17, %17 : vector<16x8xf32>
    %cst_22 = arith.constant dense<0.000000e+00> : vector<8xf32>
    %19 = vector.multi_reduction <add>, %18, %cst_22 [0] : vector<16x8xf32> to vector<8xf32>
    %20 = vector.shape_cast %19 : vector<8xf32> to vector<1x8xf32>
    %cst_23 = arith.constant 1.600000e+01 : f32
    %21 = vector.broadcast %cst_23 : f32 to vector<1x8xf32>
    %22 = arith.divf %20, %21 : vector<1x8xf32>
    %cst_24 = arith.constant 9.99999974E-6 : f32
    %23 = vector.broadcast %cst_24 : f32 to vector<1x8xf32>
    %24 = arith.addf %22, %23 : vector<1x8xf32>
    %25 = math.sqrt %24 : vector<1x8xf32>
    %26 = vector.broadcast %15 : vector<1x8xf32> to vector<16x8xf32>
    %27 = arith.subf %11, %26 : vector<16x8xf32>
    %28 = vector.broadcast %25 : vector<1x8xf32> to vector<16x8xf32>
    %29 = arith.divf %27, %28 : vector<16x8xf32>
    %30 = vector.broadcast %1 : vector<1x8xf32> to vector<16x8xf32>
    %31 = arith.mulf %29, %30 : vector<16x8xf32>
    %32 = vector.broadcast %2 : vector<1x8xf32> to vector<16x8xf32>
    %33 = arith.addf %31, %32 : vector<16x8xf32>
    %cst_25 = arith.constant dense<0.000000e+00> : vector<8x16xf32>
    %34 = tpu.matmul %33, %3, %cst_25 {dimension_numbers = #tpu.dot_dimension_numbers<[0], [0], [1], [1], [0, 1, 1, 1], [], []>} : vector<16x8xf32>, vector<16x16xf32>, vector<8x16xf32> -> vector<8x16xf32>
    %35 = vector.broadcast %4 : vector<1x16xf32> to vector<8x16xf32>
    %36 = arith.addf %34, %35 : vector<8x16xf32>
    %cst_26 = arith.constant dense<0.000000e+00> : vector<8x16xf32>
    %37 = tpu.matmul %33, %5, %cst_26 {dimension_numbers = #tpu.dot_dimension_numbers<[0], [0], [1], [1], [0, 1, 1, 1], [], []>} : vector<16x8xf32>, vector<16x16xf32>, vector<8x16xf32> -> vector<8x16xf32>
    %38 = vector.broadcast %6 : vector<1x16xf32> to vector<8x16xf32>
    %39 = arith.addf %37, %38 : vector<8x16xf32>
    %cst_27 = arith.constant 0.000000e+00 : f32
    %40 = vector.broadcast %cst_27 : f32 to vector<8x16xf32>
    %41 = arith.maximumf %36, %40 : vector<8x16xf32>
    %cst_28 = arith.constant dense<0.000000e+00> : vector<16x16xf32>
    %42 = tpu.matmul %36, %36, %cst_28 {dimension_numbers = #tpu.dot_dimension_numbers<[0], [0], [1], [1], [0, 1, 1, 1], [], []>} : vector<8x16xf32>, vector<8x16xf32>, vector<16x16xf32> -> vector<16x16xf32>
    %cst_29 = arith.constant dense<0.000000e+00> : vector<16x16xf32>
    %43 = tpu.matmul %41, %36, %cst_29 {dimension_numbers = #tpu.dot_dimension_numbers<[0], [0], [1], [1], [0, 1, 1, 1], [], []>} : vector<8x16xf32>, vector<8x16xf32>, vector<16x16xf32> -> vector<16x16xf32>
    %cst_30 = arith.constant dense<0.000000e+00> : vector<8x16xf32>
    %44 = tpu.matmul %41, %43, %cst_30 {dimension_numbers = #tpu.dot_dimension_numbers<[1], [0], [0], [1], [0, 0, 1, 1], [], []>} : vector<8x16xf32>, vector<16x16xf32>, vector<8x16xf32> -> vector<8x16xf32>
    %cst_31 = arith.constant dense<0.000000e+00> : vector<16x16xf32>
    %45 = tpu.matmul %36, %44, %cst_31 {dimension_numbers = #tpu.dot_dimension_numbers<[0], [0], [1], [1], [0, 1, 1, 1], [], []>} : vector<8x16xf32>, vector<8x16xf32>, vector<16x16xf32> -> vector<16x16xf32>
    %c0_32 = arith.constant 0 : index
    %c0_33 = arith.constant 0 : index
    %c0_34 = arith.constant 0 : index
    %46 = vector.load %arg8[%c0_32, %c0_33, %c0_34] : memref<2x16x64xf32, #tpu.memory_space<vmem>>, vector<1x16x16xf32>
    %47 = vector.shape_cast %46 : vector<1x16x16xf32> to vector<16x16xf32>
    %48 = vector.shape_cast %42 : vector<16x16xf32> to vector<1x16x16xf32>
    tpu.vector_store %arg8[%c0_32, %c0_33, %c0_34], %48 {strides = array<i32>} : memref<2x16x64xf32, #tpu.memory_space<vmem>>, vector<1x16x16xf32>,
    %c0_35 = arith.constant 0 : index
    %c0_36 = arith.constant 0 : index
    %c16 = arith.constant 16 : index
    %49 = vector.load %arg8[%c0_35, %c0_36, %c16] : memref<2x16x64xf32, #tpu.memory_space<vmem>>, vector<1x16x16xf32>
    %50 = vector.shape_cast %49 : vector<1x16x16xf32> to vector<16x16xf32>
    %51 = vector.shape_cast %45 : vector<16x16xf32> to vector<1x16x16xf32>
    tpu.vector_store %arg8[%c0_35, %c0_36, %c16], %51 {strides = array<i32>} : memref<2x16x64xf32, #tpu.memory_space<vmem>>, vector<1x16x16xf32>,
    %c0_37 = arith.constant 0 : index
    %c0_38 = arith.constant 0 : index
    %c32 = arith.constant 32 : index
    %52 = vector.load %arg8[%c0_37, %c0_38, %c32] : memref<2x16x64xf32, #tpu.memory_space<vmem>>, vector<1x8x16xf32>
    %53 = vector.shape_cast %52 : vector<1x8x16xf32> to vector<8x16xf32>
    %54 = vector.shape_cast %39 : vector<8x16xf32> to vector<1x8x16xf32>
    tpu.vector_store %arg8[%c0_37, %c0_38, %c32], %54 {strides = array<i32>} : memref<2x16x64xf32, #tpu.memory_space<vmem>>, vector<1x8x16xf32>,
    %c0_39 = arith.constant 0 : index
    %c0_40 = arith.constant 0 : index
    %c48 = arith.constant 48 : index
    %55 = vector.load %arg8[%c0_39, %c0_40, %c48] : memref<2x16x64xf32, #tpu.memory_space<vmem>>, vector<1x16x8xf32>
    %56 = vector.shape_cast %55 : vector<1x16x8xf32> to vector<16x8xf32>
    %57 = vector.shape_cast %33 : vector<16x8xf32> to vector<1x16x8xf32>
    tpu.vector_store %arg8[%c0_39, %c0_40, %c48], %57 {strides = array<i32>} : memref<2x16x64xf32, #tpu.memory_space<vmem>>, vector<1x16x8xf32>,
    %c0_41 = arith.constant 0 : index
    %c0_42 = arith.constant 0 : index
    %c56 = arith.constant 56 : index
    %58 = vector.load %arg8[%c0_41, %c0_42, %c56] : memref<2x16x64xf32, #tpu.memory_space<vmem>>, vector<1x1x8xf32>
    %59 = vector.shape_cast %58 : vector<1x1x8xf32> to vector<1x8xf32>
    %60 = vector.shape_cast %15 : vector<1x8xf32> to vector<1x1x8xf32>
    tpu.vector_store %arg8[%c0_41, %c0_42, %c56], %60 {strides = array<i32>} : memref<2x16x64xf32, #tpu.memory_space<vmem>>, vector<1x1x8xf32>,
    %c0_43 = arith.constant 0 : index
    %c1 = arith.constant 1 : index
    %c56_44 = arith.constant 56 : index
    %61 = vector.load %arg8[%c0_43, %c1, %c56_44] : memref<2x16x64xf32, #tpu.memory_space<vmem>>, vector<1x1x8xf32>
    %62 = vector.shape_cast %61 : vector<1x1x8xf32> to vector<1x8xf32>
    %63 = vector.shape_cast %25 : vector<1x8xf32> to vector<1x1x8xf32>
    tpu.vector_store %arg8[%c0_43, %c1, %c56_44], %63 {strides = array<i32>} : memref<2x16x64xf32, #tpu.memory_space<vmem>>, vector<1x1x8xf32>,
    %c1_45 = arith.constant 1 : index
    %c0_46 = arith.constant 0 : index
    %c0_47 = arith.constant 0 : index
    %64 = vector.load %arg0[%c1_45, %c0_46, %c0_47] : memref<2x8x8xf32, #tpu.memory_space<vmem>>, vector<1x8x8xf32>
    %65 = vector.shape_cast %64 : vector<1x8x8xf32> to vector<8x8xf32>
    %cst_48 = arith.constant dense<0.000000e+00> : vector<16x8xf32>
    %66 = tpu.matmul %0, %65, %cst_48 {dimension_numbers = #tpu.dot_dimension_numbers<[0], [0], [1], [1], [0, 1, 1, 1], [], []>} : vector<8x16xf32>, vector<8x8xf32>, vector<16x8xf32> -> vector<16x8xf32>
    %cst_49 = arith.constant dense<0.000000e+00> : vector<8xf32>
    %67 = vector.multi_reduction <add>, %66, %cst_49 [0] : vector<16x8xf32> to vector<8xf32>
    %68 = vector.shape_cast %67 : vector<8xf32> to vector<1x8xf32>
    %cst_50 = arith.constant 1.600000e+01 : f32
    %69 = vector.broadcast %cst_50 : f32 to vector<1x8xf32>
    %70 = arith.divf %68, %69 : vector<1x8xf32>
    %71 = vector.broadcast %70 : vector<1x8xf32> to vector<16x8xf32>
    %72 = arith.subf %66, %71 : vector<16x8xf32>
    %73 = arith.mulf %72, %72 : vector<16x8xf32>
    %cst_51 = arith.constant dense<0.000000e+00> : vector<8xf32>
    %74 = vector.multi_reduction <add>, %73, %cst_51 [0] : vector<16x8xf32> to vector<8xf32>
    %75 = vector.shape_cast %74 : vector<8xf32> to vector<1x8xf32>
    %cst_52 = arith.constant 1.600000e+01 : f32
    %76 = vector.broadcast %cst_52 : f32 to vector<1x8xf32>
    %77 = arith.divf %75, %76 : vector<1x8xf32>
    %cst_53 = arith.constant 9.99999974E-6 : f32
    %78 = vector.broadcast %cst_53 : f32 to vector<1x8xf32>
    %79 = arith.addf %77, %78 : vector<1x8xf32>
    %80 = math.sqrt %79 : vector<1x8xf32>
    %81 = vector.broadcast %70 : vector<1x8xf32> to vector<16x8xf32>
    %82 = arith.subf %66, %81 : vector<16x8xf32>
    %83 = vector.broadcast %80 : vector<1x8xf32> to vector<16x8xf32>
    %84 = arith.divf %82, %83 : vector<16x8xf32>
    %85 = vector.broadcast %1 : vector<1x8xf32> to vector<16x8xf32>
    %86 = arith.mulf %84, %85 : vector<16x8xf32>
    %87 = vector.broadcast %2 : vector<1x8xf32> to vector<16x8xf32>
    %88 = arith.addf %86, %87 : vector<16x8xf32>
    %cst_54 = arith.constant dense<0.000000e+00> : vector<8x16xf32>
    %89 = tpu.matmul %88, %3, %cst_54 {dimension_numbers = #tpu.dot_dimension_numbers<[0], [0], [1], [1], [0, 1, 1, 1], [], []>} : vector<16x8xf32>, vector<16x16xf32>, vector<8x16xf32> -> vector<8x16xf32>
    %90 = vector.broadcast %4 : vector<1x16xf32> to vector<8x16xf32>
    %91 = arith.addf %89, %90 : vector<8x16xf32>
    %cst_55 = arith.constant dense<0.000000e+00> : vector<8x16xf32>
    %92 = tpu.matmul %88, %5, %cst_55 {dimension_numbers = #tpu.dot_dimension_numbers<[0], [0], [1], [1], [0, 1, 1, 1], [], []>} : vector<16x8xf32>, vector<16x16xf32>, vector<8x16xf32> -> vector<8x16xf32>
    %93 = vector.broadcast %6 : vector<1x16xf32> to vector<8x16xf32>
    %94 = arith.addf %92, %93 : vector<8x16xf32>
    %cst_56 = arith.constant 0.000000e+00 : f32
    %95 = vector.broadcast %cst_56 : f32 to vector<8x16xf32>
    %96 = arith.maximumf %91, %95 : vector<8x16xf32>
    %cst_57 = arith.constant dense<0.000000e+00> : vector<16x16xf32>
    %97 = tpu.matmul %91, %91, %cst_57 {dimension_numbers = #tpu.dot_dimension_numbers<[0], [0], [1], [1], [0, 1, 1, 1], [], []>} : vector<8x16xf32>, vector<8x16xf32>, vector<16x16xf32> -> vector<16x16xf32>
    %cst_58 = arith.constant dense<0.000000e+00> : vector<16x16xf32>
    %98 = tpu.matmul %96, %91, %cst_58 {dimension_numbers = #tpu.dot_dimension_numbers<[0], [0], [1], [1], [0, 1, 1, 1], [], []>} : vector<8x16xf32>, vector<8x16xf32>, vector<16x16xf32> -> vector<16x16xf32>
    %cst_59 = arith.constant dense<0.000000e+00> : vector<8x16xf32>
    %99 = tpu.matmul %96, %98, %cst_59 {dimension_numbers = #tpu.dot_dimension_numbers<[1], [0], [0], [1], [0, 0, 1, 1], [], []>} : vector<8x16xf32>, vector<16x16xf32>, vector<8x16xf32> -> vector<8x16xf32>
    %cst_60 = arith.constant dense<0.000000e+00> : vector<16x16xf32>
    %100 = tpu.matmul %91, %99, %cst_60 {dimension_numbers = #tpu.dot_dimension_numbers<[0], [0], [1], [1], [0, 1, 1, 1], [], []>} : vector<8x16xf32>, vector<8x16xf32>, vector<16x16xf32> -> vector<16x16xf32>
    %c1_61 = arith.constant 1 : index
    %c0_62 = arith.constant 0 : index
    %c0_63 = arith.constant 0 : index
    %101 = vector.load %arg8[%c1_61, %c0_62, %c0_63] : memref<2x16x64xf32, #tpu.memory_space<vmem>>, vector<1x16x16xf32>
    %102 = vector.shape_cast %101 : vector<1x16x16xf32> to vector<16x16xf32>
    %103 = vector.shape_cast %97 : vector<16x16xf32> to vector<1x16x16xf32>
    tpu.vector_store %arg8[%c1_61, %c0_62, %c0_63], %103 {strides = array<i32>} : memref<2x16x64xf32, #tpu.memory_space<vmem>>, vector<1x16x16xf32>,
    %c1_64 = arith.constant 1 : index
    %c0_65 = arith.constant 0 : index
    %c16_66 = arith.constant 16 : index
    %104 = vector.load %arg8[%c1_64, %c0_65, %c16_66] : memref<2x16x64xf32, #tpu.memory_space<vmem>>, vector<1x16x16xf32>
    %105 = vector.shape_cast %104 : vector<1x16x16xf32> to vector<16x16xf32>
    %106 = vector.shape_cast %100 : vector<16x16xf32> to vector<1x16x16xf32>
    tpu.vector_store %arg8[%c1_64, %c0_65, %c16_66], %106 {strides = array<i32>} : memref<2x16x64xf32, #tpu.memory_space<vmem>>, vector<1x16x16xf32>,
    %c1_67 = arith.constant 1 : index
    %c0_68 = arith.constant 0 : index
    %c32_69 = arith.constant 32 : index
    %107 = vector.load %arg8[%c1_67, %c0_68, %c32_69] : memref<2x16x64xf32, #tpu.memory_space<vmem>>, vector<1x8x16xf32>
    %108 = vector.shape_cast %107 : vector<1x8x16xf32> to vector<8x16xf32>
    %109 = vector.shape_cast %94 : vector<8x16xf32> to vector<1x8x16xf32>
    tpu.vector_store %arg8[%c1_67, %c0_68, %c32_69], %109 {strides = array<i32>} : memref<2x16x64xf32, #tpu.memory_space<vmem>>, vector<1x8x16xf32>,
    %c1_70 = arith.constant 1 : index
    %c0_71 = arith.constant 0 : index
    %c48_72 = arith.constant 48 : index
    %110 = vector.load %arg8[%c1_70, %c0_71, %c48_72] : memref<2x16x64xf32, #tpu.memory_space<vmem>>, vector<1x16x8xf32>
    %111 = vector.shape_cast %110 : vector<1x16x8xf32> to vector<16x8xf32>
    %112 = vector.shape_cast %88 : vector<16x8xf32> to vector<1x16x8xf32>
    tpu.vector_store %arg8[%c1_70, %c0_71, %c48_72], %112 {strides = array<i32>} : memref<2x16x64xf32, #tpu.memory_space<vmem>>, vector<1x16x8xf32>,
    %c1_73 = arith.constant 1 : index
    %c0_74 = arith.constant 0 : index
    %c56_75 = arith.constant 56 : index
    %113 = vector.load %arg8[%c1_73, %c0_74, %c56_75] : memref<2x16x64xf32, #tpu.memory_space<vmem>>, vector<1x1x8xf32>
    %114 = vector.shape_cast %113 : vector<1x1x8xf32> to vector<1x8xf32>
    %115 = vector.shape_cast %70 : vector<1x8xf32> to vector<1x1x8xf32>
    tpu.vector_store %arg8[%c1_73, %c0_74, %c56_75], %115 {strides = array<i32>} : memref<2x16x64xf32, #tpu.memory_space<vmem>>, vector<1x1x8xf32>,
    %c1_76 = arith.constant 1 : index
    %c1_77 = arith.constant 1 : index
    %c56_78 = arith.constant 56 : index
    %116 = vector.load %arg8[%c1_76, %c1_77, %c56_78] : memref<2x16x64xf32, #tpu.memory_space<vmem>>, vector<1x1x8xf32>
    %117 = vector.shape_cast %116 : vector<1x1x8xf32> to vector<1x8xf32>
    %118 = vector.shape_cast %80 : vector<1x8xf32> to vector<1x1x8xf32>
    tpu.vector_store %arg8[%c1_76, %c1_77, %c56_78], %118 {strides = array<i32>} : memref<2x16x64xf32, #tpu.memory_space<vmem>>, vector<1x1x8xf32>,
    return
  }
}

module attributes {stable_mosaic.version = 11 : i64} {
  func.func @seg2_kernel(%arg0: memref<2x1x16xf32, #tpu.memory_space<vmem>>, %arg1: memref<2x16x16xf32, #tpu.memory_space<vmem>>, %arg2: memref<2x16x64xf32, #tpu.memory_space<vmem>>, %arg3: memref<2x16x16xf32, #tpu.memory_space<vmem>>) attributes {dimension_semantics = [], scalar_prefetch = 0 : i64, scratch_operands = 0 : i64, tpu.core_type = #tpu.core_type<tc>} {
    %c0 = arith.constant 0 : index
    %c0_0 = arith.constant 0 : index
    %c0_1 = arith.constant 0 : index
    %0 = vector.load %arg0[%c0, %c0_0, %c0_1] : memref<2x1x16xf32, #tpu.memory_space<vmem>>, vector<1x1x16xf32>
    %1 = vector.shape_cast %0 : vector<1x1x16xf32> to vector<1x16xf32>
    %cst = arith.constant 0.000000e+00 : f32
    %2 = vector.broadcast %cst : f32 to vector<1x16xf32>
    %3 = arith.cmpf oge, %1, %2 : vector<1x16xf32>
    %cst_2 = arith.constant 0.00999999977 : f32
    %4 = vector.broadcast %cst_2 : f32 to vector<1x16xf32>
    %5 = arith.mulf %4, %1 : vector<1x16xf32>
    %6 = arith.select %3, %1, %5 : vector<1x16xi1>, vector<1x16xf32>
    %cst_3 = arith.constant 1.000000e-01 : f32
    %7 = vector.broadcast %cst_3 : f32 to vector<1x16xf32>
    %8 = arith.addf %6, %7 : vector<1x16xf32>
    %9 = math.rsqrt %8 : vector<1x16xf32>
    %cst_4 = arith.constant 2.000000e-02 : f32
    %10 = vector.broadcast %cst_4 : f32 to vector<1x16xf32>
    %11 = arith.mulf %9, %10 : vector<1x16xf32>
    %c0_5 = arith.constant 0 : index
    %c0_6 = arith.constant 0 : index
    %c0_7 = arith.constant 0 : index
    %12 = vector.load %arg1[%c0_5, %c0_6, %c0_7] : memref<2x16x16xf32, #tpu.memory_space<vmem>>, vector<1x16x16xf32>
    %13 = vector.shape_cast %12 : vector<1x16x16xf32> to vector<16x16xf32>
    %14 = vector.broadcast %11 : vector<1x16xf32> to vector<16x16xf32>
    %15 = arith.mulf %13, %14 : vector<16x16xf32>
    %cst_8 = arith.constant dense<0.000000e+00> : vector<16x16xf32>
    %16 = tpu.matmul %15, %13, %cst_8 {dimension_numbers = #tpu.dot_dimension_numbers<[1], [1], [0], [0], [0, 0, 1, 0], [], []>} : vector<16x16xf32>, vector<16x16xf32>, vector<16x16xf32> -> vector<16x16xf32>
    %c0_9 = arith.constant 0 : index
    %c0_10 = arith.constant 0 : index
    %c0_11 = arith.constant 0 : index
    %17 = vector.load %arg2[%c0_9, %c0_10, %c0_11] : memref<2x16x64xf32, #tpu.memory_space<vmem>>, vector<1x16x64xf32>
    %18 = vector.shape_cast %17 : vector<1x16x64xf32> to vector<16x64xf32>
    %19 = vector.extract_strided_slice %18 {offsets = [0, 0], sizes = [16, 16], strides = [1, 1]} : vector<16x64xf32> to vector<16x16xf32>
    %20 = vector.extract_strided_slice %18 {offsets = [0, 16], sizes = [16, 16], strides = [1, 1]} : vector<16x64xf32> to vector<16x16xf32>
    %21 = arith.addf %19, %20 : vector<16x16xf32>
    %cst_12 = arith.constant dense<0.000000e+00> : vector<16x16xf32>
    %22 = tpu.matmul %16, %21, %cst_12 {dimension_numbers = #tpu.dot_dimension_numbers<[0], [0], [1], [1], [0, 1, 1, 1], [], []>} : vector<16x16xf32>, vector<16x16xf32>, vector<16x16xf32> -> vector<16x16xf32>
    %cst_13 = arith.constant dense<0.000000e+00> : vector<16x16xf32>
    %23 = tpu.matmul %22, %16, %cst_13 {dimension_numbers = #tpu.dot_dimension_numbers<[1], [0], [0], [1], [0, 0, 1, 1], [], []>} : vector<16x16xf32>, vector<16x16xf32>, vector<16x16xf32> -> vector<16x16xf32>
    %24 = arith.cmpf one, %23, %23 : vector<16x16xf32>
    %cst_14 = arith.constant -1.000000e+10 : f32
    %cst_15 = arith.constant 1.000000e+10 : f32
    %25 = vector.broadcast %cst_14 : f32 to vector<16x16xf32>
    %26 = arith.maximumf %25, %23 : vector<16x16xf32>
    %27 = vector.broadcast %cst_15 : f32 to vector<16x16xf32>
    %28 = arith.minimumf %27, %26 : vector<16x16xf32>
    %cst_16 = arith.constant 0.000000e+00 : f32
    %29 = vector.broadcast %cst_16 : f32 to vector<16x16xf32>
    %30 = arith.select %24, %29, %28 : vector<16x16xi1>, vector<16x16xf32>
    %c0_17 = arith.constant 0 : index
    %c0_18 = arith.constant 0 : index
    %c0_19 = arith.constant 0 : index
    %31 = vector.load %arg3[%c0_17, %c0_18, %c0_19] : memref<2x16x16xf32, #tpu.memory_space<vmem>>, vector<1x16x16xf32>
    %32 = vector.shape_cast %31 : vector<1x16x16xf32> to vector<16x16xf32>
    %33 = vector.shape_cast %30 : vector<16x16xf32> to vector<1x16x16xf32>
    tpu.vector_store %arg3[%c0_17, %c0_18, %c0_19], %33 {strides = array<i32>} : memref<2x16x16xf32, #tpu.memory_space<vmem>>, vector<1x16x16xf32>,
    %c1 = arith.constant 1 : index
    %c0_20 = arith.constant 0 : index
    %c0_21 = arith.constant 0 : index
    %34 = vector.load %arg0[%c1, %c0_20, %c0_21] : memref<2x1x16xf32, #tpu.memory_space<vmem>>, vector<1x1x16xf32>
    %35 = vector.shape_cast %34 : vector<1x1x16xf32> to vector<1x16xf32>
    %cst_22 = arith.constant 0.000000e+00 : f32
    %36 = vector.broadcast %cst_22 : f32 to vector<1x16xf32>
    %37 = arith.cmpf oge, %35, %36 : vector<1x16xf32>
    %cst_23 = arith.constant 0.00999999977 : f32
    %38 = vector.broadcast %cst_23 : f32 to vector<1x16xf32>
    %39 = arith.mulf %38, %35 : vector<1x16xf32>
    %40 = arith.select %37, %35, %39 : vector<1x16xi1>, vector<1x16xf32>
    %cst_24 = arith.constant 1.000000e-01 : f32
    %41 = vector.broadcast %cst_24 : f32 to vector<1x16xf32>
    %42 = arith.addf %40, %41 : vector<1x16xf32>
    %43 = math.rsqrt %42 : vector<1x16xf32>
    %cst_25 = arith.constant 2.000000e-02 : f32
    %44 = vector.broadcast %cst_25 : f32 to vector<1x16xf32>
    %45 = arith.mulf %43, %44 : vector<1x16xf32>
    %c1_26 = arith.constant 1 : index
    %c0_27 = arith.constant 0 : index
    %c0_28 = arith.constant 0 : index
    %46 = vector.load %arg1[%c1_26, %c0_27, %c0_28] : memref<2x16x16xf32, #tpu.memory_space<vmem>>, vector<1x16x16xf32>
    %47 = vector.shape_cast %46 : vector<1x16x16xf32> to vector<16x16xf32>
    %48 = vector.broadcast %45 : vector<1x16xf32> to vector<16x16xf32>
    %49 = arith.mulf %47, %48 : vector<16x16xf32>
    %cst_29 = arith.constant dense<0.000000e+00> : vector<16x16xf32>
    %50 = tpu.matmul %49, %47, %cst_29 {dimension_numbers = #tpu.dot_dimension_numbers<[1], [1], [0], [0], [0, 0, 1, 0], [], []>} : vector<16x16xf32>, vector<16x16xf32>, vector<16x16xf32> -> vector<16x16xf32>
    %c1_30 = arith.constant 1 : index
    %c0_31 = arith.constant 0 : index
    %c0_32 = arith.constant 0 : index
    %51 = vector.load %arg2[%c1_30, %c0_31, %c0_32] : memref<2x16x64xf32, #tpu.memory_space<vmem>>, vector<1x16x64xf32>
    %52 = vector.shape_cast %51 : vector<1x16x64xf32> to vector<16x64xf32>
    %53 = vector.extract_strided_slice %52 {offsets = [0, 0], sizes = [16, 16], strides = [1, 1]} : vector<16x64xf32> to vector<16x16xf32>
    %54 = vector.extract_strided_slice %52 {offsets = [0, 16], sizes = [16, 16], strides = [1, 1]} : vector<16x64xf32> to vector<16x16xf32>
    %55 = arith.addf %53, %54 : vector<16x16xf32>
    %cst_33 = arith.constant dense<0.000000e+00> : vector<16x16xf32>
    %56 = tpu.matmul %50, %55, %cst_33 {dimension_numbers = #tpu.dot_dimension_numbers<[0], [0], [1], [1], [0, 1, 1, 1], [], []>} : vector<16x16xf32>, vector<16x16xf32>, vector<16x16xf32> -> vector<16x16xf32>
    %cst_34 = arith.constant dense<0.000000e+00> : vector<16x16xf32>
    %57 = tpu.matmul %56, %50, %cst_34 {dimension_numbers = #tpu.dot_dimension_numbers<[1], [0], [0], [1], [0, 0, 1, 1], [], []>} : vector<16x16xf32>, vector<16x16xf32>, vector<16x16xf32> -> vector<16x16xf32>
    %58 = arith.cmpf one, %57, %57 : vector<16x16xf32>
    %cst_35 = arith.constant -1.000000e+10 : f32
    %cst_36 = arith.constant 1.000000e+10 : f32
    %59 = vector.broadcast %cst_35 : f32 to vector<16x16xf32>
    %60 = arith.maximumf %59, %57 : vector<16x16xf32>
    %61 = vector.broadcast %cst_36 : f32 to vector<16x16xf32>
    %62 = arith.minimumf %61, %60 : vector<16x16xf32>
    %cst_37 = arith.constant 0.000000e+00 : f32
    %63 = vector.broadcast %cst_37 : f32 to vector<16x16xf32>
    %64 = arith.select %58, %63, %62 : vector<16x16xi1>, vector<16x16xf32>
    %c1_38 = arith.constant 1 : index
    %c0_39 = arith.constant 0 : index
    %c0_40 = arith.constant 0 : index
    %65 = vector.load %arg3[%c1_38, %c0_39, %c0_40] : memref<2x16x16xf32, #tpu.memory_space<vmem>>, vector<1x16x16xf32>
    %66 = vector.shape_cast %65 : vector<1x16x16xf32> to vector<16x16xf32>
    %67 = vector.shape_cast %64 : vector<16x16xf32> to vector<1x16x16xf32>
    tpu.vector_store %arg3[%c1_38, %c0_39, %c0_40], %67 {strides = array<i32>} : memref<2x16x16xf32, #tpu.memory_space<vmem>>, vector<1x16x16xf32>,
    return
  }
}

module attributes {stable_mosaic.version = 11 : i64} {
  func.func @seg3_kernel(%arg0: memref<2x1x16xf32, #tpu.memory_space<vmem>>, %arg1: memref<2x16x16xf32, #tpu.memory_space<vmem>>, %arg2: memref<2x16x16xf32, #tpu.memory_space<vmem>>, %arg3: memref<2x16x64xf32, #tpu.memory_space<vmem>>, %arg4: memref<8x16xf32, #tpu.memory_space<vmem>>, %arg5: memref<1x16xf32, #tpu.memory_space<vmem>>, %arg6: memref<8x16xf32, #tpu.memory_space<vmem>>, %arg7: memref<1x16xf32, #tpu.memory_space<vmem>>, %arg8: memref<1x8xf32, #tpu.memory_space<vmem>>, %arg9: memref<1x8xf32, #tpu.memory_space<vmem>>, %arg10: memref<2x12xf32, #tpu.memory_space<vmem>>, %arg11: memref<1x12xf32, #tpu.memory_space<vmem>>, %arg12: memref<8x16x12xf32, #tpu.memory_space<vmem>>) attributes {dimension_semantics = [], scalar_prefetch = 0 : i64, scratch_operands = 0 : i64, tpu.core_type = #tpu.core_type<tc>} {
    %c0 = arith.constant 0 : index
    %c0_0 = arith.constant 0 : index
    %0 = vector.load %arg4[%c0, %c0_0] : memref<8x16xf32, #tpu.memory_space<vmem>>, vector<8x16xf32>
    %c0_1 = arith.constant 0 : index
    %c0_2 = arith.constant 0 : index
    %1 = vector.load %arg5[%c0_1, %c0_2] : memref<1x16xf32, #tpu.memory_space<vmem>>, vector<1x16xf32>
    %c0_3 = arith.constant 0 : index
    %c0_4 = arith.constant 0 : index
    %2 = vector.load %arg6[%c0_3, %c0_4] : memref<8x16xf32, #tpu.memory_space<vmem>>, vector<8x16xf32>
    %c0_5 = arith.constant 0 : index
    %c0_6 = arith.constant 0 : index
    %3 = vector.load %arg7[%c0_5, %c0_6] : memref<1x16xf32, #tpu.memory_space<vmem>>, vector<1x16xf32>
    %c0_7 = arith.constant 0 : index
    %c0_8 = arith.constant 0 : index
    %4 = vector.load %arg8[%c0_7, %c0_8] : memref<1x8xf32, #tpu.memory_space<vmem>>, vector<1x8xf32>
    %c0_9 = arith.constant 0 : index
    %c0_10 = arith.constant 0 : index
    %5 = vector.load %arg9[%c0_9, %c0_10] : memref<1x8xf32, #tpu.memory_space<vmem>>, vector<1x8xf32>
    %c0_11 = arith.constant 0 : index
    %c0_12 = arith.constant 0 : index
    %6 = vector.load %arg10[%c0_11, %c0_12] : memref<2x12xf32, #tpu.memory_space<vmem>>, vector<2x12xf32>
    %c0_13 = arith.constant 0 : index
    %c0_14 = arith.constant 0 : index
    %7 = vector.load %arg11[%c0_13, %c0_14] : memref<1x12xf32, #tpu.memory_space<vmem>>, vector<1x12xf32>
    %c0_15 = arith.constant 0 : index
    %c0_16 = arith.constant 0 : index
    %c0_17 = arith.constant 0 : index
    %8 = vector.load %arg0[%c0_15, %c0_16, %c0_17] : memref<2x1x16xf32, #tpu.memory_space<vmem>>, vector<1x1x16xf32>
    %9 = vector.shape_cast %8 : vector<1x1x16xf32> to vector<1x16xf32>
    %cst = arith.constant 0.000000e+00 : f32
    %10 = vector.broadcast %cst : f32 to vector<1x16xf32>
    %11 = arith.cmpf oge, %9, %10 : vector<1x16xf32>
    %cst_18 = arith.constant 0.00999999977 : f32
    %12 = vector.broadcast %cst_18 : f32 to vector<1x16xf32>
    %13 = arith.mulf %12, %9 : vector<1x16xf32>
    %14 = arith.select %11, %9, %13 : vector<1x16xi1>, vector<1x16xf32>
    %cst_19 = arith.constant 1.000000e-01 : f32
    %15 = vector.broadcast %cst_19 : f32 to vector<1x16xf32>
    %16 = arith.addf %14, %15 : vector<1x16xf32>
    %17 = math.rsqrt %16 : vector<1x16xf32>
    %cst_20 = arith.constant 2.000000e-02 : f32
    %18 = vector.broadcast %cst_20 : f32 to vector<1x16xf32>
    %19 = arith.mulf %17, %18 : vector<1x16xf32>
    %c0_21 = arith.constant 0 : index
    %c0_22 = arith.constant 0 : index
    %c0_23 = arith.constant 0 : index
    %20 = vector.load %arg1[%c0_21, %c0_22, %c0_23] : memref<2x16x16xf32, #tpu.memory_space<vmem>>, vector<1x16x16xf32>
    %21 = vector.shape_cast %20 : vector<1x16x16xf32> to vector<16x16xf32>
    %22 = vector.broadcast %19 : vector<1x16xf32> to vector<16x16xf32>
    %23 = arith.mulf %21, %22 : vector<16x16xf32>
    %cst_24 = arith.constant dense<0.000000e+00> : vector<16x16xf32>
    %24 = tpu.matmul %23, %21, %cst_24 {dimension_numbers = #tpu.dot_dimension_numbers<[1], [1], [0], [0], [0, 0, 1, 0], [], []>} : vector<16x16xf32>, vector<16x16xf32>, vector<16x16xf32> -> vector<16x16xf32>
    %c0_25 = arith.constant 0 : index
    %c0_26 = arith.constant 0 : index
    %c0_27 = arith.constant 0 : index
    %25 = vector.load %arg2[%c0_25, %c0_26, %c0_27] : memref<2x16x16xf32, #tpu.memory_space<vmem>>, vector<1x16x16xf32>
    %26 = vector.shape_cast %25 : vector<1x16x16xf32> to vector<16x16xf32>
    %27 = arith.mulf %24, %26 : vector<16x16xf32>
    %cst_28 = arith.constant dense<0.000000e+00> : vector<16xf32>
    %28 = vector.multi_reduction <add>, %27, %cst_28 [0] : vector<16x16xf32> to vector<16xf32>
    %29 = vector.shape_cast %28 : vector<16xf32> to vector<1x16xf32>
    %cst_29 = arith.constant 2.000000e-02 : f32
    %30 = vector.broadcast %cst_29 : f32 to vector<1x16xf32>
    %31 = arith.mulf %29, %30 : vector<1x16xf32>
    %c0_30 = arith.constant 0 : index
    %c0_31 = arith.constant 0 : index
    %c0_32 = arith.constant 0 : index
    %32 = vector.load %arg3[%c0_30, %c0_31, %c0_32] : memref<2x16x64xf32, #tpu.memory_space<vmem>>, vector<1x16x64xf32>
    %33 = vector.shape_cast %32 : vector<1x16x64xf32> to vector<16x64xf32>
    %34 = vector.extract_strided_slice %33 {offsets = [0, 32], sizes = [8, 16], strides = [1, 1]} : vector<16x64xf32> to vector<8x16xf32>
    %35 = vector.extract_strided_slice %33 {offsets = [0, 48], sizes = [16, 8], strides = [1, 1]} : vector<16x64xf32> to vector<16x8xf32>
    %36 = vector.extract_strided_slice %33 {offsets = [0, 56], sizes = [1, 8], strides = [1, 1]} : vector<16x64xf32> to vector<1x8xf32>
    %37 = vector.extract_strided_slice %33 {offsets = [1, 56], sizes = [1, 8], strides = [1, 1]} : vector<16x64xf32> to vector<1x8xf32>
    %38 = vector.broadcast %31 : vector<1x16xf32> to vector<8x16xf32>
    %39 = arith.mulf %34, %38 : vector<8x16xf32>
    %cst_33 = arith.constant dense<0.000000e+00> : vector<16x16xf32>
    %40 = tpu.matmul %34, %39, %cst_33 {dimension_numbers = #tpu.dot_dimension_numbers<[0], [0], [1], [1], [0, 1, 1, 1], [], []>} : vector<8x16xf32>, vector<8x16xf32>, vector<16x16xf32> -> vector<16x16xf32>
    %cst_34 = arith.constant dense<0xFF800000> : vector<8xf32>
    %41 = vector.multi_reduction <maximumf>, %39, %cst_34 [1] : vector<8x16xf32> to vector<8xf32>
    %42 = vector.shape_cast %41 : vector<8xf32> to vector<8x1xf32>
    %43 = vector.broadcast %42 : vector<8x1xf32> to vector<8x16xf32>
    %44 = arith.subf %39, %43 : vector<8x16xf32>
    %45 = math.exp %44 : vector<8x16xf32>
    %cst_35 = arith.constant dense<0.000000e+00> : vector<8xf32>
    %46 = vector.multi_reduction <add>, %45, %cst_35 [1] : vector<8x16xf32> to vector<8xf32>
    %47 = vector.shape_cast %46 : vector<8xf32> to vector<8x1xf32>
    %48 = vector.broadcast %47 : vector<8x1xf32> to vector<8x16xf32>
    %49 = arith.divf %45, %48 : vector<8x16xf32>
    %50 = arith.mulf %49, %0 : vector<8x16xf32>
    %cst_36 = arith.constant dense<0.000000e+00> : vector<16xf32>
    %51 = vector.multi_reduction <add>, %50, %cst_36 [0] : vector<8x16xf32> to vector<16xf32>
    %52 = vector.shape_cast %51 : vector<16xf32> to vector<1x16xf32>
    %53 = arith.mulf %49, %2 : vector<8x16xf32>
    %cst_37 = arith.constant dense<0.000000e+00> : vector<16xf32>
    %54 = vector.multi_reduction <add>, %53, %cst_37 [0] : vector<8x16xf32> to vector<16xf32>
    %55 = vector.shape_cast %54 : vector<16xf32> to vector<1x16xf32>
    %56 = vector.broadcast %52 : vector<1x16xf32> to vector<16x16xf32>
    %57 = arith.mulf %40, %56 : vector<16x16xf32>
    %58 = vector.broadcast %1 : vector<1x16xf32> to vector<16x16xf32>
    %59 = arith.subf %57, %58 : vector<16x16xf32>
    %60 = vector.broadcast %55 : vector<1x16xf32> to vector<16x16xf32>
    %61 = arith.mulf %59, %60 : vector<16x16xf32>
    %62 = vector.broadcast %3 : vector<1x16xf32> to vector<16x16xf32>
    %63 = arith.subf %61, %62 : vector<16x16xf32>
    %cst_38 = arith.constant dense<0.000000e+00> : vector<16x8xf32>
    %64 = tpu.matmul %63, %39, %cst_38 {dimension_numbers = #tpu.dot_dimension_numbers<[1], [1], [0], [0], [0, 0, 1, 0], [], []>} : vector<16x16xf32>, vector<8x16xf32>, vector<16x8xf32> -> vector<16x8xf32>
    %65 = arith.addf %64, %35 : vector<16x8xf32>
    %66 = vector.broadcast %5 : vector<1x8xf32> to vector<16x8xf32>
    %67 = arith.subf %65, %66 : vector<16x8xf32>
    %cst_39 = arith.constant 1.000000e-10 : f32
    %68 = vector.broadcast %cst_39 : f32 to vector<1x8xf32>
    %69 = arith.addf %4, %68 : vector<1x8xf32>
    %70 = vector.broadcast %69 : vector<1x8xf32> to vector<16x8xf32>
    %71 = arith.divf %67, %70 : vector<16x8xf32>
    %72 = vector.broadcast %37 : vector<1x8xf32> to vector<16x8xf32>
    %73 = arith.mulf %71, %72 : vector<16x8xf32>
    %74 = vector.broadcast %36 : vector<1x8xf32> to vector<16x8xf32>
    %75 = arith.addf %73, %74 : vector<16x8xf32>
    %76 = vector.extract_strided_slice %75 {offsets = [0, 0], sizes = [16, 1], strides = [1, 1]} : vector<16x8xf32> to vector<16x1xf32>
    %77 = vector.extract_strided_slice %6 {offsets = [0, 0], sizes = [1, 12], strides = [1, 1]} : vector<2x12xf32> to vector<1x12xf32>
    %78 = vector.broadcast %76 : vector<16x1xf32> to vector<16x12xf32>
    %79 = vector.broadcast %77 : vector<1x12xf32> to vector<16x12xf32>
    %80 = arith.mulf %78, %79 : vector<16x12xf32>
    %81 = vector.broadcast %7 : vector<1x12xf32> to vector<16x12xf32>
    %82 = arith.addf %80, %81 : vector<16x12xf32>
    %83 = vector.extract_strided_slice %75 {offsets = [0, 1], sizes = [16, 1], strides = [1, 1]} : vector<16x8xf32> to vector<16x1xf32>
    %84 = vector.extract_strided_slice %6 {offsets = [1, 0], sizes = [1, 12], strides = [1, 1]} : vector<2x12xf32> to vector<1x12xf32>
    %85 = vector.broadcast %83 : vector<16x1xf32> to vector<16x12xf32>
    %86 = vector.broadcast %84 : vector<1x12xf32> to vector<16x12xf32>
    %87 = arith.mulf %85, %86 : vector<16x12xf32>
    %88 = arith.addf %82, %87 : vector<16x12xf32>
    %c0_40 = arith.constant 0 : index
    %c0_41 = arith.constant 0 : index
    %c0_42 = arith.constant 0 : index
    %89 = vector.load %arg12[%c0_40, %c0_41, %c0_42] : memref<8x16x12xf32, #tpu.memory_space<vmem>>, vector<1x16x12xf32>
    %90 = vector.shape_cast %89 : vector<1x16x12xf32> to vector<16x12xf32>
    %91 = vector.shape_cast %88 : vector<16x12xf32> to vector<1x16x12xf32>
    tpu.vector_store %arg12[%c0_40, %c0_41, %c0_42], %91 {strides = array<i32>} : memref<8x16x12xf32, #tpu.memory_space<vmem>>, vector<1x16x12xf32>,
    %92 = vector.extract_strided_slice %75 {offsets = [0, 2], sizes = [16, 1], strides = [1, 1]} : vector<16x8xf32> to vector<16x1xf32>
    %93 = vector.extract_strided_slice %6 {offsets = [0, 0], sizes = [1, 12], strides = [1, 1]} : vector<2x12xf32> to vector<1x12xf32>
    %94 = vector.broadcast %92 : vector<16x1xf32> to vector<16x12xf32>
    %95 = vector.broadcast %93 : vector<1x12xf32> to vector<16x12xf32>
    %96 = arith.mulf %94, %95 : vector<16x12xf32>
    %97 = vector.broadcast %7 : vector<1x12xf32> to vector<16x12xf32>
    %98 = arith.addf %96, %97 : vector<16x12xf32>
    %99 = vector.extract_strided_slice %75 {offsets = [0, 3], sizes = [16, 1], strides = [1, 1]} : vector<16x8xf32> to vector<16x1xf32>
    %100 = vector.extract_strided_slice %6 {offsets = [1, 0], sizes = [1, 12], strides = [1, 1]} : vector<2x12xf32> to vector<1x12xf32>
    %101 = vector.broadcast %99 : vector<16x1xf32> to vector<16x12xf32>
    %102 = vector.broadcast %100 : vector<1x12xf32> to vector<16x12xf32>
    %103 = arith.mulf %101, %102 : vector<16x12xf32>
    %104 = arith.addf %98, %103 : vector<16x12xf32>
    %c1 = arith.constant 1 : index
    %c0_43 = arith.constant 0 : index
    %c0_44 = arith.constant 0 : index
    %105 = vector.load %arg12[%c1, %c0_43, %c0_44] : memref<8x16x12xf32, #tpu.memory_space<vmem>>, vector<1x16x12xf32>
    %106 = vector.shape_cast %105 : vector<1x16x12xf32> to vector<16x12xf32>
    %107 = vector.shape_cast %104 : vector<16x12xf32> to vector<1x16x12xf32>
    tpu.vector_store %arg12[%c1, %c0_43, %c0_44], %107 {strides = array<i32>} : memref<8x16x12xf32, #tpu.memory_space<vmem>>, vector<1x16x12xf32>,
    %108 = vector.extract_strided_slice %75 {offsets = [0, 4], sizes = [16, 1], strides = [1, 1]} : vector<16x8xf32> to vector<16x1xf32>
    %109 = vector.extract_strided_slice %6 {offsets = [0, 0], sizes = [1, 12], strides = [1, 1]} : vector<2x12xf32> to vector<1x12xf32>
    %110 = vector.broadcast %108 : vector<16x1xf32> to vector<16x12xf32>
    %111 = vector.broadcast %109 : vector<1x12xf32> to vector<16x12xf32>
    %112 = arith.mulf %110, %111 : vector<16x12xf32>
    %113 = vector.broadcast %7 : vector<1x12xf32> to vector<16x12xf32>
    %114 = arith.addf %112, %113 : vector<16x12xf32>
    %115 = vector.extract_strided_slice %75 {offsets = [0, 5], sizes = [16, 1], strides = [1, 1]} : vector<16x8xf32> to vector<16x1xf32>
    %116 = vector.extract_strided_slice %6 {offsets = [1, 0], sizes = [1, 12], strides = [1, 1]} : vector<2x12xf32> to vector<1x12xf32>
    %117 = vector.broadcast %115 : vector<16x1xf32> to vector<16x12xf32>
    %118 = vector.broadcast %116 : vector<1x12xf32> to vector<16x12xf32>
    %119 = arith.mulf %117, %118 : vector<16x12xf32>
    %120 = arith.addf %114, %119 : vector<16x12xf32>
    %c2 = arith.constant 2 : index
    %c0_45 = arith.constant 0 : index
    %c0_46 = arith.constant 0 : index
    %121 = vector.load %arg12[%c2, %c0_45, %c0_46] : memref<8x16x12xf32, #tpu.memory_space<vmem>>, vector<1x16x12xf32>
    %122 = vector.shape_cast %121 : vector<1x16x12xf32> to vector<16x12xf32>
    %123 = vector.shape_cast %120 : vector<16x12xf32> to vector<1x16x12xf32>
    tpu.vector_store %arg12[%c2, %c0_45, %c0_46], %123 {strides = array<i32>} : memref<8x16x12xf32, #tpu.memory_space<vmem>>, vector<1x16x12xf32>,
    %124 = vector.extract_strided_slice %75 {offsets = [0, 6], sizes = [16, 1], strides = [1, 1]} : vector<16x8xf32> to vector<16x1xf32>
    %125 = vector.extract_strided_slice %6 {offsets = [0, 0], sizes = [1, 12], strides = [1, 1]} : vector<2x12xf32> to vector<1x12xf32>
    %126 = vector.broadcast %124 : vector<16x1xf32> to vector<16x12xf32>
    %127 = vector.broadcast %125 : vector<1x12xf32> to vector<16x12xf32>
    %128 = arith.mulf %126, %127 : vector<16x12xf32>
    %129 = vector.broadcast %7 : vector<1x12xf32> to vector<16x12xf32>
    %130 = arith.addf %128, %129 : vector<16x12xf32>
    %131 = vector.extract_strided_slice %75 {offsets = [0, 7], sizes = [16, 1], strides = [1, 1]} : vector<16x8xf32> to vector<16x1xf32>
    %132 = vector.extract_strided_slice %6 {offsets = [1, 0], sizes = [1, 12], strides = [1, 1]} : vector<2x12xf32> to vector<1x12xf32>
    %133 = vector.broadcast %131 : vector<16x1xf32> to vector<16x12xf32>
    %134 = vector.broadcast %132 : vector<1x12xf32> to vector<16x12xf32>
    %135 = arith.mulf %133, %134 : vector<16x12xf32>
    %136 = arith.addf %130, %135 : vector<16x12xf32>
    %c3 = arith.constant 3 : index
    %c0_47 = arith.constant 0 : index
    %c0_48 = arith.constant 0 : index
    %137 = vector.load %arg12[%c3, %c0_47, %c0_48] : memref<8x16x12xf32, #tpu.memory_space<vmem>>, vector<1x16x12xf32>
    %138 = vector.shape_cast %137 : vector<1x16x12xf32> to vector<16x12xf32>
    %139 = vector.shape_cast %136 : vector<16x12xf32> to vector<1x16x12xf32>
    tpu.vector_store %arg12[%c3, %c0_47, %c0_48], %139 {strides = array<i32>} : memref<8x16x12xf32, #tpu.memory_space<vmem>>, vector<1x16x12xf32>,
    %c1_49 = arith.constant 1 : index
    %c0_50 = arith.constant 0 : index
    %c0_51 = arith.constant 0 : index
    %140 = vector.load %arg0[%c1_49, %c0_50, %c0_51] : memref<2x1x16xf32, #tpu.memory_space<vmem>>, vector<1x1x16xf32>
    %141 = vector.shape_cast %140 : vector<1x1x16xf32> to vector<1x16xf32>
    %cst_52 = arith.constant 0.000000e+00 : f32
    %142 = vector.broadcast %cst_52 : f32 to vector<1x16xf32>
    %143 = arith.cmpf oge, %141, %142 : vector<1x16xf32>
    %cst_53 = arith.constant 0.00999999977 : f32
    %144 = vector.broadcast %cst_53 : f32 to vector<1x16xf32>
    %145 = arith.mulf %144, %141 : vector<1x16xf32>
    %146 = arith.select %143, %141, %145 : vector<1x16xi1>, vector<1x16xf32>
    %cst_54 = arith.constant 1.000000e-01 : f32
    %147 = vector.broadcast %cst_54 : f32 to vector<1x16xf32>
    %148 = arith.addf %146, %147 : vector<1x16xf32>
    %149 = math.rsqrt %148 : vector<1x16xf32>
    %cst_55 = arith.constant 2.000000e-02 : f32
    %150 = vector.broadcast %cst_55 : f32 to vector<1x16xf32>
    %151 = arith.mulf %149, %150 : vector<1x16xf32>
    %c1_56 = arith.constant 1 : index
    %c0_57 = arith.constant 0 : index
    %c0_58 = arith.constant 0 : index
    %152 = vector.load %arg1[%c1_56, %c0_57, %c0_58] : memref<2x16x16xf32, #tpu.memory_space<vmem>>, vector<1x16x16xf32>
    %153 = vector.shape_cast %152 : vector<1x16x16xf32> to vector<16x16xf32>
    %154 = vector.broadcast %151 : vector<1x16xf32> to vector<16x16xf32>
    %155 = arith.mulf %153, %154 : vector<16x16xf32>
    %cst_59 = arith.constant dense<0.000000e+00> : vector<16x16xf32>
    %156 = tpu.matmul %155, %153, %cst_59 {dimension_numbers = #tpu.dot_dimension_numbers<[1], [1], [0], [0], [0, 0, 1, 0], [], []>} : vector<16x16xf32>, vector<16x16xf32>, vector<16x16xf32> -> vector<16x16xf32>
    %c1_60 = arith.constant 1 : index
    %c0_61 = arith.constant 0 : index
    %c0_62 = arith.constant 0 : index
    %157 = vector.load %arg2[%c1_60, %c0_61, %c0_62] : memref<2x16x16xf32, #tpu.memory_space<vmem>>, vector<1x16x16xf32>
    %158 = vector.shape_cast %157 : vector<1x16x16xf32> to vector<16x16xf32>
    %159 = arith.mulf %156, %158 : vector<16x16xf32>
    %cst_63 = arith.constant dense<0.000000e+00> : vector<16xf32>
    %160 = vector.multi_reduction <add>, %159, %cst_63 [0] : vector<16x16xf32> to vector<16xf32>
    %161 = vector.shape_cast %160 : vector<16xf32> to vector<1x16xf32>
    %cst_64 = arith.constant 2.000000e-02 : f32
    %162 = vector.broadcast %cst_64 : f32 to vector<1x16xf32>
    %163 = arith.mulf %161, %162 : vector<1x16xf32>
    %c1_65 = arith.constant 1 : index
    %c0_66 = arith.constant 0 : index
    %c0_67 = arith.constant 0 : index
    %164 = vector.load %arg3[%c1_65, %c0_66, %c0_67] : memref<2x16x64xf32, #tpu.memory_space<vmem>>, vector<1x16x64xf32>
    %165 = vector.shape_cast %164 : vector<1x16x64xf32> to vector<16x64xf32>
    %166 = vector.extract_strided_slice %165 {offsets = [0, 32], sizes = [8, 16], strides = [1, 1]} : vector<16x64xf32> to vector<8x16xf32>
    %167 = vector.extract_strided_slice %165 {offsets = [0, 48], sizes = [16, 8], strides = [1, 1]} : vector<16x64xf32> to vector<16x8xf32>
    %168 = vector.extract_strided_slice %165 {offsets = [0, 56], sizes = [1, 8], strides = [1, 1]} : vector<16x64xf32> to vector<1x8xf32>
    %169 = vector.extract_strided_slice %165 {offsets = [1, 56], sizes = [1, 8], strides = [1, 1]} : vector<16x64xf32> to vector<1x8xf32>
    %170 = vector.broadcast %163 : vector<1x16xf32> to vector<8x16xf32>
    %171 = arith.mulf %166, %170 : vector<8x16xf32>
    %cst_68 = arith.constant dense<0.000000e+00> : vector<16x16xf32>
    %172 = tpu.matmul %166, %171, %cst_68 {dimension_numbers = #tpu.dot_dimension_numbers<[0], [0], [1], [1], [0, 1, 1, 1], [], []>} : vector<8x16xf32>, vector<8x16xf32>, vector<16x16xf32> -> vector<16x16xf32>
    %cst_69 = arith.constant dense<0xFF800000> : vector<8xf32>
    %173 = vector.multi_reduction <maximumf>, %171, %cst_69 [1] : vector<8x16xf32> to vector<8xf32>
    %174 = vector.shape_cast %173 : vector<8xf32> to vector<8x1xf32>
    %175 = vector.broadcast %174 : vector<8x1xf32> to vector<8x16xf32>
    %176 = arith.subf %171, %175 : vector<8x16xf32>
    %177 = math.exp %176 : vector<8x16xf32>
    %cst_70 = arith.constant dense<0.000000e+00> : vector<8xf32>
    %178 = vector.multi_reduction <add>, %177, %cst_70 [1] : vector<8x16xf32> to vector<8xf32>
    %179 = vector.shape_cast %178 : vector<8xf32> to vector<8x1xf32>
    %180 = vector.broadcast %179 : vector<8x1xf32> to vector<8x16xf32>
    %181 = arith.divf %177, %180 : vector<8x16xf32>
    %182 = arith.mulf %181, %0 : vector<8x16xf32>
    %cst_71 = arith.constant dense<0.000000e+00> : vector<16xf32>
    %183 = vector.multi_reduction <add>, %182, %cst_71 [0] : vector<8x16xf32> to vector<16xf32>
    %184 = vector.shape_cast %183 : vector<16xf32> to vector<1x16xf32>
    %185 = arith.mulf %181, %2 : vector<8x16xf32>
    %cst_72 = arith.constant dense<0.000000e+00> : vector<16xf32>
    %186 = vector.multi_reduction <add>, %185, %cst_72 [0] : vector<8x16xf32> to vector<16xf32>
    %187 = vector.shape_cast %186 : vector<16xf32> to vector<1x16xf32>
    %188 = vector.broadcast %184 : vector<1x16xf32> to vector<16x16xf32>
    %189 = arith.mulf %172, %188 : vector<16x16xf32>
    %190 = vector.broadcast %1 : vector<1x16xf32> to vector<16x16xf32>
    %191 = arith.subf %189, %190 : vector<16x16xf32>
    %192 = vector.broadcast %187 : vector<1x16xf32> to vector<16x16xf32>
    %193 = arith.mulf %191, %192 : vector<16x16xf32>
    %194 = vector.broadcast %3 : vector<1x16xf32> to vector<16x16xf32>
    %195 = arith.subf %193, %194 : vector<16x16xf32>
    %cst_73 = arith.constant dense<0.000000e+00> : vector<16x8xf32>
    %196 = tpu.matmul %195, %171, %cst_73 {dimension_numbers = #tpu.dot_dimension_numbers<[1], [1], [0], [0], [0, 0, 1, 0], [], []>} : vector<16x16xf32>, vector<8x16xf32>, vector<16x8xf32> -> vector<16x8xf32>
    %197 = arith.addf %196, %167 : vector<16x8xf32>
    %198 = vector.broadcast %5 : vector<1x8xf32> to vector<16x8xf32>
    %199 = arith.subf %197, %198 : vector<16x8xf32>
    %cst_74 = arith.constant 1.000000e-10 : f32
    %200 = vector.broadcast %cst_74 : f32 to vector<1x8xf32>
    %201 = arith.addf %4, %200 : vector<1x8xf32>
    %202 = vector.broadcast %201 : vector<1x8xf32> to vector<16x8xf32>
    %203 = arith.divf %199, %202 : vector<16x8xf32>
    %204 = vector.broadcast %169 : vector<1x8xf32> to vector<16x8xf32>
    %205 = arith.mulf %203, %204 : vector<16x8xf32>
    %206 = vector.broadcast %168 : vector<1x8xf32> to vector<16x8xf32>
    %207 = arith.addf %205, %206 : vector<16x8xf32>
    %208 = vector.extract_strided_slice %207 {offsets = [0, 0], sizes = [16, 1], strides = [1, 1]} : vector<16x8xf32> to vector<16x1xf32>
    %209 = vector.extract_strided_slice %6 {offsets = [0, 0], sizes = [1, 12], strides = [1, 1]} : vector<2x12xf32> to vector<1x12xf32>
    %210 = vector.broadcast %208 : vector<16x1xf32> to vector<16x12xf32>
    %211 = vector.broadcast %209 : vector<1x12xf32> to vector<16x12xf32>
    %212 = arith.mulf %210, %211 : vector<16x12xf32>
    %213 = vector.broadcast %7 : vector<1x12xf32> to vector<16x12xf32>
    %214 = arith.addf %212, %213 : vector<16x12xf32>
    %215 = vector.extract_strided_slice %207 {offsets = [0, 1], sizes = [16, 1], strides = [1, 1]} : vector<16x8xf32> to vector<16x1xf32>
    %216 = vector.extract_strided_slice %6 {offsets = [1, 0], sizes = [1, 12], strides = [1, 1]} : vector<2x12xf32> to vector<1x12xf32>
    %217 = vector.broadcast %215 : vector<16x1xf32> to vector<16x12xf32>
    %218 = vector.broadcast %216 : vector<1x12xf32> to vector<16x12xf32>
    %219 = arith.mulf %217, %218 : vector<16x12xf32>
    %220 = arith.addf %214, %219 : vector<16x12xf32>
    %c4 = arith.constant 4 : index
    %c0_75 = arith.constant 0 : index
    %c0_76 = arith.constant 0 : index
    %221 = vector.load %arg12[%c4, %c0_75, %c0_76] : memref<8x16x12xf32, #tpu.memory_space<vmem>>, vector<1x16x12xf32>
    %222 = vector.shape_cast %221 : vector<1x16x12xf32> to vector<16x12xf32>
    %223 = vector.shape_cast %220 : vector<16x12xf32> to vector<1x16x12xf32>
    tpu.vector_store %arg12[%c4, %c0_75, %c0_76], %223 {strides = array<i32>} : memref<8x16x12xf32, #tpu.memory_space<vmem>>, vector<1x16x12xf32>,
    %224 = vector.extract_strided_slice %207 {offsets = [0, 2], sizes = [16, 1], strides = [1, 1]} : vector<16x8xf32> to vector<16x1xf32>
    %225 = vector.extract_strided_slice %6 {offsets = [0, 0], sizes = [1, 12], strides = [1, 1]} : vector<2x12xf32> to vector<1x12xf32>
    %226 = vector.broadcast %224 : vector<16x1xf32> to vector<16x12xf32>
    %227 = vector.broadcast %225 : vector<1x12xf32> to vector<16x12xf32>
    %228 = arith.mulf %226, %227 : vector<16x12xf32>
    %229 = vector.broadcast %7 : vector<1x12xf32> to vector<16x12xf32>
    %230 = arith.addf %228, %229 : vector<16x12xf32>
    %231 = vector.extract_strided_slice %207 {offsets = [0, 3], sizes = [16, 1], strides = [1, 1]} : vector<16x8xf32> to vector<16x1xf32>
    %232 = vector.extract_strided_slice %6 {offsets = [1, 0], sizes = [1, 12], strides = [1, 1]} : vector<2x12xf32> to vector<1x12xf32>
    %233 = vector.broadcast %231 : vector<16x1xf32> to vector<16x12xf32>
    %234 = vector.broadcast %232 : vector<1x12xf32> to vector<16x12xf32>
    %235 = arith.mulf %233, %234 : vector<16x12xf32>
    %236 = arith.addf %230, %235 : vector<16x12xf32>
    %c5 = arith.constant 5 : index
    %c0_77 = arith.constant 0 : index
    %c0_78 = arith.constant 0 : index
    %237 = vector.load %arg12[%c5, %c0_77, %c0_78] : memref<8x16x12xf32, #tpu.memory_space<vmem>>, vector<1x16x12xf32>
    %238 = vector.shape_cast %237 : vector<1x16x12xf32> to vector<16x12xf32>
    %239 = vector.shape_cast %236 : vector<16x12xf32> to vector<1x16x12xf32>
    tpu.vector_store %arg12[%c5, %c0_77, %c0_78], %239 {strides = array<i32>} : memref<8x16x12xf32, #tpu.memory_space<vmem>>, vector<1x16x12xf32>,
    %240 = vector.extract_strided_slice %207 {offsets = [0, 4], sizes = [16, 1], strides = [1, 1]} : vector<16x8xf32> to vector<16x1xf32>
    %241 = vector.extract_strided_slice %6 {offsets = [0, 0], sizes = [1, 12], strides = [1, 1]} : vector<2x12xf32> to vector<1x12xf32>
    %242 = vector.broadcast %240 : vector<16x1xf32> to vector<16x12xf32>
    %243 = vector.broadcast %241 : vector<1x12xf32> to vector<16x12xf32>
    %244 = arith.mulf %242, %243 : vector<16x12xf32>
    %245 = vector.broadcast %7 : vector<1x12xf32> to vector<16x12xf32>
    %246 = arith.addf %244, %245 : vector<16x12xf32>
    %247 = vector.extract_strided_slice %207 {offsets = [0, 5], sizes = [16, 1], strides = [1, 1]} : vector<16x8xf32> to vector<16x1xf32>
    %248 = vector.extract_strided_slice %6 {offsets = [1, 0], sizes = [1, 12], strides = [1, 1]} : vector<2x12xf32> to vector<1x12xf32>
    %249 = vector.broadcast %247 : vector<16x1xf32> to vector<16x12xf32>
    %250 = vector.broadcast %248 : vector<1x12xf32> to vector<16x12xf32>
    %251 = arith.mulf %249, %250 : vector<16x12xf32>
    %252 = arith.addf %246, %251 : vector<16x12xf32>
    %c6 = arith.constant 6 : index
    %c0_79 = arith.constant 0 : index
    %c0_80 = arith.constant 0 : index
    %253 = vector.load %arg12[%c6, %c0_79, %c0_80] : memref<8x16x12xf32, #tpu.memory_space<vmem>>, vector<1x16x12xf32>
    %254 = vector.shape_cast %253 : vector<1x16x12xf32> to vector<16x12xf32>
    %255 = vector.shape_cast %252 : vector<16x12xf32> to vector<1x16x12xf32>
    tpu.vector_store %arg12[%c6, %c0_79, %c0_80], %255 {strides = array<i32>} : memref<8x16x12xf32, #tpu.memory_space<vmem>>, vector<1x16x12xf32>,
    %256 = vector.extract_strided_slice %207 {offsets = [0, 6], sizes = [16, 1], strides = [1, 1]} : vector<16x8xf32> to vector<16x1xf32>
    %257 = vector.extract_strided_slice %6 {offsets = [0, 0], sizes = [1, 12], strides = [1, 1]} : vector<2x12xf32> to vector<1x12xf32>
    %258 = vector.broadcast %256 : vector<16x1xf32> to vector<16x12xf32>
    %259 = vector.broadcast %257 : vector<1x12xf32> to vector<16x12xf32>
    %260 = arith.mulf %258, %259 : vector<16x12xf32>
    %261 = vector.broadcast %7 : vector<1x12xf32> to vector<16x12xf32>
    %262 = arith.addf %260, %261 : vector<16x12xf32>
    %263 = vector.extract_strided_slice %207 {offsets = [0, 7], sizes = [16, 1], strides = [1, 1]} : vector<16x8xf32> to vector<16x1xf32>
    %264 = vector.extract_strided_slice %6 {offsets = [1, 0], sizes = [1, 12], strides = [1, 1]} : vector<2x12xf32> to vector<1x12xf32>
    %265 = vector.broadcast %263 : vector<16x1xf32> to vector<16x12xf32>
    %266 = vector.broadcast %264 : vector<1x12xf32> to vector<16x12xf32>
    %267 = arith.mulf %265, %266 : vector<16x12xf32>
    %268 = arith.addf %262, %267 : vector<16x12xf32>
    %c7 = arith.constant 7 : index
    %c0_81 = arith.constant 0 : index
    %c0_82 = arith.constant 0 : index
    %269 = vector.load %arg12[%c7, %c0_81, %c0_82] : memref<8x16x12xf32, #tpu.memory_space<vmem>>, vector<1x16x12xf32>
    %270 = vector.shape_cast %269 : vector<1x16x12xf32> to vector<16x12xf32>
    %271 = vector.shape_cast %268 : vector<16x12xf32> to vector<1x16x12xf32>
    tpu.vector_store %arg12[%c7, %c0_81, %c0_82], %271 {strides = array<i32>} : memref<8x16x12xf32, #tpu.memory_space<vmem>>, vector<1x16x12xf32>,
    return
  }
}

</mosaic_0001>

<llo_original>
// kernel: custom-call.2
$region0: #{custom-call.2}
  %s0 = inlined_call_operand.vmem [shape: f32[2,8,8], index: 0, kind: input, shape index: {}]
  %s1 = inlined_call_operand.vmem [shape: f32[2,8,8], index: 1, kind: input, shape index: {}]
  %s2 = inlined_call_operand.vmem [shape: f32[2,8,8], index: 2, kind: input, shape index: {}]
  %s3 = inlined_call_operand.vmem [shape: f32[2,8,8], index: 3, kind: input, shape index: {}]
  %s4 = inlined_call_operand.vmem [shape: f32[2,8], index: 4, kind: output, shape index: {0}]
  %s5 = inlined_call_operand.vmem [shape: f32[2,8], index: 5, kind: output, shape index: {1}]
  %s6 = inlined_call_operand.vmem [shape: f32[2,8,8], index: 6, kind: output, shape index: {2}]
  %s7 = inlined_call_operand.vmem [shape: f32[2,8,8], index: 7, kind: output, shape index: {3}]
  %s8 = inlined_call_operand.vmem [shape: f32[2,8,8], index: 8, kind: output, shape index: {4}]
  %s9 = inlined_call_operand.vmem [shape: f32[2,8,8], index: 9, kind: output, shape index: {5}]
  %10 = xla_tuple %s4, %s5, %s6, %s7, %s8, %s9
  $region1: #{custom-call.2} parent=0
    #allocation0 [shape = 'u8[8192]{0}', space=vmem, size = 0x2000, scoped, tag = 'operand span for operand 0']
    #allocation1 [shape = 'u8[8192]{0}', space=vmem, size = 0x2000, scoped, tag = 'operand span for operand 1']
    #allocation2 [shape = 'u8[8192]{0}', space=vmem, size = 0x2000, scoped, tag = 'operand span for operand 2']
    #allocation3 [shape = 'u8[8192]{0}', space=vmem, size = 0x2000, scoped, tag = 'operand span for operand 3']
    #allocation4 [shape = 'u8[4096]{0}', space=vmem, size = 0x1000, scoped, tag = 'operand span for operand 4']
    #allocation5 [shape = 'u8[2048]{0}', space=vmem, size = 0x800, scoped, tag = 'packed  for operand 4']
    #allocation6 [shape = 'u8[4096]{0}', space=vmem, size = 0x1000, scoped, tag = 'operand span for operand 5']
    #allocation7 [shape = 'u8[2048]{0}', space=vmem, size = 0x800, scoped, tag = 'packed  for operand 5']
    #allocation8 [shape = 'u8[8192]{0}', space=vmem, size = 0x2000, scoped, tag = 'operand span for operand 6']
    #allocation9 [shape = 'u8[8192]{0}', space=vmem, size = 0x2000, scoped, tag = 'operand span for operand 7']
    #allocation10 [shape = 'u8[8192]{0}', space=vmem, size = 0x2000, scoped, tag = 'operand span for operand 8']
    #allocation11 [shape = 'u8[8192]{0}', space=vmem, size = 0x2000, scoped, tag = 'operand span for operand 9']
    loop: start=0, step=1, limit=4
    $region2: #{custom-call.2} parent=1 // loop_pre_header
      _
    $region3: #{custom-call.2} parent=1 // loop_header
      %s12 = sphi 0, %s16
      %p13 = scmp.ge.s32.totalorder %s12, 4
      %s24 = sphi 0, %s26
      %s27 = sphi 0, %s24
      %s28 = sphi 0, %s27
      %s44 = sphi 0, %s28
      %s52 = sphi 0, %s54
      %s55 = sphi 0, %s52
      %s56 = sphi 0, %s55
      %s72 = sphi 0, %s56
    $region4: #{custom-call.2} parent=1 // loop_header_branch
      %15 = sbr.rel (%p13) target = $region8
    $region5: #{custom-call.2} parent=1 // loop_body
      %s17 = ssub.s32 %s12, 1
      %s18 = ssub.s32 %s12, 2
      %s19 = sadd.s32 %s12, 1
      %s20 = sshrl.u32 %s12, 3
      %s21 = sshrl.u32 %s19, 3
      %s22 = ssub.s32 %s20, %s21
      %p23 = scmp.eq.s32.totalorder %s22, 0
      %s25 = sadd.s32 %s24, 1
      %s26 = scalar_select %p23, %s24, %s25
      %p29 = pneg %p23
      %p30 = scmp.eq.s32.totalorder %s12, 1
      %p31 = por %p29, %p30
      %p32 = scmp.ne.s32.totalorder %s24, %s27
      %p33 = scmp.eq.s32.totalorder %s12, 0
      %p34 = por %p32, %p33
      %p35 = scmp.ne.s32.totalorder %s24, %s27
      %p36 = scmp.eq.s32.totalorder %s17, 1
      %p37 = por %p35, %p36
      %p38 = scmp.ne.s32.totalorder %s27, %s28
      %p39 = scmp.eq.s32.totalorder %s17, 0
      %p40 = por %p38, %p39
      %p41 = scmp.ne.s32.totalorder %s27, %s28
      %p42 = scmp.eq.s32.totalorder %s18, 1
      %p43 = por %p41, %p42
      %p45 = scmp.ne.s32.totalorder %s28, %s44
      %p46 = scmp.eq.s32.totalorder %s18, 0
      %p47 = por %p45, %p46
      %s48 = sshrl.u32 %s12, 3
      %s49 = sshrl.u32 %s19, 3
      %s50 = ssub.s32 %s48, %s49
      %p51 = scmp.eq.s32.totalorder %s50, 0
      %s53 = sadd.s32 %s52, 1
      %s54 = scalar_select %p51, %s52, %s53
      %p57 = pneg %p51
      %p58 = scmp.eq.s32.totalorder %s12, 1
      %p59 = por %p57, %p58
      %p60 = scmp.ne.s32.totalorder %s52, %s55
      %p61 = scmp.eq.s32.totalorder %s12, 0
      %p62 = por %p60, %p61
      %p63 = scmp.ne.s32.totalorder %s52, %s55
      %p64 = scmp.eq.s32.totalorder %s17, 1
      %p65 = por %p63, %p64
      %p66 = scmp.ne.s32.totalorder %s55, %s56
      %p67 = scmp.eq.s32.totalorder %s17, 0
      %p68 = por %p66, %p67
      %p69 = scmp.ne.s32.totalorder %s55, %s56
      %p70 = scmp.eq.s32.totalorder %s18, 1
      %p71 = por %p69, %p70
      %p73 = scmp.ne.s32.totalorder %s56, %s72
      %p74 = scmp.eq.s32.totalorder %s18, 0
      %p75 = por %p73, %p74
      %p76 = scmp.le.s32.totalorder 1, %s12
      %p77 = scmp.lt.s32.totalorder %s12, 3
      %p78 = pnand %p76, %p77
      %p79 = pneg %p78
      // Predicated region
      $region9: #{custom-call.2} parent=5 // pred_check
        _
      $region10: #{custom-call.2} parent=5 // pred_check_branch
        %81 = sbr.rel (%p78) target = $region12
      $region11: #{custom-call.2} parent=5 // pred_region
        %s82 = ssub.s32 %s12, 1
      $region12: #{custom-call.2} parent=5 // pred_fallthru
        _
      %p83 = scmp.lt.s32.totalorder %s12, 2
      // Predicated region
      $region13: #{custom-call.2} parent=5 // pred_check
        %p84 = pneg %p83
      $region14: #{custom-call.2} parent=5 // pred_check_branch
        %86 = sbr.rel (%p84) target = $region16
      $region15: #{custom-call.2} parent=5 // pred_region
        %s87 = sand.u32 %s12, 1
        %s88 = sand.u32 %s12, 1
        %s89 = smul.addr %s88, 8
        %s90 = scalar_lea.vmem [#allocation0], %s89
        %s91 = smul.addr %s12, 8
        %s92 = scalar_lea.vmem %s0, %s91
        // Predicated region
        $region17: #{custom-call.2} parent=15 // pred_check
          _
        $region18: #{custom-call.2} parent=15 // pred_check_branch
          %94 = sbr.rel (0) target = $region20
        $region19: #{custom-call.2} parent=15 // pred_region
          // Predicated region
          $region21: #{custom-call.2} parent=19 // pred_check
            _
          $region22: #{custom-call.2} parent=19 // pred_check_branch
            %96 = sbr.rel (0) target = $region24
          $region23: #{custom-call.2} parent=19 // pred_region
            // Predicated region
            $region36: #{custom-call.2} parent=23 // pred_check
              _
            $region37: #{custom-call.2} parent=23 // pred_check_branch
              %111 = sbr.rel (0) target = $region39
            $region38: #{custom-call.2} parent=23 // pred_region
              loop: start=0, step=1, limit=1
              $region40: #{custom-call.2} parent=38 // loop_pre_header
                _
              $region41: #{custom-call.2} parent=38 // loop_header
                %s113 = sphi 0, %s117
                %p114 = scmp.ge.s32.totalorder %s113, 1
                %s118 = sphi %s92, %s92
                %s119 = sphi %s90, %s90
              $region42: #{custom-call.2} parent=38 // loop_header_branch
                %116 = sbr.rel (%p114) target = $region46
              $region43: #{custom-call.2} parent=38 // loop_body
                %v120 = vld [vmem:[%s118] sm:$0xff]
                %121 = vst [vmem:[%s119] sm:$0xff] %v120
              $region44: #{custom-call.2} parent=38 // loop_footer
                %s117 = sadd.s32 1, %s113
              $region45: #{custom-call.2} parent=38 // loop_footer_branch
                %112 = sbr.rel target = $region41
              $region46: #{custom-call.2} parent=38 // loop_exit
                _
            $region39: #{custom-call.2} parent=23 // pred_fallthru
              _
            // Predicated region
            $region47: #{custom-call.2} parent=23 // pred_check
              _
            $region48: #{custom-call.2} parent=23 // pred_check_branch
              %123 = sbr.rel target = $region50
            $region49: #{custom-call.2} parent=23 // pred_region
              _
            $region50: #{custom-call.2} parent=23 // pred_fallthru
              _
          $region24: #{custom-call.2} parent=19 // pred_fallthru
            _
          // Predicated region
          $region25: #{custom-call.2} parent=19 // pred_check
            _
          $region26: #{custom-call.2} parent=19 // pred_check_branch
            %98 = sbr.rel target = $region28
          $region27: #{custom-call.2} parent=19 // pred_region
            loop: start=0, step=1, limit=1
            $region29: #{custom-call.2} parent=27 // loop_pre_header
              _
            $region30: #{custom-call.2} parent=27 // loop_header
              %s101 = sphi 0, %s105
              %p102 = scmp.ge.s32.totalorder %s101, 1
              %s106 = sphi %s92, %s92
              %s107 = sphi %s90, %s90
            $region31: #{custom-call.2} parent=27 // loop_header_branch
              %104 = sbr.rel (%p102) target = $region35
            $region32: #{custom-call.2} parent=27 // loop_body
              %v108 = vld [vmem:[%s106] sm:$0xff]
              %109 = vst [vmem:[%s107] sm:$0xff] %v108
            $region33: #{custom-call.2} parent=27 // loop_footer
              %s105 = sadd.s32 1, %s101
            $region34: #{custom-call.2} parent=27 // loop_footer_branch
              %100 = sbr.rel target = $region30
            $region35: #{custom-call.2} parent=27 // loop_exit
              _
          $region28: #{custom-call.2} parent=19 // pred_fallthru
            _
        $region20: #{custom-call.2} parent=15 // pred_fallthru
          _
        %124 = vnop
        %s125 = sand.u32 %s12, 1
        %s126 = sand.u32 %s12, 1
        %s127 = smul.addr %s126, 8
        %s128 = scalar_lea.vmem [#allocation1], %s127
        %s129 = smul.addr %s12, 8
        %s130 = scalar_lea.vmem %s1, %s129
        // Predicated region
        $region51: #{custom-call.2} parent=15 // pred_check
          _
        $region52: #{custom-call.2} parent=15 // pred_check_branch
          %132 = sbr.rel (0) target = $region54
        $region53: #{custom-call.2} parent=15 // pred_region
          // Predicated region
          $region55: #{custom-call.2} parent=53 // pred_check
            _
          $region56: #{custom-call.2} parent=53 // pred_check_branch
            %134 = sbr.rel (0) target = $region58
          $region57: #{custom-call.2} parent=53 // pred_region
            // Predicated region
            $region70: #{custom-call.2} parent=57 // pred_check
              _
            $region71: #{custom-call.2} parent=57 // pred_check_branch
              %149 = sbr.rel (0) target = $region73
            $region72: #{custom-call.2} parent=57 // pred_region
              loop: start=0, step=1, limit=1
              $region74: #{custom-call.2} parent=72 // loop_pre_header
                _
              $region75: #{custom-call.2} parent=72 // loop_header
                %s151 = sphi 0, %s155
                %p152 = scmp.ge.s32.totalorder %s151, 1
                %s156 = sphi %s130, %s130
                %s157 = sphi %s128, %s128
              $region76: #{custom-call.2} parent=72 // loop_header_branch
                %154 = sbr.rel (%p152) target = $region80
              $region77: #{custom-call.2} parent=72 // loop_body
                %v158 = vld [vmem:[%s156] sm:$0xff]
                %159 = vst [vmem:[%s157] sm:$0xff] %v158
              $region78: #{custom-call.2} parent=72 // loop_footer
                %s155 = sadd.s32 1, %s151
              $region79: #{custom-call.2} parent=72 // loop_footer_branch
                %150 = sbr.rel target = $region75
              $region80: #{custom-call.2} parent=72 // loop_exit
                _
            $region73: #{custom-call.2} parent=57 // pred_fallthru
              _
            // Predicated region
            $region81: #{custom-call.2} parent=57 // pred_check
              _
            $region82: #{custom-call.2} parent=57 // pred_check_branch
              %161 = sbr.rel target = $region84
            $region83: #{custom-call.2} parent=57 // pred_region
              _
            $region84: #{custom-call.2} parent=57 // pred_fallthru
              _
          $region58: #{custom-call.2} parent=53 // pred_fallthru
            _
          // Predicated region
          $region59: #{custom-call.2} parent=53 // pred_check
            _
          $region60: #{custom-call.2} parent=53 // pred_check_branch
            %136 = sbr.rel target = $region62
          $region61: #{custom-call.2} parent=53 // pred_region
            loop: start=0, step=1, limit=1
            $region63: #{custom-call.2} parent=61 // loop_pre_header
              _
            $region64: #{custom-call.2} parent=61 // loop_header
              %s139 = sphi 0, %s143
              %p140 = scmp.ge.s32.totalorder %s139, 1
              %s144 = sphi %s130, %s130
              %s145 = sphi %s128, %s128
            $region65: #{custom-call.2} parent=61 // loop_header_branch
              %142 = sbr.rel (%p140) target = $region69
            $region66: #{custom-call.2} parent=61 // loop_body
              %v146 = vld [vmem:[%s144] sm:$0xff]
              %147 = vst [vmem:[%s145] sm:$0xff] %v146
            $region67: #{custom-call.2} parent=61 // loop_footer
              %s143 = sadd.s32 1, %s139
            $region68: #{custom-call.2} parent=61 // loop_footer_branch
              %138 = sbr.rel target = $region64
            $region69: #{custom-call.2} parent=61 // loop_exit
              _
          $region62: #{custom-call.2} parent=53 // pred_fallthru
            _
        $region54: #{custom-call.2} parent=15 // pred_fallthru
          _
        %162 = vnop
        %s163 = sand.u32 %s12, 1
        %s164 = sand.u32 %s12, 1
        %s165 = smul.addr %s164, 8
        %s166 = scalar_lea.vmem [#allocation2], %s165
        %s167 = smul.addr %s12, 8
        %s168 = scalar_lea.vmem %s2, %s167
        // Predicated region
        $region85: #{custom-call.2} parent=15 // pred_check
          _
        $region86: #{custom-call.2} parent=15 // pred_check_branch
          %170 = sbr.rel (0) target = $region88
        $region87: #{custom-call.2} parent=15 // pred_region
          // Predicated region
          $region89: #{custom-call.2} parent=87 // pred_check
            _
          $region90: #{custom-call.2} parent=87 // pred_check_branch
            %172 = sbr.rel (0) target = $region92
          $region91: #{custom-call.2} parent=87 // pred_region
            // Predicated region
            $region104: #{custom-call.2} parent=91 // pred_check
              _
            $region105: #{custom-call.2} parent=91 // pred_check_branch
              %187 = sbr.rel (0) target = $region107
            $region106: #{custom-call.2} parent=91 // pred_region
              loop: start=0, step=1, limit=1
              $region108: #{custom-call.2} parent=106 // loop_pre_header
                _
              $region109: #{custom-call.2} parent=106 // loop_header
                %s189 = sphi 0, %s193
                %p190 = scmp.ge.s32.totalorder %s189, 1
                %s194 = sphi %s168, %s168
                %s195 = sphi %s166, %s166
              $region110: #{custom-call.2} parent=106 // loop_header_branch
                %192 = sbr.rel (%p190) target = $region114
              $region111: #{custom-call.2} parent=106 // loop_body
                %v196 = vld [vmem:[%s194] sm:$0xff]
                %197 = vst [vmem:[%s195] sm:$0xff] %v196
              $region112: #{custom-call.2} parent=106 // loop_footer
                %s193 = sadd.s32 1, %s189
              $region113: #{custom-call.2} parent=106 // loop_footer_branch
                %188 = sbr.rel target = $region109
              $region114: #{custom-call.2} parent=106 // loop_exit
                _
            $region107: #{custom-call.2} parent=91 // pred_fallthru
              _
            // Predicated region
            $region115: #{custom-call.2} parent=91 // pred_check
              _
            $region116: #{custom-call.2} parent=91 // pred_check_branch
              %199 = sbr.rel target = $region118
            $region117: #{custom-call.2} parent=91 // pred_region
              _
            $region118: #{custom-call.2} parent=91 // pred_fallthru
              _
          $region92: #{custom-call.2} parent=87 // pred_fallthru
            _
          // Predicated region
          $region93: #{custom-call.2} parent=87 // pred_check
            _
          $region94: #{custom-call.2} parent=87 // pred_check_branch
            %174 = sbr.rel target = $region96
          $region95: #{custom-call.2} parent=87 // pred_region
            loop: start=0, step=1, limit=1
            $region97: #{custom-call.2} parent=95 // loop_pre_header
              _
            $region98: #{custom-call.2} parent=95 // loop_header
              %s177 = sphi 0, %s181
              %p178 = scmp.ge.s32.totalorder %s177, 1
              %s182 = sphi %s168, %s168
              %s183 = sphi %s166, %s166
            $region99: #{custom-call.2} parent=95 // loop_header_branch
              %180 = sbr.rel (%p178) target = $region103
            $region100: #{custom-call.2} parent=95 // loop_body
              %v184 = vld [vmem:[%s182] sm:$0xff]
              %185 = vst [vmem:[%s183] sm:$0xff] %v184
            $region101: #{custom-call.2} parent=95 // loop_footer
              %s181 = sadd.s32 1, %s177
            $region102: #{custom-call.2} parent=95 // loop_footer_branch
              %176 = sbr.rel target = $region98
            $region103: #{custom-call.2} parent=95 // loop_exit
              _
          $region96: #{custom-call.2} parent=87 // pred_fallthru
            _
        $region88: #{custom-call.2} parent=15 // pred_fallthru
          _
        %200 = vnop
        %s201 = sand.u32 %s12, 1
        %s202 = sand.u32 %s12, 1
        %s203 = smul.addr %s202, 8
        %s204 = scalar_lea.vmem [#allocation3], %s203
        %s205 = smul.addr %s12, 8
        %s206 = scalar_lea.vmem %s3, %s205
        // Predicated region
        $region119: #{custom-call.2} parent=15 // pred_check
          _
        $region120: #{custom-call.2} parent=15 // pred_check_branch
          %208 = sbr.rel (0) target = $region122
        $region121: #{custom-call.2} parent=15 // pred_region
          // Predicated region
          $region123: #{custom-call.2} parent=121 // pred_check
            _
          $region124: #{custom-call.2} parent=121 // pred_check_branch
            %210 = sbr.rel (0) target = $region126
          $region125: #{custom-call.2} parent=121 // pred_region
            // Predicated region
            $region138: #{custom-call.2} parent=125 // pred_check
              _
            $region139: #{custom-call.2} parent=125 // pred_check_branch
              %225 = sbr.rel (0) target = $region141
            $region140: #{custom-call.2} parent=125 // pred_region
              loop: start=0, step=1, limit=1
              $region142: #{custom-call.2} parent=140 // loop_pre_header
                _
              $region143: #{custom-call.2} parent=140 // loop_header
                %s227 = sphi 0, %s231
                %p228 = scmp.ge.s32.totalorder %s227, 1
                %s232 = sphi %s206, %s206
                %s233 = sphi %s204, %s204
              $region144: #{custom-call.2} parent=140 // loop_header_branch
                %230 = sbr.rel (%p228) target = $region148
              $region145: #{custom-call.2} parent=140 // loop_body
                %v234 = vld [vmem:[%s232] sm:$0xff]
                %235 = vst [vmem:[%s233] sm:$0xff] %v234
              $region146: #{custom-call.2} parent=140 // loop_footer
                %s231 = sadd.s32 1, %s227
              $region147: #{custom-call.2} parent=140 // loop_footer_branch
                %226 = sbr.rel target = $region143
              $region148: #{custom-call.2} parent=140 // loop_exit
                _
            $region141: #{custom-call.2} parent=125 // pred_fallthru
              _
            // Predicated region
            $region149: #{custom-call.2} parent=125 // pred_check
              _
            $region150: #{custom-call.2} parent=125 // pred_check_branch
              %237 = sbr.rel target = $region152
            $region151: #{custom-call.2} parent=125 // pred_region
              _
            $region152: #{custom-call.2} parent=125 // pred_fallthru
              _
          $region126: #{custom-call.2} parent=121 // pred_fallthru
            _
          // Predicated region
          $region127: #{custom-call.2} parent=121 // pred_check
            _
          $region128: #{custom-call.2} parent=121 // pred_check_branch
            %212 = sbr.rel target = $region130
          $region129: #{custom-call.2} parent=121 // pred_region
            loop: start=0, step=1, limit=1
            $region131: #{custom-call.2} parent=129 // loop_pre_header
              _
            $region132: #{custom-call.2} parent=129 // loop_header
              %s215 = sphi 0, %s219
              %p216 = scmp.ge.s32.totalorder %s215, 1
              %s220 = sphi %s206, %s206
              %s221 = sphi %s204, %s204
            $region133: #{custom-call.2} parent=129 // loop_header_branch
              %218 = sbr.rel (%p216) target = $region137
            $region134: #{custom-call.2} parent=129 // loop_body
              %v222 = vld [vmem:[%s220] sm:$0xff]
              %223 = vst [vmem:[%s221] sm:$0xff] %v222
            $region135: #{custom-call.2} parent=129 // loop_footer
              %s219 = sadd.s32 1, %s215
            $region136: #{custom-call.2} parent=129 // loop_footer_branch
              %214 = sbr.rel target = $region132
            $region137: #{custom-call.2} parent=129 // loop_exit
              _
          $region130: #{custom-call.2} parent=121 // pred_fallthru
            _
        $region122: #{custom-call.2} parent=15 // pred_fallthru
          _
        %238 = vnop
      $region16: #{custom-call.2} parent=5 // pred_fallthru
        _
      %p239 = scmp.le.s32.totalorder 1, %s12
      %p240 = scmp.lt.s32.totalorder %s12, 3
      %p241 = pnand %p239, %p240
      %p242 = pneg %p241
      // Predicated region
      $region153: #{custom-call.2} parent=5 // pred_check
        _
      $region154: #{custom-call.2} parent=5 // pred_check_branch
        %244 = sbr.rel (%p241) target = $region156
      $region155: #{custom-call.2} parent=5 // pred_region
        #allocation12 [shape = 'f32[8,8]{1,0}', space=vmem, size = 0x1000, scoped, tag = 'a top-left matrix']
        #allocation13 [shape = 'f32[8,8]{1,0}', space=vmem, size = 0x1000, scoped, tag = 'a top-right matrix']
        #allocation14 [shape = 'f32[8,8]{1,0}', space=vmem, size = 0x1000, scoped, tag = 'a bottom-left matrix']
        #allocation15 [shape = 'f32[8,8]{1,0}', space=vmem, size = 0x1000, scoped, tag = 'a bottom-right matrix']
        %s245 = ssub.s32 %s12, 1
        %s246 = sand.u32 %s17, 1
        %s247 = sand.u32 %s17, 1
        %s248 = smul.addr %s247, 8
        %s249 = scalar_lea.vmem [#allocation0], %s248
        %s250 = sand.u32 %s17, 1
        %s251 = sand.u32 %s17, 1
        %s252 = smul.addr %s251, 8
        %s253 = scalar_lea.vmem [#allocation1], %s252
        %s254 = sand.u32 %s17, 1
        %s255 = sand.u32 %s17, 1
        %s256 = smul.addr %s255, 8
        %s257 = scalar_lea.vmem [#allocation2], %s256
        %s258 = sand.u32 %s17, 1
        %s259 = sand.u32 %s17, 1
        %s260 = smul.addr %s259, 8
        %s261 = scalar_lea.vmem [#allocation3], %s260
        %s262 = sand.u32 %s17, 1
        %s263 = sand.u32 %s17, 1
        %s264 = smul.addr %s263, 8
        %s265 = scalar_lea.vmem [#allocation0], %s264
        %s266 = sand.u32 %s17, 1
        %s267 = sand.u32 %s17, 1
        %s268 = smul.addr %s267, 8
        %s269 = scalar_lea.vmem [#allocation1], %s268
        %s270 = sand.u32 %s17, 1
        %s271 = sand.u32 %s17, 1
        %s272 = smul.addr %s271, 8
        %s273 = scalar_lea.vmem [#allocation2], %s272
        %s274 = sand.u32 %s17, 1
        %s275 = sand.u32 %s17, 1
        %s276 = smul.addr %s275, 8
        %s277 = scalar_lea.vmem [#allocation3], %s276
        %p278 = pneg %p40
        %p279 = pneg %p37
        %s280 = sand.u32 %s27, 1
        %s281 = sand.u32 %s27, 1
        %s282 = smul.addr %s281, 2
        %s283 = scalar_lea.vmem [#allocation5], %s282
        %p284 = pneg %p68
        %p285 = pneg %p65
        %s286 = sand.u32 %s55, 1
        %s287 = sand.u32 %s55, 1
        %s288 = smul.addr %s287, 2
        %s289 = scalar_lea.vmem [#allocation7], %s288
        %s290 = sand.u32 %s17, 1
        %s291 = sand.u32 %s17, 1
        %s292 = smul.addr %s291, 8
        %s293 = scalar_lea.vmem [#allocation8], %s292
        %s294 = sand.u32 %s17, 1
        %s295 = sand.u32 %s17, 1
        %s296 = smul.addr %s295, 8
        %s297 = scalar_lea.vmem [#allocation9], %s296
        %s298 = sand.u32 %s17, 1
        %s299 = sand.u32 %s17, 1
        %s300 = smul.addr %s299, 8
        %s301 = scalar_lea.vmem [#allocation10], %s300
        %s302 = sand.u32 %s17, 1
        %s303 = sand.u32 %s17, 1
        %s304 = smul.addr %s303, 8
        %s305 = scalar_lea.vmem [#allocation11], %s304
        %s306 = sshrl.u32 %s17, 3
        %s307 = sshrl.u32 %s17, 3
        %s308 = smov [#allocation12]
        %v309 = vld [vmem:[%s249] sm:$0xff]
        %310 = vst [vmem:[%s308] sm:$0xff] %v309
        %s311 = smov [#allocation13]
        %v312 = vld [vmem:[%s253] sm:$0xff]
        %313 = vst [vmem:[%s311] sm:$0xff] %v312
        %s314 = smov [#allocation14]
        %v315 = vld [vmem:[%s257] sm:$0xff]
        %316 = vst [vmem:[%s314] sm:$0xff] %v315
        %s317 = smov [#allocation15]
        %v318 = vld [vmem:[%s261] sm:$0xff]
        %319 = vst [vmem:[%s317] sm:$0xff] %v318
        %320 = vst [vmem:[%s293] sm:$0xff] 0.0
        %321 = vst [vmem:[%s297] sm:$0xff] 0.0
        %322 = vst [vmem:[%s301] sm:$0xff] 0.0
        %323 = vst [vmem:[%s305] sm:$0xff] 0.0
        %s324 = smov %s293
        %v325 = vlaneseq
        %v326 = vand.u32 %v325, 127
        %v327 = vmov %v326
        %v328 = vlaneseq
        %v329 = vshrl.u32 %v328, 7
        %v330 = vmov %v329
        %v331 = vld [vmem:[%s324] sm:$0xff]
        %vm334 = vcmp.eq.s32.totalorder %v330, %v327
        %v335 = vsel %vm334, 1.0, %v331
        %336 = vst [vmem:[%s324] sm:$0xff] %v335
        %s337 = smov %s305
        %v338 = vlaneseq
        %v339 = vand.u32 %v338, 127
        %v340 = vmov %v339
        %v341 = vlaneseq
        %v342 = vshrl.u32 %v341, 7
        %v343 = vmov %v342
        %v344 = vld [vmem:[%s337] sm:$0xff]
        %vm347 = vcmp.eq.s32.totalorder %v343, %v340
        %v348 = vsel %vm347, 1.0, %v344
        %349 = vst [vmem:[%s337] sm:$0xff] %v348
        // While loop
        $region157: #{custom-call.2} parent=155 // loop_pre_header
          _
        $region158: #{custom-call.2} parent=155 // loop_header
          %s351 = sphi 0, %s893
          %v352 = vlaneseq
          %v353 = vand.u32 %v352, 127
          %v354 = vmov %v353
          %v355 = vlaneseq
          %v356 = vshrl.u32 %v355, 7
          %v357 = vmov %v356
          %s358 = smov [#allocation12]
          %v359 = vlaneseq
          %v360 = vand.u32 %v359, 127
          %vm361 = vcmp.ge.s32.totalorder %v360, 0
          %vm362 = vcmp.lt.s32.totalorder %v360, 8
          %vm363 = vmand %vm361, %vm362
          %v364 = vld [vmem:[%s358] sm:$0xff]
          %v365 = vsel %vm363, %v364, 0.0
          %v366 = vmul.f32 %v365, %v365
          %vm369 = vcmp.eq.s32.totalorder %v357, %v354
          %v370 = vsel %vm369, 0.0, %v366
          %v371 = vlaneseq
          %v372 = vand.u32 %v371, 127
          %v373 = vmov %v372
          %v374 = vlaneseq
          %v375 = vshrl.u32 %v374, 7
          %v376 = vmov %v375
          %s377 = smov [#allocation13]
          %v378 = vlaneseq
          %v379 = vand.u32 %v378, 127
          %vm380 = vcmp.ge.s32.totalorder %v379, 0
          %vm381 = vcmp.lt.s32.totalorder %v379, 8
          %vm382 = vmand %vm380, %vm381
          %v383 = vld [vmem:[%s377] sm:$0xff]
          %v384 = vsel %vm382, %v383, 0.0
          %v385 = vmul.f32 %v384, %v384
          %v386 = vadd.f32 %v370, %v385
          %v387 = vadd.f32 %v366, %v385
          %v388 = vlaneseq
          %v389 = vand.u32 %v388, 127
          %v390 = vmov %v389
          %v391 = vlaneseq
          %v392 = vshrl.u32 %v391, 7
          %v393 = vmov %v392
          %s394 = smov [#allocation14]
          %v395 = vlaneseq
          %v396 = vand.u32 %v395, 127
          %vm397 = vcmp.ge.s32.totalorder %v396, 0
          %vm398 = vcmp.lt.s32.totalorder %v396, 8
          %vm399 = vmand %vm397, %vm398
          %v400 = vld [vmem:[%s394] sm:$0xff]
          %v401 = vsel %vm399, %v400, 0.0
          %v402 = vmul.f32 %v401, %v401
          %v403 = vadd.f32 %v386, %v402
          %v404 = vadd.f32 %v387, %v402
          %v405 = vlaneseq
          %v406 = vand.u32 %v405, 127
          %v407 = vmov %v406
          %v408 = vlaneseq
          %v409 = vshrl.u32 %v408, 7
          %v410 = vmov %v409
          %s411 = smov [#allocation15]
          %v412 = vlaneseq
          %v413 = vand.u32 %v412, 127
          %vm414 = vcmp.ge.s32.totalorder %v413, 0
          %vm415 = vcmp.lt.s32.totalorder %v413, 8
          %vm416 = vmand %vm414, %vm415
          %v417 = vld [vmem:[%s411] sm:$0xff]
          %v418 = vsel %vm416, %v417, 0.0
          %v419 = vmul.f32 %v418, %v418
          %vm422 = vcmp.eq.s32.totalorder %v410, %v407
          %v423 = vsel %vm422, 0.0, %v419
          %v424 = vadd.f32 %v403, %v423
          %v425 = vadd.f32 %v404, %v419
          %426 = vadd.xlane.f32.xlu0 %v425
          %v427 = vpop.xlane.xlu0 %426
          %v428 = vrot.slane %v427, 4
          %v429 = vadd.f32 %v427, %v428
          %v430 = vrot.slane %v429, 2
          %v431 = vadd.f32 %v429, %v430
          %v432 = vrot.slane %v431, 1
          %v433 = vadd.f32 %v431, %v432
          %434 = vadd.xlane.f32.xlu0 %v424
          %v435 = vpop.xlane.xlu0 %434
          %v436 = vrot.slane %v435, 4
          %v437 = vadd.f32 %v435, %v436
          %v438 = vrot.slane %v437, 2
          %v439 = vadd.f32 %v437, %v438
          %v440 = vrot.slane %v439, 1
          %v441 = vadd.f32 %v439, %v440
          %s442 = vtos %v441
          %s443 = vtos %v433
          %s444 = smul.f32 1e-10, %s443
          %p445 = scmp.le.f32.partialorder %s442, %s444
          %p446 = scmp.ge.s32.totalorder %s351, 15
          %p447 = por %p445, %p446
        $region159: #{custom-call.2} parent=155 // loop_header_branch
          %895 = sbr.rel (%p447) target = $region163
        $region160: #{custom-call.2} parent=155 // loop_body
          loop: start=0, step=1, limit=15
          $region164: #{custom-call.2} parent=160 // loop_pre_header
            _
          $region165: #{custom-call.2} parent=160 // loop_header
            %s449 = sphi 0, %s453
            %p450 = scmp.ge.s32.totalorder %s449, 15
          $region166: #{custom-call.2} parent=160 // loop_header_branch
            %452 = sbr.rel (%p450) target = $region170
          $region167: #{custom-call.2} parent=160 // loop_body
            #allocation16 [shape = 'f32[1024]{0}', space=vmem, size = 0x1000, scoped, tag = 'a_tl_diag vmem']
            #allocation17 [shape = 'f32[1024]{0}', space=vmem, size = 0x1000, scoped, tag = 'a_tr_diag vmem']
            #allocation18 [shape = 'f32[1024]{0}', space=vmem, size = 0x1000, scoped, tag = 'a_br_diag vmem']
            #allocation19 [shape = 'f32[1024]{0}', space=vmem, size = 0x1000, scoped, tag = 'rt1 vmem']
            #allocation20 [shape = 'f32[1024]{0}', space=vmem, size = 0x1000, scoped, tag = 'rt2 vmem']
            #allocation21 [shape = 'f32[1024]{0}', space=vmem, size = 0x1000, scoped, tag = 'c vmem']
            #allocation22 [shape = 'f32[1024]{0}', space=vmem, size = 0x1000, scoped, tag = 's vmem']
            #allocation23 [shape = 'f32[4096]{0}', space=vmem, size = 0x4000, scoped, tag = 'c broadcast']
            #allocation24 [shape = 'f32[4096]{0}', space=vmem, size = 0x4000, scoped, tag = 's broadcast']
            %s454 = smov [#allocation12]
            %s455 = smov [#allocation16]
            %v456 = vlaneseq
            %v457 = vand.u32 %v456, 127
            %v458 = vmov %v457
            %v459 = vlaneseq
            %v460 = vshrl.u32 %v459, 7
            %v461 = vmov %v460
            %v462 = vld [vmem:[%s454] sm:$0xff]
            %vm465 = vcmp.eq.s32.totalorder %v461, %v458
            %v466 = vsel %vm465, %v462, 0.0
            %v467 = vrot.slane %v466, 4
            %v468 = vadd.f32 %v466, %v467
            %v469 = vrot.slane %v468, 2
            %v470 = vadd.f32 %v468, %v469
            %v471 = vrot.slane %v470, 1
            %v472 = vadd.f32 %v470, %v471
            %473 = vst [vmem:[%s455] sm:$0x1] %v472
            %s474 = smov [#allocation13]
            %s475 = smov [#allocation17]
            %v476 = vlaneseq
            %v477 = vand.u32 %v476, 127
            %v478 = vmov %v477
            %v479 = vlaneseq
            %v480 = vshrl.u32 %v479, 7
            %v481 = vmov %v480
            %v482 = vld [vmem:[%s474] sm:$0xff]
            %vm485 = vcmp.eq.s32.totalorder %v481, %v478
            %v486 = vsel %vm485, %v482, 0.0
            %v487 = vrot.slane %v486, 4
            %v488 = vadd.f32 %v486, %v487
            %v489 = vrot.slane %v488, 2
            %v490 = vadd.f32 %v488, %v489
            %v491 = vrot.slane %v490, 1
            %v492 = vadd.f32 %v490, %v491
            %493 = vst [vmem:[%s475] sm:$0x1] %v492
            %s494 = smov [#allocation15]
            %s495 = smov [#allocation18]
            %v496 = vlaneseq
            %v497 = vand.u32 %v496, 127
            %v498 = vmov %v497
            %v499 = vlaneseq
            %v500 = vshrl.u32 %v499, 7
            %v501 = vmov %v500
            %v502 = vld [vmem:[%s494] sm:$0xff]
            %vm505 = vcmp.eq.s32.totalorder %v501, %v498
            %v506 = vsel %vm505, %v502, 0.0
            %v507 = vrot.slane %v506, 4
            %v508 = vadd.f32 %v506, %v507
            %v509 = vrot.slane %v508, 2
            %v510 = vadd.f32 %v508, %v509
            %v511 = vrot.slane %v510, 1
            %v512 = vadd.f32 %v510, %v511
            %513 = vst [vmem:[%s495] sm:$0x1] %v512
            %s514 = smov [#allocation21]
            %s515 = smov [#allocation22]
            %s516 = smov [#allocation16]
            %v517 = vld [vmem:[%s516] sm:$0xff]
            %s518 = smov [#allocation17]
            %v519 = vld [vmem:[%s518] sm:$0xff]
            %s520 = smov [#allocation18]
            %v521 = vld [vmem:[%s520] sm:$0xff]
            %v522 = vsub.f32 %v521, %v517
            %v523 = vmul.f32 2.0, %v519
            %v524 = vrcp.pop %v523
            %v525 = vmul.f32 %v522, %v524
            %vm526 = vcmp.ge.f32.partialorder %v525, 0.0
            %v527 = vmul.f32 %v525, %v525
            %v528 = vadd.f32 1.0, %v527
            %v529 = vrsqrt.pop %v528
            %v530 = vmul.f32 %v528, %v529
            %vm531 = vcmp.eq.f32.partialorder %v528, inf
            %v532 = vsel %vm531, %v528, %v530
            %vm533 = vcmp.eq.f32.partialorder %v528, 0.0
            %v534 = vand.u32 %v528, 2147483648
            %v535 = vsel %vm533, %v534, %v532
            %v536 = vxor.u32 %v535, 2147483648
            %v537 = vsel %vm526, %v535, %v536
            %v538 = vadd.f32 %v525, %v537
            %v539 = vrcp.pop %v538
            %v540 = vand.u32 2147483647, %v517
            %v541 = vand.u32 2147483647, %v519
            %v542 = vand.u32 2147483647, %v521
            %v543 = vmin.f32 %v540, %v542
            %v544 = vmul.f32 1.1920929e-08, %v543
            %vm545 = vcmp.le.f32.partialorder %v541, %v544
            %v546 = vsel %vm545, 0.0, %v539
            %v547 = vmul.f32 %v546, %v546
            %v548 = vadd.f32 1.0, %v547
            %v549 = vrsqrt.pop %v548
            %v550 = vmul.f32 %v546, %v549
            %v551 = vmul.f32 %v546, %v519
            %v552 = vsub.f32 %v517, %v551
            %v553 = vmul.f32 %v546, %v519
            %v554 = vadd.f32 %v521, %v553
            %s555 = smov [#allocation19]
            %556 = vst [vmem:[%s555] sm:$0xff] %v552
            %s557 = smov [#allocation20]
            %558 = vst [vmem:[%s557] sm:$0xff] %v554
            %s559 = smov %s514
            %560 = vst [vmem:[%s559] sm:$0xff] %v549
            %s561 = smov %s515
            %562 = vst [vmem:[%s561] sm:$0xff] %v550
            %s563 = smov [#allocation21]
            %v564 = vld [vmem:[%s563] ss:$0 sm:$0xff]
            %v565 = vlaneseq
            %v566 = vand.u32 %v565, 127
            %v567 = vmov %v566
            %v568 = vlaneseq
            %v569 = vshrl.u32 %v568, 7
            %v570 = vmov %v569
            %vm572 = vcmp.eq.s32.totalorder %v570, %v567
            %v573 = vsel %vm572, %v564, 0.0
            %574 = vadd.xlane.f32.xlu0 %v573
            %v575 = vpop.xlane.xlu0 %574
            %s576 = smov [#allocation23]
            %577 = vst [vmem:[%s576] sm:$0xff] %v575
            %s578 = smov [#allocation22]
            %v579 = vld [vmem:[%s578] ss:$0 sm:$0xff]
            %v580 = vlaneseq
            %v581 = vand.u32 %v580, 127
            %v582 = vmov %v581
            %v583 = vlaneseq
            %v584 = vshrl.u32 %v583, 7
            %v585 = vmov %v584
            %vm587 = vcmp.eq.s32.totalorder %v585, %v582
            %v588 = vsel %vm587, %v579, 0.0
            %589 = vadd.xlane.f32.xlu0 %v588
            %v590 = vpop.xlane.xlu0 %589
            %s591 = smov [#allocation24]
            %592 = vst [vmem:[%s591] sm:$0xff] %v590
            %s593 = smov [#allocation23]
            %v594 = vld [vmem:[%s593] sm:$0xff]
            %s595 = smov [#allocation24]
            %v596 = vld [vmem:[%s595] sm:$0xff]
            %s597 = smov [#allocation12]
            %s598 = smov [#allocation13]
            %s599 = smov [#allocation14]
            %s600 = smov [#allocation15]
            %v601 = vld [vmem:[%s597] sm:$0xff]
            %v602 = vld [vmem:[%s598] sm:$0xff]
            %v603 = vld [vmem:[%s599] sm:$0xff]
            %v604 = vld [vmem:[%s600] sm:$0xff]
            %v605 = vmul.f32 %v594, %v601
            %v606 = vmul.f32 %v596, %v603
            %v607 = vsub.f32 %v605, %v606
            %v608 = vmul.f32 %v594, %v602
            %v609 = vmul.f32 %v596, %v604
            %v610 = vsub.f32 %v608, %v609
            %v611 = vmul.f32 %v596, %v601
            %v612 = vmul.f32 %v594, %v603
            %v613 = vadd.f32 %v611, %v612
            %v614 = vmul.f32 %v596, %v602
            %v615 = vmul.f32 %v594, %v604
            %v616 = vadd.f32 %v614, %v615
            %617 = vst [vmem:[%s597] sm:$0xff] %v607
            %618 = vst [vmem:[%s598] sm:$0xff] %v610
            %619 = vst [vmem:[%s599] sm:$0xff] %v613
            %620 = vst [vmem:[%s600] sm:$0xff] %v616
            %s621 = smov [#allocation21]
            %v622 = vld [vmem:[%s621] ss:$0 sm:$0xff]
            %s623 = smov [#allocation22]
            %v624 = vld [vmem:[%s623] ss:$0 sm:$0xff]
            %s625 = smov [#allocation12]
            %s626 = smov [#allocation13]
            %s627 = smov [#allocation14]
            %s628 = smov [#allocation15]
            %v629 = vld [vmem:[%s625] sm:$0xff]
            %v630 = vld [vmem:[%s626] sm:$0xff]
            %v631 = vld [vmem:[%s627] sm:$0xff]
            %v632 = vld [vmem:[%s628] sm:$0xff]
            %v633 = vmul.f32 %v622, %v629
            %v634 = vmul.f32 %v624, %v630
            %v635 = vsub.f32 %v633, %v634
            %v636 = vmul.f32 %v624, %v629
            %v637 = vmul.f32 %v622, %v630
            %v638 = vadd.f32 %v636, %v637
            %v639 = vmul.f32 %v622, %v631
            %v640 = vmul.f32 %v624, %v632
            %v641 = vsub.f32 %v639, %v640
            %v642 = vmul.f32 %v624, %v631
            %v643 = vmul.f32 %v622, %v632
            %v644 = vadd.f32 %v642, %v643
            %645 = vst [vmem:[%s625] sm:$0xff] %v635
            %646 = vst [vmem:[%s626] sm:$0xff] %v638
            %647 = vst [vmem:[%s627] sm:$0xff] %v641
            %648 = vst [vmem:[%s628] sm:$0xff] %v644
            %s649 = smov [#allocation12]
            %s650 = smov [#allocation19]
            %v651 = vlaneseq
            %v652 = vand.u32 %v651, 127
            %v653 = vmov %v652
            %v654 = vlaneseq
            %v655 = vshrl.u32 %v654, 7
            %v656 = vmov %v655
            %v657 = vld [vmem:[%s650] ss:$0 sm:$0xff]
            %v658 = vld [vmem:[%s649] sm:$0xff]
            %vm661 = vcmp.eq.s32.totalorder %v656, %v653
            %v662 = vsel %vm661, %v657, %v658
            %663 = vst [vmem:[%s649] sm:$0xff] %v662
            %s664 = smov [#allocation13]
            %v665 = vlaneseq
            %v666 = vand.u32 %v665, 127
            %v667 = vmov %v666
            %v668 = vlaneseq
            %v669 = vshrl.u32 %v668, 7
            %v670 = vmov %v669
            %v671 = vld [vmem:[%s664] sm:$0xff]
            %vm674 = vcmp.eq.s32.totalorder %v670, %v667
            %v675 = vsel %vm674, 0.0, %v671
            %676 = vst [vmem:[%s664] sm:$0xff] %v675
            %s677 = smov [#allocation14]
            %v678 = vlaneseq
            %v679 = vand.u32 %v678, 127
            %v680 = vmov %v679
            %v681 = vlaneseq
            %v682 = vshrl.u32 %v681, 7
            %v683 = vmov %v682
            %v684 = vld [vmem:[%s677] sm:$0xff]
            %vm687 = vcmp.eq.s32.totalorder %v683, %v680
            %v688 = vsel %vm687, 0.0, %v684
            %689 = vst [vmem:[%s677] sm:$0xff] %v688
            %s690 = smov [#allocation15]
            %s691 = smov [#allocation20]
            %v692 = vlaneseq
            %v693 = vand.u32 %v692, 127
            %v694 = vmov %v693
            %v695 = vlaneseq
            %v696 = vshrl.u32 %v695, 7
            %v697 = vmov %v696
            %v698 = vld [vmem:[%s691] ss:$0 sm:$0xff]
            %v699 = vld [vmem:[%s690] sm:$0xff]
            %vm702 = vcmp.eq.s32.totalorder %v697, %v694
            %v703 = vsel %vm702, %v698, %v699
            %704 = vst [vmem:[%s690] sm:$0xff] %v703
            %s705 = smov [#allocation12]
            %s706 = smov [#allocation13]
            %v707 = vld [vmem:[%s706] sm:$0xff]
            %708 = vrot.lane.b32.xlu0 %v707, 1
            %v709 = vpop.permute.xlu0 %708
            %v710 = vld [vmem:[%s705] sm:$0xff]
            %v711 = vld [vmem:[%s705] sm:$0xff]
            %712 = vrot.lane.b32.xlu0 %v711, 1
            %v713 = vpop.permute.xlu0 %712
            %v714 = vlaneseq
            %v715 = vand.u32 %v714, 127
            %vm716 = vcmp.eq.s32.totalorder %v715, 0
            %v717 = vsel %vm716, %v711, %v713
            %v718 = vlaneseq
            %v719 = vand.u32 %v718, 127
            %vm720 = vcmp.eq.s32.totalorder %v719, 1
            %v721 = vsel %vm720, %v709, %v717
            %v722 = vlaneseq
            %v723 = vand.u32 %v722, 127
            %vm724 = vcmp.ge.s32.totalorder %v723, 0
            %vm725 = vcmp.lt.s32.totalorder %v723, 8
            %vm726 = vmand %vm724, %vm725
            %v727 = vsel %vm726, %v721, 0.0
            %v728 = vld [vmem:[%s706] sm:$0xff]
            %729 = vrot.lane.b32.xlu0 %v728, 127
            %v730 = vpop.permute.xlu0 %729
            %v731 = vlaneseq
            %v732 = vand.u32 %v731, 127
            %vm733 = vcmp.eq.s32.totalorder %v732, 7
            %v734 = vsel %vm733, %v710, %v730
            %735 = vst [vmem:[%s705] sm:$0xff] %v727
            %736 = vst [vmem:[%s706] sm:$0xff] %v734
            %s737 = smov [#allocation14]
            %s738 = smov [#allocation15]
            %v739 = vld [vmem:[%s738] sm:$0xff]
            %740 = vrot.lane.b32.xlu0 %v739, 1
            %v741 = vpop.permute.xlu0 %740
            %v742 = vld [vmem:[%s737] sm:$0xff]
            %v743 = vld [vmem:[%s737] sm:$0xff]
            %744 = vrot.lane.b32.xlu0 %v743, 1
            %v745 = vpop.permute.xlu0 %744
            %v746 = vlaneseq
            %v747 = vand.u32 %v746, 127
            %vm748 = vcmp.eq.s32.totalorder %v747, 0
            %v749 = vsel %vm748, %v743, %v745
            %v750 = vlaneseq
            %v751 = vand.u32 %v750, 127
            %vm752 = vcmp.eq.s32.totalorder %v751, 1
            %v753 = vsel %vm752, %v741, %v749
            %v754 = vlaneseq
            %v755 = vand.u32 %v754, 127
            %vm756 = vcmp.ge.s32.totalorder %v755, 0
            %vm757 = vcmp.lt.s32.totalorder %v755, 8
            %vm758 = vmand %vm756, %vm757
            %v759 = vsel %vm758, %v753, 0.0
            %v760 = vld [vmem:[%s738] sm:$0xff]
            %761 = vrot.lane.b32.xlu0 %v760, 127
            %v762 = vpop.permute.xlu0 %761
            %v763 = vlaneseq
            %v764 = vand.u32 %v763, 127
            %vm765 = vcmp.eq.s32.totalorder %v764, 7
            %v766 = vsel %vm765, %v742, %v762
            %767 = vst [vmem:[%s737] sm:$0xff] %v759
            %768 = vst [vmem:[%s738] sm:$0xff] %v766
            %s769 = smov [#allocation12]
            %s770 = smov [#allocation14]
            %v771 = vld [vmem:[%s769] ss:$0 sm:$0xff]
            %s773 = scalar_lea.vmem %s769, 4294967295
            %v774 = vld [vmem:[%s773] sm:$0xfe]
            %v775 = vlaneseq
            %v776 = vshrl.u32 %v775, 7
            %vm777 = vcmp.eq.s32.totalorder %v776, 0
            %v778 = vsel %vm777, %v771, %v774
            %s779 = scalar_lea.vmem %s769, 7
            %v780 = vld [vmem:[%s779] ss:$0 sm:$0xff]
            %781 = vst [vmem:[%s769] sm:$0xff] %v778
            %v782 = vld [vmem:[%s770] ss:$0 sm:$0xff]
            %s783 = scalar_lea.vmem %s769, 1
            %784 = vst [vmem:[%s783] sm:$0x1] %v782
            %s785 = scalar_lea.vmem %s770, 1
            %v786 = vld [vmem:[%s785] sm:$0x7f]
            %v787 = vlaneseq
            %v788 = vshrl.u32 %v787, 7
            %vm789 = vcmp.eq.s32.totalorder %v788, 7
            %v790 = vsel %vm789, %v780, %v786
            %v791 = vld [vmem:[%s770] ss:$0 sm:$0xff]
            %792 = vst [vmem:[%s770] sm:$0xff] %v790
            %s793 = smov [#allocation13]
            %s794 = smov [#allocation15]
            %v795 = vld [vmem:[%s793] ss:$0 sm:$0xff]
            %s797 = scalar_lea.vmem %s793, 4294967295
            %v798 = vld [vmem:[%s797] sm:$0xfe]
            %v799 = vlaneseq
            %v800 = vshrl.u32 %v799, 7
            %vm801 = vcmp.eq.s32.totalorder %v800, 0
            %v802 = vsel %vm801, %v795, %v798
            %s803 = scalar_lea.vmem %s793, 7
            %v804 = vld [vmem:[%s803] ss:$0 sm:$0xff]
            %805 = vst [vmem:[%s793] sm:$0xff] %v802
            %v806 = vld [vmem:[%s794] ss:$0 sm:$0xff]
            %s807 = scalar_lea.vmem %s793, 1
            %808 = vst [vmem:[%s807] sm:$0x1] %v806
            %s809 = scalar_lea.vmem %s794, 1
            %v810 = vld [vmem:[%s809] sm:$0x7f]
            %v811 = vlaneseq
            %v812 = vshrl.u32 %v811, 7
            %vm813 = vcmp.eq.s32.totalorder %v812, 7
            %v814 = vsel %vm813, %v804, %v810
            %v815 = vld [vmem:[%s794] ss:$0 sm:$0xff]
            %816 = vst [vmem:[%s794] sm:$0xff] %v814
            %s817 = smov [#allocation23]
            %v818 = vld [vmem:[%s817] sm:$0xff]
            %s819 = smov [#allocation24]
            %v820 = vld [vmem:[%s819] sm:$0xff]
            %s821 = smov %s293
            %s822 = smov %s297
            %s823 = smov %s301
            %s824 = smov %s305
            %v825 = vld [vmem:[%s821] sm:$0xff]
            %v826 = vld [vmem:[%s822] sm:$0xff]
            %v827 = vld [vmem:[%s823] sm:$0xff]
            %v828 = vld [vmem:[%s824] sm:$0xff]
            %v829 = vmul.f32 %v818, %v825
            %v830 = vmul.f32 %v820, %v827
            %v831 = vsub.f32 %v829, %v830
            %v832 = vmul.f32 %v818, %v826
            %v833 = vmul.f32 %v820, %v828
            %v834 = vsub.f32 %v832, %v833
            %v835 = vmul.f32 %v820, %v825
            %v836 = vmul.f32 %v818, %v827
            %v837 = vadd.f32 %v835, %v836
            %v838 = vmul.f32 %v820, %v826
            %v839 = vmul.f32 %v818, %v828
            %v840 = vadd.f32 %v838, %v839
            %841 = vst [vmem:[%s821] sm:$0xff] %v831
            %842 = vst [vmem:[%s822] sm:$0xff] %v834
            %843 = vst [vmem:[%s823] sm:$0xff] %v837
            %844 = vst [vmem:[%s824] sm:$0xff] %v840
            %s845 = smov %s293
            %s846 = smov %s301
            %v847 = vld [vmem:[%s845] ss:$0 sm:$0xff]
            %s849 = scalar_lea.vmem %s845, 4294967295
            %v850 = vld [vmem:[%s849] sm:$0xfe]
            %v851 = vlaneseq
            %v852 = vshrl.u32 %v851, 7
            %vm853 = vcmp.eq.s32.totalorder %v852, 0
            %v854 = vsel %vm853, %v847, %v850
            %s855 = scalar_lea.vmem %s845, 7
            %v856 = vld [vmem:[%s855] ss:$0 sm:$0xff]
            %857 = vst [vmem:[%s845] sm:$0xff] %v854
            %v858 = vld [vmem:[%s846] ss:$0 sm:$0xff]
            %s859 = scalar_lea.vmem %s845, 1
            %860 = vst [vmem:[%s859] sm:$0x1] %v858
            %s861 = scalar_lea.vmem %s846, 1
            %v862 = vld [vmem:[%s861] sm:$0x7f]
            %v863 = vlaneseq
            %v864 = vshrl.u32 %v863, 7
            %vm865 = vcmp.eq.s32.totalorder %v864, 7
            %v866 = vsel %vm865, %v856, %v862
            %v867 = vld [vmem:[%s846] ss:$0 sm:$0xff]
            %868 = vst [vmem:[%s846] sm:$0xff] %v866
            %s869 = smov %s297
            %s870 = smov %s305
            %v871 = vld [vmem:[%s869] ss:$0 sm:$0xff]
            %s873 = scalar_lea.vmem %s869, 4294967295
            %v874 = vld [vmem:[%s873] sm:$0xfe]
            %v875 = vlaneseq
            %v876 = vshrl.u32 %v875, 7
            %vm877 = vcmp.eq.s32.totalorder %v876, 0
            %v878 = vsel %vm877, %v871, %v874
            %s879 = scalar_lea.vmem %s869, 7
            %v880 = vld [vmem:[%s879] ss:$0 sm:$0xff]
            %881 = vst [vmem:[%s869] sm:$0xff] %v878
            %v882 = vld [vmem:[%s870] ss:$0 sm:$0xff]
            %s883 = scalar_lea.vmem %s869, 1
            %884 = vst [vmem:[%s883] sm:$0x1] %v882
            %s885 = scalar_lea.vmem %s870, 1
            %v886 = vld [vmem:[%s885] sm:$0x7f]
            %v887 = vlaneseq
            %v888 = vshrl.u32 %v887, 7
            %vm889 = vcmp.eq.s32.totalorder %v888, 7
            %v890 = vsel %vm889, %v880, %v886
            %v891 = vld [vmem:[%s870] ss:$0 sm:$0xff]
            %892 = vst [vmem:[%s870] sm:$0xff] %v890
          $region168: #{custom-call.2} parent=160 // loop_footer
            %s453 = sadd.s32 1, %s449
          $region169: #{custom-call.2} parent=160 // loop_footer_branch
            %448 = sbr.rel target = $region165
          $region170: #{custom-call.2} parent=160 // loop_exit
            _
          %s893 = sadd.s32 %s351, 1
        $region161: #{custom-call.2} parent=155 // loop_footer
          _
        $region162: #{custom-call.2} parent=155 // loop_footer_branch
          %350 = sbr.rel target = $region158
        $region163: #{custom-call.2} parent=155 // loop_exit
          _
        %s896 = sand.u32 %s17, 7
        %s897 = scalar_lea.vmem [#allocation4], %s896
        %s898 = sand.u32 %s17, 7
        %s899 = scalar_lea.vmem [#allocation6], %s898
        %s900 = smov [#allocation12]
        %s901 = smov %s897
        %v902 = vlaneseq
        %v903 = vand.u32 %v902, 127
        %v904 = vmov %v903
        %v905 = vlaneseq
        %v906 = vshrl.u32 %v905, 7
        %v907 = vmov %v906
        %v908 = vld [vmem:[%s900] sm:$0xff]
        %vm911 = vcmp.eq.s32.totalorder %v907, %v904
        %v912 = vsel %vm911, %v908, 0.0
        %v913 = vrot.slane %v912, 4
        %v914 = vadd.f32 %v912, %v913
        %v915 = vrot.slane %v914, 2
        %v916 = vadd.f32 %v914, %v915
        %v917 = vrot.slane %v916, 1
        %v918 = vadd.f32 %v916, %v917
        %919 = vst [vmem:[%s901] sm:$0x1] %v918
        %s920 = smov [#allocation15]
        %s921 = smov %s899
        %v922 = vlaneseq
        %v923 = vand.u32 %v922, 127
        %v924 = vmov %v923
        %v925 = vlaneseq
        %v926 = vshrl.u32 %v925, 7
        %v927 = vmov %v926
        %v928 = vld [vmem:[%s920] sm:$0xff]
        %vm931 = vcmp.eq.s32.totalorder %v927, %v924
        %v932 = vsel %vm931, %v928, 0.0
        %v933 = vrot.slane %v932, 4
        %v934 = vadd.f32 %v932, %v933
        %v935 = vrot.slane %v934, 2
        %v936 = vadd.f32 %v934, %v935
        %v937 = vrot.slane %v936, 1
        %v938 = vadd.f32 %v936, %v937
        %939 = vst [vmem:[%s921] sm:$0x1] %v938
        %s941 = sshllo.u32 0, 2
        %v943 = vld [vmem:[#allocation4] sm:%s941]
        %s944 = sshllo.u32 0, 2
        %945 = vst [vmem:[%s283] sm:%s944] %v943
        %s947 = sshllo.u32 0, 2
        %v949 = vld [vmem:[#allocation6] sm:%s947]
        %s950 = sshllo.u32 0, 2
        %951 = vst [vmem:[%s289] sm:%s950] %v949
        %s952 = sand.u32 %s27, 1
        %s953 = sand.u32 %s27, 1
        %s954 = smul.addr %s953, 2
        %s955 = scalar_lea.vmem [#allocation5], %s954
        %s956 = sand.u32 %s55, 1
        %s957 = sand.u32 %s55, 1
        %s958 = smul.addr %s957, 2
        %s959 = scalar_lea.vmem [#allocation7], %s958
        %s960 = sand.u32 %s17, 1
        %s961 = sand.u32 %s17, 1
        %s962 = smul.addr %s961, 8
        %s963 = scalar_lea.vmem [#allocation8], %s962
        %s964 = sand.u32 %s17, 1
        %s965 = sand.u32 %s17, 1
        %s966 = smul.addr %s965, 8
        %s967 = scalar_lea.vmem [#allocation9], %s966
        %s968 = sand.u32 %s17, 1
        %s969 = sand.u32 %s17, 1
        %s970 = smul.addr %s969, 8
        %s971 = scalar_lea.vmem [#allocation10], %s970
        %s972 = sand.u32 %s17, 1
        %s973 = sand.u32 %s17, 1
        %s974 = smul.addr %s973, 8
        %s975 = scalar_lea.vmem [#allocation11], %s974
        // Predicated region
        $region171: #{custom-call.2} parent=155 // pred_check
          %p976 = pneg %p37
        $region172: #{custom-call.2} parent=155 // pred_check_branch
          %978 = sbr.rel (%p976) target = $region174
        $region173: #{custom-call.2} parent=155 // pred_region
          %s979 = sshrl.u32 %s17, 3
          %s980 = smul.addr %s979, 2
          %s981 = scalar_lea.vmem %s4, %s980
          // Predicated region
          $region175: #{custom-call.2} parent=173 // pred_check
            _
          $region176: #{custom-call.2} parent=173 // pred_check_branch
            %983 = sbr.rel (0) target = $region178
          $region177: #{custom-call.2} parent=173 // pred_region
            // Predicated region
            $region179: #{custom-call.2} parent=177 // pred_check
              _
            $region180: #{custom-call.2} parent=177 // pred_check_branch
              %985 = sbr.rel target = $region182
            $region181: #{custom-call.2} parent=177 // pred_region
              // Predicated region
              $region194: #{custom-call.2} parent=181 // pred_check
                _
              $region195: #{custom-call.2} parent=181 // pred_check_branch
                %1000 = sbr.rel (0) target = $region197
              $region196: #{custom-call.2} parent=181 // pred_region
                loop: start=0, step=1, limit=1
                $region198: #{custom-call.2} parent=196 // loop_pre_header
                  _
                $region199: #{custom-call.2} parent=196 // loop_header
                  %s1003 = sphi 0, %s1007
                  %p1004 = scmp.ge.s32.totalorder %s1003, 1
                  %s1008 = sphi %s955, %s955
                  %s1009 = sphi %s981, %s981
                $region200: #{custom-call.2} parent=196 // loop_header_branch
                  %1006 = sbr.rel (%p1004) target = $region204
                $region201: #{custom-call.2} parent=196 // loop_body
                  %v1010 = vld [vmem:[%s1008] sm:$0x3]
                  %1011 = vst [vmem:[%s1009] sm:$0x3] %v1010
                $region202: #{custom-call.2} parent=196 // loop_footer
                  %s1007 = sadd.s32 1, %s1003
                $region203: #{custom-call.2} parent=196 // loop_footer_branch
                  %1002 = sbr.rel target = $region199
                $region204: #{custom-call.2} parent=196 // loop_exit
                  _
              $region197: #{custom-call.2} parent=181 // pred_fallthru
                _
            $region182: #{custom-call.2} parent=177 // pred_fallthru
              _
            // Predicated region
            $region183: #{custom-call.2} parent=177 // pred_check
              _
            $region184: #{custom-call.2} parent=177 // pred_check_branch
              %987 = sbr.rel (0) target = $region186
            $region185: #{custom-call.2} parent=177 // pred_region
              loop: start=0, step=1, limit=1
              $region187: #{custom-call.2} parent=185 // loop_pre_header
                _
              $region188: #{custom-call.2} parent=185 // loop_header
                %s990 = sphi 0, %s994
                %p991 = scmp.ge.s32.totalorder %s990, 1
                %s995 = sphi %s955, %s955
                %s996 = sphi %s981, %s981
              $region189: #{custom-call.2} parent=185 // loop_header_branch
                %993 = sbr.rel (%p991) target = $region193
              $region190: #{custom-call.2} parent=185 // loop_body
                %v997 = vld [vmem:[%s995] sm:$0x3]
                %998 = vst [vmem:[%s996] sm:$0x3] %v997
              $region191: #{custom-call.2} parent=185 // loop_footer
                %s994 = sadd.s32 1, %s990
              $region192: #{custom-call.2} parent=185 // loop_footer_branch
                %989 = sbr.rel target = $region188
              $region193: #{custom-call.2} parent=185 // loop_exit
                _
            $region186: #{custom-call.2} parent=177 // pred_fallthru
              _
          $region178: #{custom-call.2} parent=173 // pred_fallthru
            _
          %1012 = vnop
        $region174: #{custom-call.2} parent=155 // pred_fallthru
          _
        // Predicated region
        $region205: #{custom-call.2} parent=155 // pred_check
          %p1013 = pneg %p65
        $region206: #{custom-call.2} parent=155 // pred_check_branch
          %1015 = sbr.rel (%p1013) target = $region208
        $region207: #{custom-call.2} parent=155 // pred_region
          %s1016 = sshrl.u32 %s17, 3
          %s1017 = smul.addr %s1016, 2
          %s1018 = scalar_lea.vmem %s5, %s1017
          // Predicated region
          $region209: #{custom-call.2} parent=207 // pred_check
            _
          $region210: #{custom-call.2} parent=207 // pred_check_branch
            %1020 = sbr.rel (0) target = $region212
          $region211: #{custom-call.2} parent=207 // pred_region
            // Predicated region
            $region213: #{custom-call.2} parent=211 // pred_check
              _
            $region214: #{custom-call.2} parent=211 // pred_check_branch
              %1022 = sbr.rel target = $region216
            $region215: #{custom-call.2} parent=211 // pred_region
              // Predicated region
              $region228: #{custom-call.2} parent=215 // pred_check
                _
              $region229: #{custom-call.2} parent=215 // pred_check_branch
                %1037 = sbr.rel (0) target = $region231
              $region230: #{custom-call.2} parent=215 // pred_region
                loop: start=0, step=1, limit=1
                $region232: #{custom-call.2} parent=230 // loop_pre_header
                  _
                $region233: #{custom-call.2} parent=230 // loop_header
                  %s1040 = sphi 0, %s1044
                  %p1041 = scmp.ge.s32.totalorder %s1040, 1
                  %s1045 = sphi %s959, %s959
                  %s1046 = sphi %s1018, %s1018
                $region234: #{custom-call.2} parent=230 // loop_header_branch
                  %1043 = sbr.rel (%p1041) target = $region238
                $region235: #{custom-call.2} parent=230 // loop_body
                  %v1047 = vld [vmem:[%s1045] sm:$0x3]
                  %1048 = vst [vmem:[%s1046] sm:$0x3] %v1047
                $region236: #{custom-call.2} parent=230 // loop_footer
                  %s1044 = sadd.s32 1, %s1040
                $region237: #{custom-call.2} parent=230 // loop_footer_branch
                  %1039 = sbr.rel target = $region233
                $region238: #{custom-call.2} parent=230 // loop_exit
                  _
              $region231: #{custom-call.2} parent=215 // pred_fallthru
                _
            $region216: #{custom-call.2} parent=211 // pred_fallthru
              _
            // Predicated region
            $region217: #{custom-call.2} parent=211 // pred_check
              _
            $region218: #{custom-call.2} parent=211 // pred_check_branch
              %1024 = sbr.rel (0) target = $region220
            $region219: #{custom-call.2} parent=211 // pred_region
              loop: start=0, step=1, limit=1
              $region221: #{custom-call.2} parent=219 // loop_pre_header
                _
              $region222: #{custom-call.2} parent=219 // loop_header
                %s1027 = sphi 0, %s1031
                %p1028 = scmp.ge.s32.totalorder %s1027, 1
                %s1032 = sphi %s959, %s959
                %s1033 = sphi %s1018, %s1018
              $region223: #{custom-call.2} parent=219 // loop_header_branch
                %1030 = sbr.rel (%p1028) target = $region227
              $region224: #{custom-call.2} parent=219 // loop_body
                %v1034 = vld [vmem:[%s1032] sm:$0x3]
                %1035 = vst [vmem:[%s1033] sm:$0x3] %v1034
              $region225: #{custom-call.2} parent=219 // loop_footer
                %s1031 = sadd.s32 1, %s1027
              $region226: #{custom-call.2} parent=219 // loop_footer_branch
                %1026 = sbr.rel target = $region222
              $region227: #{custom-call.2} parent=219 // loop_exit
                _
            $region220: #{custom-call.2} parent=211 // pred_fallthru
              _
          $region212: #{custom-call.2} parent=207 // pred_fallthru
            _
          %1049 = vnop
        $region208: #{custom-call.2} parent=155 // pred_fallthru
          _
        %s1050 = smul.addr %s17, 8
        %s1051 = scalar_lea.vmem %s6, %s1050
        // Predicated region
        $region239: #{custom-call.2} parent=155 // pred_check
          _
        $region240: #{custom-call.2} parent=155 // pred_check_branch
          %1053 = sbr.rel (0) target = $region242
        $region241: #{custom-call.2} parent=155 // pred_region
          // Predicated region
          $region243: #{custom-call.2} parent=241 // pred_check
            _
          $region244: #{custom-call.2} parent=241 // pred_check_branch
            %1055 = sbr.rel (0) target = $region246
          $region245: #{custom-call.2} parent=241 // pred_region
            // Predicated region
            $region258: #{custom-call.2} parent=245 // pred_check
              _
            $region259: #{custom-call.2} parent=245 // pred_check_branch
              %1070 = sbr.rel (0) target = $region261
            $region260: #{custom-call.2} parent=245 // pred_region
              loop: start=0, step=1, limit=1
              $region262: #{custom-call.2} parent=260 // loop_pre_header
                _
              $region263: #{custom-call.2} parent=260 // loop_header
                %s1072 = sphi 0, %s1076
                %p1073 = scmp.ge.s32.totalorder %s1072, 1
                %s1077 = sphi %s963, %s963
                %s1078 = sphi %s1051, %s1051
              $region264: #{custom-call.2} parent=260 // loop_header_branch
                %1075 = sbr.rel (%p1073) target = $region268
              $region265: #{custom-call.2} parent=260 // loop_body
                %v1079 = vld [vmem:[%s1077] sm:$0xff]
                %1080 = vst [vmem:[%s1078] sm:$0xff] %v1079
              $region266: #{custom-call.2} parent=260 // loop_footer
                %s1076 = sadd.s32 1, %s1072
              $region267: #{custom-call.2} parent=260 // loop_footer_branch
                %1071 = sbr.rel target = $region263
              $region268: #{custom-call.2} parent=260 // loop_exit
                _
            $region261: #{custom-call.2} parent=245 // pred_fallthru
              _
            // Predicated region
            $region269: #{custom-call.2} parent=245 // pred_check
              _
            $region270: #{custom-call.2} parent=245 // pred_check_branch
              %1082 = sbr.rel target = $region272
            $region271: #{custom-call.2} parent=245 // pred_region
              _
            $region272: #{custom-call.2} parent=245 // pred_fallthru
              _
          $region246: #{custom-call.2} parent=241 // pred_fallthru
            _
          // Predicated region
          $region247: #{custom-call.2} parent=241 // pred_check
            _
          $region248: #{custom-call.2} parent=241 // pred_check_branch
            %1057 = sbr.rel target = $region250
          $region249: #{custom-call.2} parent=241 // pred_region
            loop: start=0, step=1, limit=1
            $region251: #{custom-call.2} parent=249 // loop_pre_header
              _
            $region252: #{custom-call.2} parent=249 // loop_header
              %s1060 = sphi 0, %s1064
              %p1061 = scmp.ge.s32.totalorder %s1060, 1
              %s1065 = sphi %s963, %s963
              %s1066 = sphi %s1051, %s1051
            $region253: #{custom-call.2} parent=249 // loop_header_branch
              %1063 = sbr.rel (%p1061) target = $region257
            $region254: #{custom-call.2} parent=249 // loop_body
              %v1067 = vld [vmem:[%s1065] sm:$0xff]
              %1068 = vst [vmem:[%s1066] sm:$0xff] %v1067
            $region255: #{custom-call.2} parent=249 // loop_footer
              %s1064 = sadd.s32 1, %s1060
            $region256: #{custom-call.2} parent=249 // loop_footer_branch
              %1059 = sbr.rel target = $region252
            $region257: #{custom-call.2} parent=249 // loop_exit
              _
          $region250: #{custom-call.2} parent=241 // pred_fallthru
            _
        $region242: #{custom-call.2} parent=155 // pred_fallthru
          _
        %1083 = vnop
        %s1084 = smul.addr %s17, 8
        %s1085 = scalar_lea.vmem %s7, %s1084
        // Predicated region
        $region273: #{custom-call.2} parent=155 // pred_check
          _
        $region274: #{custom-call.2} parent=155 // pred_check_branch
          %1087 = sbr.rel (0) target = $region276
        $region275: #{custom-call.2} parent=155 // pred_region
          // Predicated region
          $region277: #{custom-call.2} parent=275 // pred_check
            _
          $region278: #{custom-call.2} parent=275 // pred_check_branch
            %1089 = sbr.rel (0) target = $region280
          $region279: #{custom-call.2} parent=275 // pred_region
            // Predicated region
            $region292: #{custom-call.2} parent=279 // pred_check
              _
            $region293: #{custom-call.2} parent=279 // pred_check_branch
              %1104 = sbr.rel (0) target = $region295
            $region294: #{custom-call.2} parent=279 // pred_region
              loop: start=0, step=1, limit=1
              $region296: #{custom-call.2} parent=294 // loop_pre_header
                _
              $region297: #{custom-call.2} parent=294 // loop_header
                %s1106 = sphi 0, %s1110
                %p1107 = scmp.ge.s32.totalorder %s1106, 1
                %s1111 = sphi %s967, %s967
                %s1112 = sphi %s1085, %s1085
              $region298: #{custom-call.2} parent=294 // loop_header_branch
                %1109 = sbr.rel (%p1107) target = $region302
              $region299: #{custom-call.2} parent=294 // loop_body
                %v1113 = vld [vmem:[%s1111] sm:$0xff]
                %1114 = vst [vmem:[%s1112] sm:$0xff] %v1113
              $region300: #{custom-call.2} parent=294 // loop_footer
                %s1110 = sadd.s32 1, %s1106
              $region301: #{custom-call.2} parent=294 // loop_footer_branch
                %1105 = sbr.rel target = $region297
              $region302: #{custom-call.2} parent=294 // loop_exit
                _
            $region295: #{custom-call.2} parent=279 // pred_fallthru
              _
            // Predicated region
            $region303: #{custom-call.2} parent=279 // pred_check
              _
            $region304: #{custom-call.2} parent=279 // pred_check_branch
              %1116 = sbr.rel target = $region306
            $region305: #{custom-call.2} parent=279 // pred_region
              _
            $region306: #{custom-call.2} parent=279 // pred_fallthru
              _
          $region280: #{custom-call.2} parent=275 // pred_fallthru
            _
          // Predicated region
          $region281: #{custom-call.2} parent=275 // pred_check
            _
          $region282: #{custom-call.2} parent=275 // pred_check_branch
            %1091 = sbr.rel target = $region284
          $region283: #{custom-call.2} parent=275 // pred_region
            loop: start=0, step=1, limit=1
            $region285: #{custom-call.2} parent=283 // loop_pre_header
              _
            $region286: #{custom-call.2} parent=283 // loop_header
              %s1094 = sphi 0, %s1098
              %p1095 = scmp.ge.s32.totalorder %s1094, 1
              %s1099 = sphi %s967, %s967
              %s1100 = sphi %s1085, %s1085
            $region287: #{custom-call.2} parent=283 // loop_header_branch
              %1097 = sbr.rel (%p1095) target = $region291
            $region288: #{custom-call.2} parent=283 // loop_body
              %v1101 = vld [vmem:[%s1099] sm:$0xff]
              %1102 = vst [vmem:[%s1100] sm:$0xff] %v1101
            $region289: #{custom-call.2} parent=283 // loop_footer
              %s1098 = sadd.s32 1, %s1094
            $region290: #{custom-call.2} parent=283 // loop_footer_branch
              %1093 = sbr.rel target = $region286
            $region291: #{custom-call.2} parent=283 // loop_exit
              _
          $region284: #{custom-call.2} parent=275 // pred_fallthru
            _
        $region276: #{custom-call.2} parent=155 // pred_fallthru
          _
        %1117 = vnop
        %s1118 = smul.addr %s17, 8
        %s1119 = scalar_lea.vmem %s8, %s1118
        // Predicated region
        $region307: #{custom-call.2} parent=155 // pred_check
          _
        $region308: #{custom-call.2} parent=155 // pred_check_branch
          %1121 = sbr.rel (0) target = $region310
        $region309: #{custom-call.2} parent=155 // pred_region
          // Predicated region
          $region311: #{custom-call.2} parent=309 // pred_check
            _
          $region312: #{custom-call.2} parent=309 // pred_check_branch
            %1123 = sbr.rel (0) target = $region314
          $region313: #{custom-call.2} parent=309 // pred_region
            // Predicated region
            $region326: #{custom-call.2} parent=313 // pred_check
              _
            $region327: #{custom-call.2} parent=313 // pred_check_branch
              %1138 = sbr.rel (0) target = $region329
            $region328: #{custom-call.2} parent=313 // pred_region
              loop: start=0, step=1, limit=1
              $region330: #{custom-call.2} parent=328 // loop_pre_header
                _
              $region331: #{custom-call.2} parent=328 // loop_header
                %s1140 = sphi 0, %s1144
                %p1141 = scmp.ge.s32.totalorder %s1140, 1
                %s1145 = sphi %s971, %s971
                %s1146 = sphi %s1119, %s1119
              $region332: #{custom-call.2} parent=328 // loop_header_branch
                %1143 = sbr.rel (%p1141) target = $region336
              $region333: #{custom-call.2} parent=328 // loop_body
                %v1147 = vld [vmem:[%s1145] sm:$0xff]
                %1148 = vst [vmem:[%s1146] sm:$0xff] %v1147
              $region334: #{custom-call.2} parent=328 // loop_footer
                %s1144 = sadd.s32 1, %s1140
              $region335: #{custom-call.2} parent=328 // loop_footer_branch
                %1139 = sbr.rel target = $region331
              $region336: #{custom-call.2} parent=328 // loop_exit
                _
            $region329: #{custom-call.2} parent=313 // pred_fallthru
              _
            // Predicated region
            $region337: #{custom-call.2} parent=313 // pred_check
              _
            $region338: #{custom-call.2} parent=313 // pred_check_branch
              %1150 = sbr.rel target = $region340
            $region339: #{custom-call.2} parent=313 // pred_region
              _
            $region340: #{custom-call.2} parent=313 // pred_fallthru
              _
          $region314: #{custom-call.2} parent=309 // pred_fallthru
            _
          // Predicated region
          $region315: #{custom-call.2} parent=309 // pred_check
            _
          $region316: #{custom-call.2} parent=309 // pred_check_branch
            %1125 = sbr.rel target = $region318
          $region317: #{custom-call.2} parent=309 // pred_region
            loop: start=0, step=1, limit=1
            $region319: #{custom-call.2} parent=317 // loop_pre_header
              _
            $region320: #{custom-call.2} parent=317 // loop_header
              %s1128 = sphi 0, %s1132
              %p1129 = scmp.ge.s32.totalorder %s1128, 1
              %s1133 = sphi %s971, %s971
              %s1134 = sphi %s1119, %s1119
            $region321: #{custom-call.2} parent=317 // loop_header_branch
              %1131 = sbr.rel (%p1129) target = $region325
            $region322: #{custom-call.2} parent=317 // loop_body
              %v1135 = vld [vmem:[%s1133] sm:$0xff]
              %1136 = vst [vmem:[%s1134] sm:$0xff] %v1135
            $region323: #{custom-call.2} parent=317 // loop_footer
              %s1132 = sadd.s32 1, %s1128
            $region324: #{custom-call.2} parent=317 // loop_footer_branch
              %1127 = sbr.rel target = $region320
            $region325: #{custom-call.2} parent=317 // loop_exit
              _
          $region318: #{custom-call.2} parent=309 // pred_fallthru
            _
        $region310: #{custom-call.2} parent=155 // pred_fallthru
          _
        %1151 = vnop
        %s1152 = smul.addr %s17, 8
        %s1153 = scalar_lea.vmem %s9, %s1152
        // Predicated region
        $region341: #{custom-call.2} parent=155 // pred_check
          _
        $region342: #{custom-call.2} parent=155 // pred_check_branch
          %1155 = sbr.rel (0) target = $region344
        $region343: #{custom-call.2} parent=155 // pred_region
          // Predicated region
          $region345: #{custom-call.2} parent=343 // pred_check
            _
          $region346: #{custom-call.2} parent=343 // pred_check_branch
            %1157 = sbr.rel (0) target = $region348
          $region347: #{custom-call.2} parent=343 // pred_region
            // Predicated region
            $region360: #{custom-call.2} parent=347 // pred_check
              _
            $region361: #{custom-call.2} parent=347 // pred_check_branch
              %1172 = sbr.rel (0) target = $region363
            $region362: #{custom-call.2} parent=347 // pred_region
              loop: start=0, step=1, limit=1
              $region364: #{custom-call.2} parent=362 // loop_pre_header
                _
              $region365: #{custom-call.2} parent=362 // loop_header
                %s1174 = sphi 0, %s1178
                %p1175 = scmp.ge.s32.totalorder %s1174, 1
                %s1179 = sphi %s975, %s975
                %s1180 = sphi %s1153, %s1153
              $region366: #{custom-call.2} parent=362 // loop_header_branch
                %1177 = sbr.rel (%p1175) target = $region370
              $region367: #{custom-call.2} parent=362 // loop_body
                %v1181 = vld [vmem:[%s1179] sm:$0xff]
                %1182 = vst [vmem:[%s1180] sm:$0xff] %v1181
              $region368: #{custom-call.2} parent=362 // loop_footer
                %s1178 = sadd.s32 1, %s1174
              $region369: #{custom-call.2} parent=362 // loop_footer_branch
                %1173 = sbr.rel target = $region365
              $region370: #{custom-call.2} parent=362 // loop_exit
                _
            $region363: #{custom-call.2} parent=347 // pred_fallthru
              _
            // Predicated region
            $region371: #{custom-call.2} parent=347 // pred_check
              _
            $region372: #{custom-call.2} parent=347 // pred_check_branch
              %1184 = sbr.rel target = $region374
            $region373: #{custom-call.2} parent=347 // pred_region
              _
            $region374: #{custom-call.2} parent=347 // pred_fallthru
              _
          $region348: #{custom-call.2} parent=343 // pred_fallthru
            _
          // Predicated region
          $region349: #{custom-call.2} parent=343 // pred_check
            _
          $region350: #{custom-call.2} parent=343 // pred_check_branch
            %1159 = sbr.rel target = $region352
          $region351: #{custom-call.2} parent=343 // pred_region
            loop: start=0, step=1, limit=1
            $region353: #{custom-call.2} parent=351 // loop_pre_header
              _
            $region354: #{custom-call.2} parent=351 // loop_header
              %s1162 = sphi 0, %s1166
              %p1163 = scmp.ge.s32.totalorder %s1162, 1
              %s1167 = sphi %s975, %s975
              %s1168 = sphi %s1153, %s1153
            $region355: #{custom-call.2} parent=351 // loop_header_branch
              %1165 = sbr.rel (%p1163) target = $region359
            $region356: #{custom-call.2} parent=351 // loop_body
              %v1169 = vld [vmem:[%s1167] sm:$0xff]
              %1170 = vst [vmem:[%s1168] sm:$0xff] %v1169
            $region357: #{custom-call.2} parent=351 // loop_footer
              %s1166 = sadd.s32 1, %s1162
            $region358: #{custom-call.2} parent=351 // loop_footer_branch
              %1161 = sbr.rel target = $region354
            $region359: #{custom-call.2} parent=351 // loop_exit
              _
          $region352: #{custom-call.2} parent=343 // pred_fallthru
            _
        $region344: #{custom-call.2} parent=155 // pred_fallthru
          _
        %1185 = vnop
      $region156: #{custom-call.2} parent=5 // pred_fallthru
        _
      %p1186 = scmp.le.s32.totalorder 2, %s12
      // Predicated region
      $region375: #{custom-call.2} parent=5 // pred_check
        %p1187 = pneg %p1186
      $region376: #{custom-call.2} parent=5 // pred_check_branch
        %1189 = sbr.rel (%p1187) target = $region378
      $region377: #{custom-call.2} parent=5 // pred_region
        %s1190 = ssub.s32 %s12, 2
        // Predicated region
        $region379: #{custom-call.2} parent=377 // pred_check
          %p1191 = pneg %p43
        $region380: #{custom-call.2} parent=377 // pred_check_branch
          %1193 = sbr.rel (%p1191) target = $region382
        $region381: #{custom-call.2} parent=377 // pred_region
          %s1194 = sand.u32 %s28, 1
          %s1195 = sand.u32 %s28, 1
          %s1196 = smul.addr %s1195, 2
          %s1197 = scalar_lea.vmem [#allocation5], %s1196
        $region382: #{custom-call.2} parent=377 // pred_fallthru
          _
        // Predicated region
        $region383: #{custom-call.2} parent=377 // pred_check
          %p1198 = pneg %p71
        $region384: #{custom-call.2} parent=377 // pred_check_branch
          %1200 = sbr.rel (%p1198) target = $region386
        $region385: #{custom-call.2} parent=377 // pred_region
          %s1201 = sand.u32 %s56, 1
          %s1202 = sand.u32 %s56, 1
          %s1203 = smul.addr %s1202, 2
          %s1204 = scalar_lea.vmem [#allocation7], %s1203
        $region386: #{custom-call.2} parent=377 // pred_fallthru
          _
        %s1205 = sand.u32 %s18, 1
        %s1206 = sand.u32 %s18, 1
        %s1207 = smul.addr %s1206, 8
        %s1208 = scalar_lea.vmem [#allocation8], %s1207
        %s1209 = sand.u32 %s18, 1
        %s1210 = sand.u32 %s18, 1
        %s1211 = smul.addr %s1210, 8
        %s1212 = scalar_lea.vmem [#allocation9], %s1211
        %s1213 = sand.u32 %s18, 1
        %s1214 = sand.u32 %s18, 1
        %s1215 = smul.addr %s1214, 8
        %s1216 = scalar_lea.vmem [#allocation10], %s1215
        %s1217 = sand.u32 %s18, 1
        %s1218 = sand.u32 %s18, 1
        %s1219 = smul.addr %s1218, 8
        %s1220 = scalar_lea.vmem [#allocation11], %s1219
      $region378: #{custom-call.2} parent=5 // pred_fallthru
        _
    $region6: #{custom-call.2} parent=1 // loop_footer
      %s16 = sadd.s32 1, %s12
    $region7: #{custom-call.2} parent=1 // loop_footer_branch
      %11 = sbr.rel target = $region3
    $region8: #{custom-call.2} parent=1 // loop_exit
      _

// kernel: sgsc_forward.4
$region0: #{sgsc_forward.4}
  #allocation0 [shape = 'u32[]', space=smem, size = 0x4, offset = 0x4, fixed_abs, tag = 'smem constant byte address 0x4 - core index']
  #allocation1 [shape = 'u32[144,128]{1,0:T(1,128)}', space=vmem, size = 0x12000, scoped, tag = 'internal scratch']
  %s0 = inlined_call_operand.vmem [shape: f32[2,1,16], index: 0, kind: input, shape index: {}]
  %s1 = inlined_call_operand.vmem [shape: f32[2,16,16], index: 1, kind: input, shape index: {}]
  %s2 = inlined_call_operand.vmem [shape: f32[2,16,64], index: 2, kind: input, shape index: {}]
  %s3 = inlined_call_operand.vmem [shape: f32[2,16,16], index: 3, kind: output, shape index: {}]
  %s4 = sld [smem:[#allocation0]]
  $region22: #{sgsc_forward.4} parent=0
    _
  %s6 = ssub.s32 1, %s4
  %s7 = scalar_select 0, %s6, %s4
  // Predicated region
  $region2: #{sgsc_forward.4} parent=0 // pred_check
    _
  $region3: #{sgsc_forward.4} parent=0 // pred_check_branch
    %9 = sbr.rel (0) target = $region5
  $region4: #{sgsc_forward.4} parent=0 // pred_region
    _
  $region5: #{sgsc_forward.4} parent=0 // pred_fallthru
    _
  // Predicated region
  $region6: #{sgsc_forward.4} parent=0 // pred_check
    _
  $region7: #{sgsc_forward.4} parent=0 // pred_check_branch
    %11 = sbr.rel (0) target = $region9
  $region8: #{sgsc_forward.4} parent=0 // pred_region
    _
  $region9: #{sgsc_forward.4} parent=0 // pred_fallthru
    _
  // Predicated region
  $region10: #{sgsc_forward.4} parent=0 // pred_check
    _
  $region11: #{sgsc_forward.4} parent=0 // pred_check_branch
    %13 = sbr.rel (0) target = $region13
  $region12: #{sgsc_forward.4} parent=0 // pred_region
    _
  $region13: #{sgsc_forward.4} parent=0 // pred_fallthru
    _
  %v14 = vld [vmem:[%s0] sm:$0x1]
  %vm15 = vcmp.ge.f32.partialorder %v14, 0.0
  %v16 = vmul.f32 %v14, 0.01
  %v17 = vsel %vm15, %v14, %v16
  %v18 = vadd.f32 %v17, 0.1
  %v19 = vrsqrt.pop %v18
  %v20 = vmul.f32 %v19, 0.02
  %v21 = vld [vmem:[%s1] sm:$0xff]
  %v22 = vld [vmem:[%s1 + $0x8] sm:$0xff]
  %v24 = vlaneseq
  %v25 = vshrl.u32 %v24, 7
  %v26 = vsub.s32 0, %v25
  %v27 = vrot.slane %v20, %v26
  %v29 = vmul.f32 %v21, %v27
  %v30 = vmul.f32 %v22, %v27
  %vm31 = vcmask 130048
  %v33 = vsel %vm31, %v29, 0
  %v36 = vsel %vm31, %v30, 0
  %v39 = vsel %vm31, %v21, 0
  %v42 = vsel %vm31, %v22, 0
  %44 = vmatprep.subr.mxu0 0.0
  %45 = vmatpush1.xpose.msra.mxu0 %v39
  %46 = vmatprep.subr.mxu0 0.0
  %47 = vmatpush1.xpose.msra.mxu0 %v42
  %48 = vmatprep.subr.mxu0 0.0
  %49 = vmatpush1.xpose.msra.mxu0 0.0
  %50 = vmatprep.subr.mxu0 0.0
  %51 = vmatpush1.xpose.msra.mxu0 0.0
  %52 = vmatprep.subr.mxu0 0.0
  %53 = vmatpush1.xpose.msra.mxu0 0.0
  %54 = vmatprep.subr.mxu0 0.0
  %55 = vmatpush1.xpose.msra.mxu0 0.0
  %56 = vmatprep.subr.mxu0 0.0
  %57 = vmatpush1.xpose.msra.mxu0 0.0
  %58 = vmatprep.subr.mxu0 0.0
  %59 = vmatpush1.xpose.msra.mxu0 0.0
  %60 = vmatprep.subr.mxu0 0.0
  %61 = vmatpush1.xpose.msra.mxu0 0.0
  %62 = vmatprep.subr.mxu0 0.0
  %63 = vmatpush1.xpose.msra.mxu0 0.0
  %64 = vmatprep.subr.mxu0 0.0
  %65 = vmatpush1.xpose.msra.mxu0 0.0
  %66 = vmatprep.subr.mxu0 0.0
  %67 = vmatpush1.xpose.msra.mxu0 0.0
  %68 = vmatprep.subr.mxu0 0.0
  %69 = vmatpush1.xpose.msra.mxu0 0.0
  %70 = vmatprep.subr.mxu0 0.0
  %71 = vmatpush1.xpose.msra.mxu0 0.0
  %72 = vmatprep.subr.mxu0 0.0
  %73 = vmatpush1.xpose.msra.mxu0 0.0
  %74 = vmatprep.subr.mxu0 0.0
  %75 = vmatpush1.xpose.msra.mxu0 0.0
  %76 = vmatprep.subr.mxu0 0.0
  %77 = vmatpush1.xpose.msra.mxu0 0.0
  %78 = vmatprep.subr.mxu0 0.0
  %79 = vmatpush1.xpose.msra.mxu0 0.0
  %80 = vmatprep.subr.mxu0 0.0
  %81 = vmatpush1.xpose.msra.mxu0 0.0
  %82 = vmatprep.subr.mxu0 0.0
  %83 = vmatpush1.xpose.msra.mxu0 0.0
  %84 = vmatprep.subr.mxu0 0.0
  %85 = vmatpush1.xpose.msra.mxu0 0.0
  %86 = vmatprep.subr.mxu0 0.0
  %87 = vmatpush1.xpose.msra.mxu0 0.0
  %88 = vmatprep.subr.mxu0 0.0
  %89 = vmatpush1.xpose.msra.mxu0 0.0
  %90 = vmatprep.subr.mxu0 0.0
  %91 = vmatpush1.xpose.msra.mxu0 0.0
  %92 = vmatprep.subr.mxu0 0.0
  %93 = vmatpush1.xpose.msra.mxu0 0.0
  %94 = vmatprep.subr.mxu0 0.0
  %95 = vmatpush1.xpose.msra.mxu0 0.0
  %96 = vmatprep.subr.mxu0 0.0
  %97 = vmatpush1.xpose.msra.mxu0 0.0
  %98 = vmatprep.subr.mxu0 0.0
  %99 = vmatpush1.xpose.msra.mxu0 0.0
  %100 = vmatprep.subr.mxu0 0.0
  %101 = vmatpush1.xpose.msra.mxu0 0.0
  %102 = vmatprep.subr.mxu0 0.0
  %103 = vmatpush1.xpose.msra.mxu0 0.0
  %104 = vmatprep.subr.mxu0 0.0
  %105 = vmatpush1.xpose.msra.mxu0 0.0
  %106 = vmatprep.subr.mxu0 0.0
  %107 = vmatpush1.xpose.msra.mxu0 0.0
  %108 = vmatprep.mubr.f32.mxu0 0.0
  %109 = vmatmul.mubr.f32.gmra.mrb[0].mxu0 %v33
  %v110 = vpop.f32.mrb[0].mxu0
  %v111 = vadd.f32 0.0, %v110
  %v112 = vpop.f32.mrb[0].mxu0
  %113 = vmatprep.mubr.f32.mxu0 0.0
  %114 = vmatmul.mubr.f32.gmra.mrb[0].mxu0 %v36
  %v115 = vpop.f32.mrb[0].mxu0
  %v116 = vadd.f32 0.0, %v115
  %v117 = vpop.f32.mrb[0].mxu0
  %118 = vdwg.mxu0
  %v119 = vld [vmem:[%s2] sm:$0xff]
  %v120 = vld [vmem:[%s2 + $0x8] sm:$0xff]
  %123 = vrot.lane.b32.xlu0 %v119, 112
  %v124 = vpop.permute.xlu0 %123
  %125 = vrot.lane.b32.xlu0 %v120, 112
  %v126 = vpop.permute.xlu0 %125
  %v129 = vadd.f32 %v119, %v124
  %v130 = vadd.f32 %v120, %v126
  %131 = vxpose.xlu0.b32.start [1/16] %v111, 128
  %132 = vxpose.xlu0.b32.cont [2/16] %v116, 128
  %133 = vxpose.xlu0.b32.cont [3/16] 0.0, 128
  %134 = vxpose.xlu0.b32.cont [4/16] 0.0, 128
  %135 = vxpose.xlu0.b32.cont [5/16] 0.0, 128
  %136 = vxpose.xlu0.b32.cont [6/16] 0.0, 128
  %137 = vxpose.xlu0.b32.cont [7/16] 0.0, 128
  %138 = vxpose.xlu0.b32.cont [8/16] 0.0, 128
  %139 = vxpose.xlu0.b32.cont [9/16] 0.0, 128
  %140 = vxpose.xlu0.b32.cont [10/16] 0.0, 128
  %141 = vxpose.xlu0.b32.cont [11/16] 0.0, 128
  %142 = vxpose.xlu0.b32.cont [12/16] 0.0, 128
  %143 = vxpose.xlu0.b32.cont [13/16] 0.0, 128
  %144 = vxpose.xlu0.b32.cont [14/16] 0.0, 128
  %145 = vxpose.xlu0.b32.cont [15/16] 0.0, 128
  %146 = vxpose.xlu0.b32.end [16/16] 0.0, 128
  %v147 = vpop.trf.xlu0
  %v148 = vpop.trf.xlu0
  %v149 = vpop.trf.xlu0
  %v150 = vpop.trf.xlu0
  %v151 = vpop.trf.xlu0
  %v152 = vpop.trf.xlu0
  %v153 = vpop.trf.xlu0
  %v154 = vpop.trf.xlu0
  %v155 = vpop.trf.xlu0
  %v156 = vpop.trf.xlu0
  %v157 = vpop.trf.xlu0
  %v158 = vpop.trf.xlu0
  %v159 = vpop.trf.xlu0
  %v160 = vpop.trf.xlu0
  %v161 = vpop.trf.xlu0
  %v162 = vpop.trf.xlu0
  %v164 = vsel %vm31, %v147, 0
  %v167 = vsel %vm31, %v148, 0
  %169 = vmatprep.subr.mxu0 0.0
  %170 = vmatpush1.msra.mxu0 %v129
  %171 = vmatprep.subr.mxu0 0.0
  %172 = vmatpush1.msra.mxu0 %v130
  %173 = vmatprep.subr.mxu0 0.0
  %174 = vmatpush1.msra.mxu0 0.0
  %175 = vmatprep.subr.mxu0 0.0
  %176 = vmatpush1.msra.mxu0 0.0
  %177 = vmatprep.subr.mxu0 0.0
  %178 = vmatpush1.msra.mxu0 0.0
  %179 = vmatprep.subr.mxu0 0.0
  %180 = vmatpush1.msra.mxu0 0.0
  %181 = vmatprep.subr.mxu0 0.0
  %182 = vmatpush1.msra.mxu0 0.0
  %183 = vmatprep.subr.mxu0 0.0
  %184 = vmatpush1.msra.mxu0 0.0
  %185 = vmatprep.subr.mxu0 0.0
  %186 = vmatpush1.msra.mxu0 0.0
  %187 = vmatprep.subr.mxu0 0.0
  %188 = vmatpush1.msra.mxu0 0.0
  %189 = vmatprep.subr.mxu0 0.0
  %190 = vmatpush1.msra.mxu0 0.0
  %191 = vmatprep.subr.mxu0 0.0
  %192 = vmatpush1.msra.mxu0 0.0
  %193 = vmatprep.subr.mxu0 0.0
  %194 = vmatpush1.msra.mxu0 0.0
  %195 = vmatprep.subr.mxu0 0.0
  %196 = vmatpush1.msra.mxu0 0.0
  %197 = vmatprep.subr.mxu0 0.0
  %198 = vmatpush1.msra.mxu0 0.0
  %199 = vmatprep.subr.mxu0 0.0
  %200 = vmatpush1.msra.mxu0 0.0
  %201 = vmatprep.subr.mxu0 0.0
  %202 = vmatpush1.msra.mxu0 0.0
  %203 = vmatprep.subr.mxu0 0.0
  %204 = vmatpush1.msra.mxu0 0.0
  %205 = vmatprep.subr.mxu0 0.0
  %206 = vmatpush1.msra.mxu0 0.0
  %207 = vmatprep.subr.mxu0 0.0
  %208 = vmatpush1.msra.mxu0 0.0
  %209 = vmatprep.subr.mxu0 0.0
  %210 = vmatpush1.msra.mxu0 0.0
  %211 = vmatprep.subr.mxu0 0.0
  %212 = vmatpush1.msra.mxu0 0.0
  %213 = vmatprep.subr.mxu0 0.0
  %214 = vmatpush1.msra.mxu0 0.0
  %215 = vmatprep.subr.mxu0 0.0
  %216 = vmatpush1.msra.mxu0 0.0
  %217 = vmatprep.subr.mxu0 0.0
  %218 = vmatpush1.msra.mxu0 0.0
  %219 = vmatprep.subr.mxu0 0.0
  %220 = vmatpush1.msra.mxu0 0.0
  %221 = vmatprep.subr.mxu0 0.0
  %222 = vmatpush1.msra.mxu0 0.0
  %223 = vmatprep.subr.mxu0 0.0
  %224 = vmatpush1.msra.mxu0 0.0
  %225 = vmatprep.subr.mxu0 0.0
  %226 = vmatpush1.msra.mxu0 0.0
  %227 = vmatprep.subr.mxu0 0.0
  %228 = vmatpush1.msra.mxu0 0.0
  %229 = vmatprep.subr.mxu0 0.0
  %230 = vmatpush1.msra.mxu0 0.0
  %231 = vmatprep.subr.mxu0 0.0
  %232 = vmatpush1.msra.mxu0 0.0
  %233 = vmatprep.mubr.f32.mxu0 0.0
  %234 = vmatmul.mubr.f32.gmra.mrb[0].mxu0 %v164
  %v235 = vpop.f32.mrb[0].mxu0
  %v236 = vadd.f32 0.0, %v235
  %v237 = vpop.f32.mrb[0].mxu0
  %238 = vmatprep.mubr.f32.mxu0 0.0
  %239 = vmatmul.mubr.f32.gmra.mrb[0].mxu0 %v167
  %v240 = vpop.f32.mrb[0].mxu0
  %v241 = vadd.f32 0.0, %v240
  %v242 = vpop.f32.mrb[0].mxu0
  %243 = vdwg.mxu0
  %v245 = vsel %vm31, %v236, 0
  %v248 = vsel %vm31, %v241, 0
  %250 = vmatprep.subr.mxu0 0.0
  %251 = vmatpush1.msra.mxu0 %v111
  %252 = vmatprep.subr.mxu0 0.0
  %253 = vmatpush1.msra.mxu0 %v116
  %254 = vmatprep.subr.mxu0 0.0
  %255 = vmatpush1.msra.mxu0 0.0
  %256 = vmatprep.subr.mxu0 0.0
  %257 = vmatpush1.msra.mxu0 0.0
  %258 = vmatprep.subr.mxu0 0.0
  %259 = vmatpush1.msra.mxu0 0.0
  %260 = vmatprep.subr.mxu0 0.0
  %261 = vmatpush1.msra.mxu0 0.0
  %262 = vmatprep.subr.mxu0 0.0
  %263 = vmatpush1.msra.mxu0 0.0
  %264 = vmatprep.subr.mxu0 0.0
  %265 = vmatpush1.msra.mxu0 0.0
  %266 = vmatprep.subr.mxu0 0.0
  %267 = vmatpush1.msra.mxu0 0.0
  %268 = vmatprep.subr.mxu0 0.0
  %269 = vmatpush1.msra.mxu0 0.0
  %270 = vmatprep.subr.mxu0 0.0
  %271 = vmatpush1.msra.mxu0 0.0
  %272 = vmatprep.subr.mxu0 0.0
  %273 = vmatpush1.msra.mxu0 0.0
  %274 = vmatprep.subr.mxu0 0.0
  %275 = vmatpush1.msra.mxu0 0.0
  %276 = vmatprep.subr.mxu0 0.0
  %277 = vmatpush1.msra.mxu0 0.0
  %278 = vmatprep.subr.mxu0 0.0
  %279 = vmatpush1.msra.mxu0 0.0
  %280 = vmatprep.subr.mxu0 0.0
  %281 = vmatpush1.msra.mxu0 0.0
  %282 = vmatprep.subr.mxu0 0.0
  %283 = vmatpush1.msra.mxu0 0.0
  %284 = vmatprep.subr.mxu0 0.0
  %285 = vmatpush1.msra.mxu0 0.0
  %286 = vmatprep.subr.mxu0 0.0
  %287 = vmatpush1.msra.mxu0 0.0
  %288 = vmatprep.subr.mxu0 0.0
  %289 = vmatpush1.msra.mxu0 0.0
  %290 = vmatprep.subr.mxu0 0.0
  %291 = vmatpush1.msra.mxu0 0.0
  %292 = vmatprep.subr.mxu0 0.0
  %293 = vmatpush1.msra.mxu0 0.0
  %294 = vmatprep.subr.mxu0 0.0
  %295 = vmatpush1.msra.mxu0 0.0
  %296 = vmatprep.subr.mxu0 0.0
  %297 = vmatpush1.msra.mxu0 0.0
  %298 = vmatprep.subr.mxu0 0.0
  %299 = vmatpush1.msra.mxu0 0.0
  %300 = vmatprep.subr.mxu0 0.0
  %301 = vmatpush1.msra.mxu0 0.0
  %302 = vmatprep.subr.mxu0 0.0
  %303 = vmatpush1.msra.mxu0 0.0
  %304 = vmatprep.subr.mxu0 0.0
  %305 = vmatpush1.msra.mxu0 0.0
  %306 = vmatprep.subr.mxu0 0.0
  %307 = vmatpush1.msra.mxu0 0.0
  %308 = vmatprep.subr.mxu0 0.0
  %309 = vmatpush1.msra.mxu0 0.0
  %310 = vmatprep.subr.mxu0 0.0
  %311 = vmatpush1.msra.mxu0 0.0
  %312 = vmatprep.subr.mxu0 0.0
  %313 = vmatpush1.msra.mxu0 0.0
  %314 = vmatprep.mubr.f32.mxu0 0.0
  %315 = vmatmul.mubr.f32.gmra.mrb[0].mxu0 %v245
  %v316 = vpop.f32.mrb[0].mxu0
  %v317 = vadd.f32 0.0, %v316
  %v318 = vpop.f32.mrb[0].mxu0
  %319 = vmatprep.mubr.f32.mxu0 0.0
  %320 = vmatmul.mubr.f32.gmra.mrb[0].mxu0 %v248
  %v321 = vpop.f32.mrb[0].mxu0
  %v322 = vadd.f32 0.0, %v321
  %v323 = vpop.f32.mrb[0].mxu0
  %324 = vdwg.mxu0
  %vm325 = vcmp.ne.f32.partialorder %v317, %v317
  %vm326 = vcmp.ne.f32.partialorder %v322, %v322
  %v327 = vmax.f32 %v317, -1e+10
  %v328 = vmax.f32 %v322, -1e+10
  %v329 = vmin.f32 %v327, 1e+10
  %v330 = vmin.f32 %v328, 1e+10
  %v331 = vsel %vm325, 0.0, %v329
  %v332 = vsel %vm326, 0.0, %v330
  %333 = vst.msk [vmem:[%s3] sm:$0xff] %vm31, %v331
  %334 = vst.msk [vmem:[%s3 + $0x8] sm:$0xff] %vm31, %v332
  %s335 = scalar_lea.vmem %s0, 1
  %v336 = vld [vmem:[%s335] sm:$0x1]
  %vm337 = vcmp.ge.f32.partialorder %v336, 0.0
  %v338 = vmul.f32 %v336, 0.01
  %v339 = vsel %vm337, %v336, %v338
  %v340 = vadd.f32 %v339, 0.1
  %v341 = vrsqrt.pop %v340
  %v342 = vmul.f32 %v341, 0.02
  %s343 = scalar_lea.vmem %s1, 16
  %v344 = vld [vmem:[%s343] sm:$0xff]
  %v345 = vld [vmem:[%s343 + $0x8] sm:$0xff]
  %v347 = vlaneseq
  %v348 = vshrl.u32 %v347, 7
  %v349 = vsub.s32 0, %v348
  %v350 = vrot.slane %v342, %v349
  %v352 = vmul.f32 %v344, %v350
  %v353 = vmul.f32 %v345, %v350
  %v355 = vsel %vm31, %v352, 0
  %v358 = vsel %vm31, %v353, 0
  %v361 = vsel %vm31, %v344, 0
  %v364 = vsel %vm31, %v345, 0
  %366 = vmatprep.subr.mxu0 0.0
  %367 = vmatpush1.xpose.msra.mxu0 %v361
  %368 = vmatprep.subr.mxu0 0.0
  %369 = vmatpush1.xpose.msra.mxu0 %v364
  %370 = vmatprep.subr.mxu0 0.0
  %371 = vmatpush1.xpose.msra.mxu0 0.0
  %372 = vmatprep.subr.mxu0 0.0
  %373 = vmatpush1.xpose.msra.mxu0 0.0
  %374 = vmatprep.subr.mxu0 0.0
  %375 = vmatpush1.xpose.msra.mxu0 0.0
  %376 = vmatprep.subr.mxu0 0.0
  %377 = vmatpush1.xpose.msra.mxu0 0.0
  %378 = vmatprep.subr.mxu0 0.0
  %379 = vmatpush1.xpose.msra.mxu0 0.0
  %380 = vmatprep.subr.mxu0 0.0
  %381 = vmatpush1.xpose.msra.mxu0 0.0
  %382 = vmatprep.subr.mxu0 0.0
  %383 = vmatpush1.xpose.msra.mxu0 0.0
  %384 = vmatprep.subr.mxu0 0.0
  %385 = vmatpush1.xpose.msra.mxu0 0.0
  %386 = vmatprep.subr.mxu0 0.0
  %387 = vmatpush1.xpose.msra.mxu0 0.0
  %388 = vmatprep.subr.mxu0 0.0
  %389 = vmatpush1.xpose.msra.mxu0 0.0
  %390 = vmatprep.subr.mxu0 0.0
  %391 = vmatpush1.xpose.msra.mxu0 0.0
  %392 = vmatprep.subr.mxu0 0.0
  %393 = vmatpush1.xpose.msra.mxu0 0.0
  %394 = vmatprep.subr.mxu0 0.0
  %395 = vmatpush1.xpose.msra.mxu0 0.0
  %396 = vmatprep.subr.mxu0 0.0
  %397 = vmatpush1.xpose.msra.mxu0 0.0
  %398 = vmatprep.subr.mxu0 0.0
  %399 = vmatpush1.xpose.msra.mxu0 0.0
  %400 = vmatprep.subr.mxu0 0.0
  %401 = vmatpush1.xpose.msra.mxu0 0.0
  %402 = vmatprep.subr.mxu0 0.0
  %403 = vmatpush1.xpose.msra.mxu0 0.0
  %404 = vmatprep.subr.mxu0 0.0
  %405 = vmatpush1.xpose.msra.mxu0 0.0
  %406 = vmatprep.subr.mxu0 0.0
  %407 = vmatpush1.xpose.msra.mxu0 0.0
  %408 = vmatprep.subr.mxu0 0.0
  %409 = vmatpush1.xpose.msra.mxu0 0.0
  %410 = vmatprep.subr.mxu0 0.0
  %411 = vmatpush1.xpose.msra.mxu0 0.0
  %412 = vmatprep.subr.mxu0 0.0
  %413 = vmatpush1.xpose.msra.mxu0 0.0
  %414 = vmatprep.subr.mxu0 0.0
  %415 = vmatpush1.xpose.msra.mxu0 0.0
  %416 = vmatprep.subr.mxu0 0.0
  %417 = vmatpush1.xpose.msra.mxu0 0.0
  %418 = vmatprep.subr.mxu0 0.0
  %419 = vmatpush1.xpose.msra.mxu0 0.0
  %420 = vmatprep.subr.mxu0 0.0
  %421 = vmatpush1.xpose.msra.mxu0 0.0
  %422 = vmatprep.subr.mxu0 0.0
  %423 = vmatpush1.xpose.msra.mxu0 0.0
  %424 = vmatprep.subr.mxu0 0.0
  %425 = vmatpush1.xpose.msra.mxu0 0.0
  %426 = vmatprep.subr.mxu0 0.0
  %427 = vmatpush1.xpose.msra.mxu0 0.0
  %428 = vmatprep.subr.mxu0 0.0
  %429 = vmatpush1.xpose.msra.mxu0 0.0
  %430 = vmatprep.mubr.f32.mxu0 0.0
  %431 = vmatmul.mubr.f32.gmra.mrb[0].mxu0 %v355
  %v432 = vpop.f32.mrb[0].mxu0
  %v433 = vadd.f32 0.0, %v432
  %v434 = vpop.f32.mrb[0].mxu0
  %435 = vmatprep.mubr.f32.mxu0 0.0
  %436 = vmatmul.mubr.f32.gmra.mrb[0].mxu0 %v358
  %v437 = vpop.f32.mrb[0].mxu0
  %v438 = vadd.f32 0.0, %v437
  %v439 = vpop.f32.mrb[0].mxu0
  %440 = vdwg.mxu0
  %s441 = scalar_lea.vmem %s2, 16
  %v442 = vld [vmem:[%s441] sm:$0xff]
  %v443 = vld [vmem:[%s441 + $0x8] sm:$0xff]
  %446 = vrot.lane.b32.xlu0 %v442, 112
  %v447 = vpop.permute.xlu0 %446
  %448 = vrot.lane.b32.xlu0 %v443, 112
  %v449 = vpop.permute.xlu0 %448
  %v452 = vadd.f32 %v442, %v447
  %v453 = vadd.f32 %v443, %v449
  %454 = vxpose.xlu0.b32.start [1/16] %v433, 128
  %455 = vxpose.xlu0.b32.cont [2/16] %v438, 128
  %456 = vxpose.xlu0.b32.cont [3/16] 0.0, 128
  %457 = vxpose.xlu0.b32.cont [4/16] 0.0, 128
  %458 = vxpose.xlu0.b32.cont [5/16] 0.0, 128
  %459 = vxpose.xlu0.b32.cont [6/16] 0.0, 128
  %460 = vxpose.xlu0.b32.cont [7/16] 0.0, 128
  %461 = vxpose.xlu0.b32.cont [8/16] 0.0, 128
  %462 = vxpose.xlu0.b32.cont [9/16] 0.0, 128
  %463 = vxpose.xlu0.b32.cont [10/16] 0.0, 128
  %464 = vxpose.xlu0.b32.cont [11/16] 0.0, 128
  %465 = vxpose.xlu0.b32.cont [12/16] 0.0, 128
  %466 = vxpose.xlu0.b32.cont [13/16] 0.0, 128
  %467 = vxpose.xlu0.b32.cont [14/16] 0.0, 128
  %468 = vxpose.xlu0.b32.cont [15/16] 0.0, 128
  %469 = vxpose.xlu0.b32.end [16/16] 0.0, 128
  %v470 = vpop.trf.xlu0
  %v471 = vpop.trf.xlu0
  %v472 = vpop.trf.xlu0
  %v473 = vpop.trf.xlu0
  %v474 = vpop.trf.xlu0
  %v475 = vpop.trf.xlu0
  %v476 = vpop.trf.xlu0
  %v477 = vpop.trf.xlu0
  %v478 = vpop.trf.xlu0
  %v479 = vpop.trf.xlu0
  %v480 = vpop.trf.xlu0
  %v481 = vpop.trf.xlu0
  %v482 = vpop.trf.xlu0
  %v483 = vpop.trf.xlu0
  %v484 = vpop.trf.xlu0
  %v485 = vpop.trf.xlu0
  %v487 = vsel %vm31, %v470, 0
  %v490 = vsel %vm31, %v471, 0
  %492 = vmatprep.subr.mxu0 0.0
  %493 = vmatpush1.msra.mxu0 %v452
  %494 = vmatprep.subr.mxu0 0.0
  %495 = vmatpush1.msra.mxu0 %v453
  %496 = vmatprep.subr.mxu0 0.0
  %497 = vmatpush1.msra.mxu0 0.0
  %498 = vmatprep.subr.mxu0 0.0
  %499 = vmatpush1.msra.mxu0 0.0
  %500 = vmatprep.subr.mxu0 0.0
  %501 = vmatpush1.msra.mxu0 0.0
  %502 = vmatprep.subr.mxu0 0.0
  %503 = vmatpush1.msra.mxu0 0.0
  %504 = vmatprep.subr.mxu0 0.0
  %505 = vmatpush1.msra.mxu0 0.0
  %506 = vmatprep.subr.mxu0 0.0
  %507 = vmatpush1.msra.mxu0 0.0
  %508 = vmatprep.subr.mxu0 0.0
  %509 = vmatpush1.msra.mxu0 0.0
  %510 = vmatprep.subr.mxu0 0.0
  %511 = vmatpush1.msra.mxu0 0.0
  %512 = vmatprep.subr.mxu0 0.0
  %513 = vmatpush1.msra.mxu0 0.0
  %514 = vmatprep.subr.mxu0 0.0
  %515 = vmatpush1.msra.mxu0 0.0
  %516 = vmatprep.subr.mxu0 0.0
  %517 = vmatpush1.msra.mxu0 0.0
  %518 = vmatprep.subr.mxu0 0.0
  %519 = vmatpush1.msra.mxu0 0.0
  %520 = vmatprep.subr.mxu0 0.0
  %521 = vmatpush1.msra.mxu0 0.0
  %522 = vmatprep.subr.mxu0 0.0
  %523 = vmatpush1.msra.mxu0 0.0
  %524 = vmatprep.subr.mxu0 0.0
  %525 = vmatpush1.msra.mxu0 0.0
  %526 = vmatprep.subr.mxu0 0.0
  %527 = vmatpush1.msra.mxu0 0.0
  %528 = vmatprep.subr.mxu0 0.0
  %529 = vmatpush1.msra.mxu0 0.0
  %530 = vmatprep.subr.mxu0 0.0
  %531 = vmatpush1.msra.mxu0 0.0
  %532 = vmatprep.subr.mxu0 0.0
  %533 = vmatpush1.msra.mxu0 0.0
  %534 = vmatprep.subr.mxu0 0.0
  %535 = vmatpush1.msra.mxu0 0.0
  %536 = vmatprep.subr.mxu0 0.0
  %537 = vmatpush1.msra.mxu0 0.0
  %538 = vmatprep.subr.mxu0 0.0
  %539 = vmatpush1.msra.mxu0 0.0
  %540 = vmatprep.subr.mxu0 0.0
  %541 = vmatpush1.msra.mxu0 0.0
  %542 = vmatprep.subr.mxu0 0.0
  %543 = vmatpush1.msra.mxu0 0.0
  %544 = vmatprep.subr.mxu0 0.0
  %545 = vmatpush1.msra.mxu0 0.0
  %546 = vmatprep.subr.mxu0 0.0
  %547 = vmatpush1.msra.mxu0 0.0
  %548 = vmatprep.subr.mxu0 0.0
  %549 = vmatpush1.msra.mxu0 0.0
  %550 = vmatprep.subr.mxu0 0.0
  %551 = vmatpush1.msra.mxu0 0.0
  %552 = vmatprep.subr.mxu0 0.0
  %553 = vmatpush1.msra.mxu0 0.0
  %554 = vmatprep.subr.mxu0 0.0
  %555 = vmatpush1.msra.mxu0 0.0
  %556 = vmatprep.mubr.f32.mxu0 0.0
  %557 = vmatmul.mubr.f32.gmra.mrb[0].mxu0 %v487
  %v558 = vpop.f32.mrb[0].mxu0
  %v559 = vadd.f32 0.0, %v558
  %v560 = vpop.f32.mrb[0].mxu0
  %561 = vmatprep.mubr.f32.mxu0 0.0
  %562 = vmatmul.mubr.f32.gmra.mrb[0].mxu0 %v490
  %v563 = vpop.f32.mrb[0].mxu0
  %v564 = vadd.f32 0.0, %v563
  %v565 = vpop.f32.mrb[0].mxu0
  %566 = vdwg.mxu0
  %v568 = vsel %vm31, %v559, 0
  %v571 = vsel %vm31, %v564, 0
  %573 = vmatprep.subr.mxu0 0.0
  %574 = vmatpush1.msra.mxu0 %v433
  %575 = vmatprep.subr.mxu0 0.0
  %576 = vmatpush1.msra.mxu0 %v438
  %577 = vmatprep.subr.mxu0 0.0
  %578 = vmatpush1.msra.mxu0 0.0
  %579 = vmatprep.subr.mxu0 0.0
  %580 = vmatpush1.msra.mxu0 0.0
  %581 = vmatprep.subr.mxu0 0.0
  %582 = vmatpush1.msra.mxu0 0.0
  %583 = vmatprep.subr.mxu0 0.0
  %584 = vmatpush1.msra.mxu0 0.0
  %585 = vmatprep.subr.mxu0 0.0
  %586 = vmatpush1.msra.mxu0 0.0
  %587 = vmatprep.subr.mxu0 0.0
  %588 = vmatpush1.msra.mxu0 0.0
  %589 = vmatprep.subr.mxu0 0.0
  %590 = vmatpush1.msra.mxu0 0.0
  %591 = vmatprep.subr.mxu0 0.0
  %592 = vmatpush1.msra.mxu0 0.0
  %593 = vmatprep.subr.mxu0 0.0
  %594 = vmatpush1.msra.mxu0 0.0
  %595 = vmatprep.subr.mxu0 0.0
  %596 = vmatpush1.msra.mxu0 0.0
  %597 = vmatprep.subr.mxu0 0.0
  %598 = vmatpush1.msra.mxu0 0.0
  %599 = vmatprep.subr.mxu0 0.0
  %600 = vmatpush1.msra.mxu0 0.0
  %601 = vmatprep.subr.mxu0 0.0
  %602 = vmatpush1.msra.mxu0 0.0
  %603 = vmatprep.subr.mxu0 0.0
  %604 = vmatpush1.msra.mxu0 0.0
  %605 = vmatprep.subr.mxu0 0.0
  %606 = vmatpush1.msra.mxu0 0.0
  %607 = vmatprep.subr.mxu0 0.0
  %608 = vmatpush1.msra.mxu0 0.0
  %609 = vmatprep.subr.mxu0 0.0
  %610 = vmatpush1.msra.mxu0 0.0
  %611 = vmatprep.subr.mxu0 0.0
  %612 = vmatpush1.msra.mxu0 0.0
  %613 = vmatprep.subr.mxu0 0.0
  %614 = vmatpush1.msra.mxu0 0.0
  %615 = vmatprep.subr.mxu0 0.0
  %616 = vmatpush1.msra.mxu0 0.0
  %617 = vmatprep.subr.mxu0 0.0
  %618 = vmatpush1.msra.mxu0 0.0
  %619 = vmatprep.subr.mxu0 0.0
  %620 = vmatpush1.msra.mxu0 0.0
  %621 = vmatprep.subr.mxu0 0.0
  %622 = vmatpush1.msra.mxu0 0.0
  %623 = vmatprep.subr.mxu0 0.0
  %624 = vmatpush1.msra.mxu0 0.0
  %625 = vmatprep.subr.mxu0 0.0
  %626 = vmatpush1.msra.mxu0 0.0
  %627 = vmatprep.subr.mxu0 0.0
  %628 = vmatpush1.msra.mxu0 0.0
  %629 = vmatprep.subr.mxu0 0.0
  %630 = vmatpush1.msra.mxu0 0.0
  %631 = vmatprep.subr.mxu0 0.0
  %632 = vmatpush1.msra.mxu0 0.0
  %633 = vmatprep.subr.mxu0 0.0
  %634 = vmatpush1.msra.mxu0 0.0
  %635 = vmatprep.subr.mxu0 0.0
  %636 = vmatpush1.msra.mxu0 0.0
  %637 = vmatprep.mubr.f32.mxu0 0.0
  %638 = vmatmul.mubr.f32.gmra.mrb[0].mxu0 %v568
  %v639 = vpop.f32.mrb[0].mxu0
  %v640 = vadd.f32 0.0, %v639
  %v641 = vpop.f32.mrb[0].mxu0
  %642 = vmatprep.mubr.f32.mxu0 0.0
  %643 = vmatmul.mubr.f32.gmra.mrb[0].mxu0 %v571
  %v644 = vpop.f32.mrb[0].mxu0
  %v645 = vadd.f32 0.0, %v644
  %v646 = vpop.f32.mrb[0].mxu0
  %647 = vdwg.mxu0
  %vm648 = vcmp.ne.f32.partialorder %v640, %v640
  %vm649 = vcmp.ne.f32.partialorder %v645, %v645
  %v650 = vmax.f32 %v640, -1e+10
  %v651 = vmax.f32 %v645, -1e+10
  %v652 = vmin.f32 %v650, 1e+10
  %v653 = vmin.f32 %v651, 1e+10
  %v654 = vsel %vm648, 0.0, %v652
  %v655 = vsel %vm649, 0.0, %v653
  %s656 = scalar_lea.vmem %s3, 16
  %657 = vst.msk [vmem:[%s656] sm:$0xff] %vm31, %v654
  %658 = vst.msk [vmem:[%s656 + $0x8] sm:$0xff] %vm31, %v655
  // Predicated region
  $region14: #{sgsc_forward.4} parent=0 // pred_check
    _
  $region15: #{sgsc_forward.4} parent=0 // pred_check_branch
    %660 = sbr.rel (0) target = $region17
  $region16: #{sgsc_forward.4} parent=0 // pred_region
    _
  $region17: #{sgsc_forward.4} parent=0 // pred_fallthru
    _
  // Predicated region
  $region18: #{sgsc_forward.4} parent=0 // pred_check
    _
  $region19: #{sgsc_forward.4} parent=0 // pred_check_branch
    %662 = sbr.rel (0) target = $region21
  $region20: #{sgsc_forward.4} parent=0 // pred_region
    _
  $region21: #{sgsc_forward.4} parent=0 // pred_fallthru
    _

// kernel: sgsc_forward.3
$region0: #{sgsc_forward.3}
  #allocation0 [shape = 'u32[]', space=smem, size = 0x4, offset = 0x4, fixed_abs, tag = 'smem constant byte address 0x4 - core index']
  #allocation1 [shape = 'u32[144,128]{1,0:T(1,128)}', space=vmem, size = 0x12000, scoped, tag = 'internal scratch']
  %s0 = inlined_call_operand.vmem [shape: f32[2,8,8], index: 0, kind: input, shape index: {}]
  %s1 = inlined_call_operand.vmem [shape: f32[8,16], index: 1, kind: input, shape index: {}]
  %s2 = inlined_call_operand.vmem [shape: f32[1,8], index: 2, kind: input, shape index: {}]
  %s3 = inlined_call_operand.vmem [shape: f32[1,8], index: 3, kind: input, shape index: {}]
  %s4 = inlined_call_operand.vmem [shape: f32[16,16], index: 4, kind: input, shape index: {}]
  %s5 = inlined_call_operand.vmem [shape: f32[1,16], index: 5, kind: input, shape index: {}]
  %s6 = inlined_call_operand.vmem [shape: f32[16,16], index: 6, kind: input, shape index: {}]
  %s7 = inlined_call_operand.vmem [shape: f32[1,16], index: 7, kind: input, shape index: {}]
  %s8 = inlined_call_operand.vmem [shape: f32[2,16,64], index: 8, kind: output, shape index: {}]
  %s9 = sld [smem:[#allocation0]]
  $region42: #{sgsc_forward.3} parent=0
    _
  %s11 = ssub.s32 1, %s9
  %s12 = scalar_select 0, %s11, %s9
  // Predicated region
  $region2: #{sgsc_forward.3} parent=0 // pred_check
    _
  $region3: #{sgsc_forward.3} parent=0 // pred_check_branch
    %14 = sbr.rel (0) target = $region5
  $region4: #{sgsc_forward.3} parent=0 // pred_region
    _
  $region5: #{sgsc_forward.3} parent=0 // pred_fallthru
    _
  // Predicated region
  $region6: #{sgsc_forward.3} parent=0 // pred_check
    _
  $region7: #{sgsc_forward.3} parent=0 // pred_check_branch
    %16 = sbr.rel (0) target = $region9
  $region8: #{sgsc_forward.3} parent=0 // pred_region
    _
  $region9: #{sgsc_forward.3} parent=0 // pred_fallthru
    _
  // Predicated region
  $region10: #{sgsc_forward.3} parent=0 // pred_check
    _
  $region11: #{sgsc_forward.3} parent=0 // pred_check_branch
    %18 = sbr.rel (0) target = $region13
  $region12: #{sgsc_forward.3} parent=0 // pred_region
    _
  $region13: #{sgsc_forward.3} parent=0 // pred_fallthru
    _
  // Predicated region
  $region14: #{sgsc_forward.3} parent=0 // pred_check
    _
  $region15: #{sgsc_forward.3} parent=0 // pred_check_branch
    %20 = sbr.rel (0) target = $region17
  $region16: #{sgsc_forward.3} parent=0 // pred_region
    _
  $region17: #{sgsc_forward.3} parent=0 // pred_fallthru
    _
  // Predicated region
  $region18: #{sgsc_forward.3} parent=0 // pred_check
    _
  $region19: #{sgsc_forward.3} parent=0 // pred_check_branch
    %22 = sbr.rel (0) target = $region21
  $region20: #{sgsc_forward.3} parent=0 // pred_region
    _
  $region21: #{sgsc_forward.3} parent=0 // pred_fallthru
    _
  // Predicated region
  $region22: #{sgsc_forward.3} parent=0 // pred_check
    _
  $region23: #{sgsc_forward.3} parent=0 // pred_check_branch
    %24 = sbr.rel (0) target = $region25
  $region24: #{sgsc_forward.3} parent=0 // pred_region
    _
  $region25: #{sgsc_forward.3} parent=0 // pred_fallthru
    _
  // Predicated region
  $region26: #{sgsc_forward.3} parent=0 // pred_check
    _
  $region27: #{sgsc_forward.3} parent=0 // pred_check_branch
    %26 = sbr.rel (0) target = $region29
  $region28: #{sgsc_forward.3} parent=0 // pred_region
    _
  $region29: #{sgsc_forward.3} parent=0 // pred_fallthru
    _
  // Predicated region
  $region30: #{sgsc_forward.3} parent=0 // pred_check
    _
  $region31: #{sgsc_forward.3} parent=0 // pred_check_branch
    %28 = sbr.rel (0) target = $region33
  $region32: #{sgsc_forward.3} parent=0 // pred_region
    _
  $region33: #{sgsc_forward.3} parent=0 // pred_fallthru
    _
  %v29 = vld [vmem:[%s1] sm:$0xff]
  %v30 = vld [vmem:[%s2] sm:$0x1]
  %v31 = vld [vmem:[%s3] sm:$0x1]
  %v32 = vld [vmem:[%s4] sm:$0xff]
  %v33 = vld [vmem:[%s4 + $0x8] sm:$0xff]
  %v34 = vld [vmem:[%s5] sm:$0x1]
  %v35 = vld [vmem:[%s6] sm:$0xff]
  %v36 = vld [vmem:[%s6 + $0x8] sm:$0xff]
  %v37 = vld [vmem:[%s7] sm:$0x1]
  %vm38 = vcmask 523264
  %39 = vst.msk [vmem:[%s8] sm:$0xff] %vm38, 0.0
  %40 = vst.msk [vmem:[%s8 + $0x8] sm:$0xff] %vm38, 0.0
  %41 = vst.msk [vmem:[%s8 + $0x10] sm:$0xff] %vm38, 0.0
  %42 = vst.msk [vmem:[%s8 + $0x18] sm:$0xff] %vm38, 0.0
  %v43 = vld [vmem:[%s0] sm:$0xff]
  %44 = vxpose.xlu0.b32.start [1/16] %v29, 128
  %45 = vxpose.xlu0.b32.cont [2/16] 0.0, 128
  %46 = vxpose.xlu0.b32.cont [3/16] 0.0, 128
  %47 = vxpose.xlu0.b32.cont [4/16] 0.0, 128
  %48 = vxpose.xlu0.b32.cont [5/16] 0.0, 128
  %49 = vxpose.xlu0.b32.cont [6/16] 0.0, 128
  %50 = vxpose.xlu0.b32.cont [7/16] 0.0, 128
  %51 = vxpose.xlu0.b32.cont [8/16] 0.0, 128
  %52 = vxpose.xlu0.b32.cont [9/16] 0.0, 128
  %53 = vxpose.xlu0.b32.cont [10/16] 0.0, 128
  %54 = vxpose.xlu0.b32.cont [11/16] 0.0, 128
  %55 = vxpose.xlu0.b32.cont [12/16] 0.0, 128
  %56 = vxpose.xlu0.b32.cont [13/16] 0.0, 128
  %57 = vxpose.xlu0.b32.cont [14/16] 0.0, 128
  %58 = vxpose.xlu0.b32.cont [15/16] 0.0, 128
  %59 = vxpose.xlu0.b32.end [16/16] 0.0, 128
  %v60 = vpop.trf.xlu0
  %v61 = vpop.trf.xlu0
  %v62 = vpop.trf.xlu0
  %v63 = vpop.trf.xlu0
  %v64 = vpop.trf.xlu0
  %v65 = vpop.trf.xlu0
  %v66 = vpop.trf.xlu0
  %v67 = vpop.trf.xlu0
  %v68 = vpop.trf.xlu0
  %v69 = vpop.trf.xlu0
  %v70 = vpop.trf.xlu0
  %v71 = vpop.trf.xlu0
  %v72 = vpop.trf.xlu0
  %v73 = vpop.trf.xlu0
  %v74 = vpop.trf.xlu0
  %v75 = vpop.trf.xlu0
  %vm76 = vcmask 64512
  %v78 = vsel %vm76, %v60, 0
  %v81 = vsel %vm76, %v61, 0
  %83 = vmatprep.subr.mxu0 0.0
  %84 = vmatpush1.msra.mxu0 %v43
  %85 = vmatprep.subr.mxu0 0.0
  %86 = vmatpush1.msra.mxu0 0.0
  %87 = vmatprep.subr.mxu0 0.0
  %88 = vmatpush1.msra.mxu0 0.0
  %89 = vmatprep.subr.mxu0 0.0
  %90 = vmatpush1.msra.mxu0 0.0
  %91 = vmatprep.subr.mxu0 0.0
  %92 = vmatpush1.msra.mxu0 0.0
  %93 = vmatprep.subr.mxu0 0.0
  %94 = vmatpush1.msra.mxu0 0.0
  %95 = vmatprep.subr.mxu0 0.0
  %96 = vmatpush1.msra.mxu0 0.0
  %97 = vmatprep.subr.mxu0 0.0
  %98 = vmatpush1.msra.mxu0 0.0
  %99 = vmatprep.subr.mxu0 0.0
  %100 = vmatpush1.msra.mxu0 0.0
  %101 = vmatprep.subr.mxu0 0.0
  %102 = vmatpush1.msra.mxu0 0.0
  %103 = vmatprep.subr.mxu0 0.0
  %104 = vmatpush1.msra.mxu0 0.0
  %105 = vmatprep.subr.mxu0 0.0
  %106 = vmatpush1.msra.mxu0 0.0
  %107 = vmatprep.subr.mxu0 0.0
  %108 = vmatpush1.msra.mxu0 0.0
  %109 = vmatprep.subr.mxu0 0.0
  %110 = vmatpush1.msra.mxu0 0.0
  %111 = vmatprep.subr.mxu0 0.0
  %112 = vmatpush1.msra.mxu0 0.0
  %113 = vmatprep.subr.mxu0 0.0
  %114 = vmatpush1.msra.mxu0 0.0
  %115 = vmatprep.subr.mxu0 0.0
  %116 = vmatpush1.msra.mxu0 0.0
  %117 = vmatprep.subr.mxu0 0.0
  %118 = vmatpush1.msra.mxu0 0.0
  %119 = vmatprep.subr.mxu0 0.0
  %120 = vmatpush1.msra.mxu0 0.0
  %121 = vmatprep.subr.mxu0 0.0
  %122 = vmatpush1.msra.mxu0 0.0
  %123 = vmatprep.subr.mxu0 0.0
  %124 = vmatpush1.msra.mxu0 0.0
  %125 = vmatprep.subr.mxu0 0.0
  %126 = vmatpush1.msra.mxu0 0.0
  %127 = vmatprep.subr.mxu0 0.0
  %128 = vmatpush1.msra.mxu0 0.0
  %129 = vmatprep.subr.mxu0 0.0
  %130 = vmatpush1.msra.mxu0 0.0
  %131 = vmatprep.subr.mxu0 0.0
  %132 = vmatpush1.msra.mxu0 0.0
  %133 = vmatprep.subr.mxu0 0.0
  %134 = vmatpush1.msra.mxu0 0.0
  %135 = vmatprep.subr.mxu0 0.0
  %136 = vmatpush1.msra.mxu0 0.0
  %137 = vmatprep.subr.mxu0 0.0
  %138 = vmatpush1.msra.mxu0 0.0
  %139 = vmatprep.subr.mxu0 0.0
  %140 = vmatpush1.msra.mxu0 0.0
  %141 = vmatprep.subr.mxu0 0.0
  %142 = vmatpush1.msra.mxu0 0.0
  %143 = vmatprep.subr.mxu0 0.0
  %144 = vmatpush1.msra.mxu0 0.0
  %145 = vmatprep.subr.mxu0 0.0
  %146 = vmatpush1.msra.mxu0 0.0
  %147 = vmatprep.mubr.f32.mxu0 0.0
  %148 = vmatmul.mubr.f32.gmra.mrb[0].mxu0 %v78
  %v149 = vpop.f32.mrb[0].mxu0
  %v150 = vadd.f32 0.0, %v149
  %v151 = vpop.f32.mrb[0].mxu0
  %152 = vmatprep.mubr.f32.mxu0 0.0
  %153 = vmatmul.mubr.f32.gmra.mrb[0].mxu0 %v81
  %v154 = vpop.f32.mrb[0].mxu0
  %v155 = vadd.f32 0.0, %v154
  %v156 = vpop.f32.mrb[0].mxu0
  %157 = vdwg.mxu0
  %v158 = vsel %vm76, %v150, 0.0
  %v159 = vsel %vm76, %v155, 0.0
  %v160 = vadd.f32 %v158, %v159
  %v161 = vrot.slane %v160, 4
  %v162 = vadd.f32 %v160, %v161
  %v163 = vrot.slane %v162, 2
  %v164 = vadd.f32 %v162, %v163
  %v165 = vrot.slane %v164, 1
  %v166 = vadd.f32 %v164, %v165
  %v167 = vrcp.pop 16.0
  %v168 = vmul.f32 %v166, %v167
  %v169 = vsub.f32 %v150, %v168
  %v170 = vsub.f32 %v155, %v168
  %v171 = vmul.f32 %v169, %v169
  %v172 = vmul.f32 %v170, %v170
  %v173 = vsel %vm76, %v171, 0.0
  %v174 = vsel %vm76, %v172, 0.0
  %v175 = vadd.f32 %v173, %v174
  %v176 = vrot.slane %v175, 4
  %v177 = vadd.f32 %v175, %v176
  %v178 = vrot.slane %v177, 2
  %v179 = vadd.f32 %v177, %v178
  %v180 = vrot.slane %v179, 1
  %v181 = vadd.f32 %v179, %v180
  %v182 = vmul.f32 %v181, %v167
  %v183 = vadd.f32 %v182, 1e-05
  %v184 = vrsqrt.pop %v183
  %v185 = vmul.f32 %v183, %v184
  %vm186 = vcmp.eq.f32.partialorder %v183, inf
  %v187 = vsel %vm186, %v183, %v185
  %vm188 = vcmp.eq.f32.partialorder %v183, 0.0
  %v189 = vand.u32 %v183, 2147483648
  %v190 = vsel %vm188, %v189, %v187
  %v191 = vrcp.pop %v190
  %v192 = vmul.f32 %v169, %v191
  %v193 = vmul.f32 %v170, %v191
  %v195 = vlaneseq
  %v196 = vshrl.u32 %v195, 7
  %v197 = vsub.s32 0, %v196
  %v198 = vrot.slane %v30, %v197
  %v200 = vmul.f32 %v192, %v198
  %v201 = vmul.f32 %v193, %v198
  %v203 = vlaneseq
  %v204 = vshrl.u32 %v203, 7
  %v205 = vsub.s32 0, %v204
  %v206 = vrot.slane %v31, %v205
  %v208 = vadd.f32 %v200, %v206
  %v209 = vadd.f32 %v201, %v206
  %v211 = vlaneseq
  %v212 = vshrl.u32 %v211, 7
  %v213 = vsub.s32 0, %v212
  %v214 = vrot.slane %v34, %v213
  %216 = vxpose.xlu0.b32.start [1/16] %v208, 128
  %217 = vxpose.xlu0.b32.cont [2/16] %v209, 128
  %218 = vxpose.xlu0.b32.cont [3/16] 0.0, 128
  %219 = vxpose.xlu0.b32.cont [4/16] 0.0, 128
  %220 = vxpose.xlu0.b32.cont [5/16] 0.0, 128
  %221 = vxpose.xlu0.b32.cont [6/16] 0.0, 128
  %222 = vxpose.xlu0.b32.cont [7/16] 0.0, 128
  %223 = vxpose.xlu0.b32.cont [8/16] 0.0, 128
  %224 = vxpose.xlu0.b32.cont [9/16] 0.0, 128
  %225 = vxpose.xlu0.b32.cont [10/16] 0.0, 128
  %226 = vxpose.xlu0.b32.cont [11/16] 0.0, 128
  %227 = vxpose.xlu0.b32.cont [12/16] 0.0, 128
  %228 = vxpose.xlu0.b32.cont [13/16] 0.0, 128
  %229 = vxpose.xlu0.b32.cont [14/16] 0.0, 128
  %230 = vxpose.xlu0.b32.cont [15/16] 0.0, 128
  %231 = vxpose.xlu0.b32.end [16/16] 0.0, 128
  %v232 = vpop.trf.xlu0
  %v233 = vpop.trf.xlu0
  %v234 = vpop.trf.xlu0
  %v235 = vpop.trf.xlu0
  %v236 = vpop.trf.xlu0
  %v237 = vpop.trf.xlu0
  %v238 = vpop.trf.xlu0
  %v239 = vpop.trf.xlu0
  %v240 = vpop.trf.xlu0
  %v241 = vpop.trf.xlu0
  %v242 = vpop.trf.xlu0
  %v243 = vpop.trf.xlu0
  %v244 = vpop.trf.xlu0
  %v245 = vpop.trf.xlu0
  %v246 = vpop.trf.xlu0
  %v247 = vpop.trf.xlu0
  %vm248 = vcmask 130048
  %v250 = vsel %vm248, %v232, 0
  %252 = vmatprep.subr.mxu0 0.0
  %253 = vmatpush1.msra.mxu0 %v32
  %254 = vmatprep.subr.mxu0 0.0
  %255 = vmatpush1.msra.mxu0 %v33
  %256 = vmatprep.subr.mxu0 0.0
  %257 = vmatpush1.msra.mxu0 0.0
  %258 = vmatprep.subr.mxu0 0.0
  %259 = vmatpush1.msra.mxu0 0.0
  %260 = vmatprep.subr.mxu0 0.0
  %261 = vmatpush1.msra.mxu0 0.0
  %262 = vmatprep.subr.mxu0 0.0
  %263 = vmatpush1.msra.mxu0 0.0
  %264 = vmatprep.subr.mxu0 0.0
  %265 = vmatpush1.msra.mxu0 0.0
  %266 = vmatprep.subr.mxu0 0.0
  %267 = vmatpush1.msra.mxu0 0.0
  %268 = vmatprep.subr.mxu0 0.0
  %269 = vmatpush1.msra.mxu0 0.0
  %270 = vmatprep.subr.mxu0 0.0
  %271 = vmatpush1.msra.mxu0 0.0
  %272 = vmatprep.subr.mxu0 0.0
  %273 = vmatpush1.msra.mxu0 0.0
  %274 = vmatprep.subr.mxu0 0.0
  %275 = vmatpush1.msra.mxu0 0.0
  %276 = vmatprep.subr.mxu0 0.0
  %277 = vmatpush1.msra.mxu0 0.0
  %278 = vmatprep.subr.mxu0 0.0
  %279 = vmatpush1.msra.mxu0 0.0
  %280 = vmatprep.subr.mxu0 0.0
  %281 = vmatpush1.msra.mxu0 0.0
  %282 = vmatprep.subr.mxu0 0.0
  %283 = vmatpush1.msra.mxu0 0.0
  %284 = vmatprep.subr.mxu0 0.0
  %285 = vmatpush1.msra.mxu0 0.0
  %286 = vmatprep.subr.mxu0 0.0
  %287 = vmatpush1.msra.mxu0 0.0
  %288 = vmatprep.subr.mxu0 0.0
  %289 = vmatpush1.msra.mxu0 0.0
  %290 = vmatprep.subr.mxu0 0.0
  %291 = vmatpush1.msra.mxu0 0.0
  %292 = vmatprep.subr.mxu0 0.0
  %293 = vmatpush1.msra.mxu0 0.0
  %294 = vmatprep.subr.mxu0 0.0
  %295 = vmatpush1.msra.mxu0 0.0
  %296 = vmatprep.subr.mxu0 0.0
  %297 = vmatpush1.msra.mxu0 0.0
  %298 = vmatprep.subr.mxu0 0.0
  %299 = vmatpush1.msra.mxu0 0.0
  %300 = vmatprep.subr.mxu0 0.0
  %301 = vmatpush1.msra.mxu0 0.0
  %302 = vmatprep.subr.mxu0 0.0
  %303 = vmatpush1.msra.mxu0 0.0
  %304 = vmatprep.subr.mxu0 0.0
  %305 = vmatpush1.msra.mxu0 0.0
  %306 = vmatprep.subr.mxu0 0.0
  %307 = vmatpush1.msra.mxu0 0.0
  %308 = vmatprep.subr.mxu0 0.0
  %309 = vmatpush1.msra.mxu0 0.0
  %310 = vmatprep.subr.mxu0 0.0
  %311 = vmatpush1.msra.mxu0 0.0
  %312 = vmatprep.subr.mxu0 0.0
  %313 = vmatpush1.msra.mxu0 0.0
  %314 = vmatprep.subr.mxu0 0.0
  %315 = vmatpush1.msra.mxu0 0.0
  %316 = vmatprep.mubr.f32.mxu0 0.0
  %317 = vmatmul.mubr.f32.gmra.mrb[0].mxu0 %v250
  %v318 = vpop.f32.mrb[0].mxu0
  %v319 = vadd.f32 %v214, %v318
  %v320 = vpop.f32.mrb[0].mxu0
  %321 = vdwg.mxu0
  %v323 = vlaneseq
  %v324 = vshrl.u32 %v323, 7
  %v325 = vsub.s32 0, %v324
  %v326 = vrot.slane %v37, %v325
  %328 = vmatprep.subr.mxu0 0.0
  %329 = vmatpush1.msra.mxu0 %v35
  %330 = vmatprep.subr.mxu0 0.0
  %331 = vmatpush1.msra.mxu0 %v36
  %332 = vmatprep.subr.mxu0 0.0
  %333 = vmatpush1.msra.mxu0 0.0
  %334 = vmatprep.subr.mxu0 0.0
  %335 = vmatpush1.msra.mxu0 0.0
  %336 = vmatprep.subr.mxu0 0.0
  %337 = vmatpush1.msra.mxu0 0.0
  %338 = vmatprep.subr.mxu0 0.0
  %339 = vmatpush1.msra.mxu0 0.0
  %340 = vmatprep.subr.mxu0 0.0
  %341 = vmatpush1.msra.mxu0 0.0
  %342 = vmatprep.subr.mxu0 0.0
  %343 = vmatpush1.msra.mxu0 0.0
  %344 = vmatprep.subr.mxu0 0.0
  %345 = vmatpush1.msra.mxu0 0.0
  %346 = vmatprep.subr.mxu0 0.0
  %347 = vmatpush1.msra.mxu0 0.0
  %348 = vmatprep.subr.mxu0 0.0
  %349 = vmatpush1.msra.mxu0 0.0
  %350 = vmatprep.subr.mxu0 0.0
  %351 = vmatpush1.msra.mxu0 0.0
  %352 = vmatprep.subr.mxu0 0.0
  %353 = vmatpush1.msra.mxu0 0.0
  %354 = vmatprep.subr.mxu0 0.0
  %355 = vmatpush1.msra.mxu0 0.0
  %356 = vmatprep.subr.mxu0 0.0
  %357 = vmatpush1.msra.mxu0 0.0
  %358 = vmatprep.subr.mxu0 0.0
  %359 = vmatpush1.msra.mxu0 0.0
  %360 = vmatprep.subr.mxu0 0.0
  %361 = vmatpush1.msra.mxu0 0.0
  %362 = vmatprep.subr.mxu0 0.0
  %363 = vmatpush1.msra.mxu0 0.0
  %364 = vmatprep.subr.mxu0 0.0
  %365 = vmatpush1.msra.mxu0 0.0
  %366 = vmatprep.subr.mxu0 0.0
  %367 = vmatpush1.msra.mxu0 0.0
  %368 = vmatprep.subr.mxu0 0.0
  %369 = vmatpush1.msra.mxu0 0.0
  %370 = vmatprep.subr.mxu0 0.0
  %371 = vmatpush1.msra.mxu0 0.0
  %372 = vmatprep.subr.mxu0 0.0
  %373 = vmatpush1.msra.mxu0 0.0
  %374 = vmatprep.subr.mxu0 0.0
  %375 = vmatpush1.msra.mxu0 0.0
  %376 = vmatprep.subr.mxu0 0.0
  %377 = vmatpush1.msra.mxu0 0.0
  %378 = vmatprep.subr.mxu0 0.0
  %379 = vmatpush1.msra.mxu0 0.0
  %380 = vmatprep.subr.mxu0 0.0
  %381 = vmatpush1.msra.mxu0 0.0
  %382 = vmatprep.subr.mxu0 0.0
  %383 = vmatpush1.msra.mxu0 0.0
  %384 = vmatprep.subr.mxu0 0.0
  %385 = vmatpush1.msra.mxu0 0.0
  %386 = vmatprep.subr.mxu0 0.0
  %387 = vmatpush1.msra.mxu0 0.0
  %388 = vmatprep.subr.mxu0 0.0
  %389 = vmatpush1.msra.mxu0 0.0
  %390 = vmatprep.subr.mxu0 0.0
  %391 = vmatpush1.msra.mxu0 0.0
  %392 = vmatprep.mubr.f32.mxu0 0.0
  %393 = vmatmul.mubr.f32.gmra.mrb[0].mxu0 %v250
  %v394 = vpop.f32.mrb[0].mxu0
  %v395 = vadd.f32 %v326, %v394
  %v396 = vpop.f32.mrb[0].mxu0
  %397 = vdwg.mxu0
  %v398 = vmax.f32 %v319, 0.0
  %399 = vxpose.xlu0.b32.start [1/16] %v319, 128
  %400 = vxpose.xlu0.b32.cont [2/16] 0.0, 128
  %401 = vxpose.xlu0.b32.cont [3/16] 0.0, 128
  %402 = vxpose.xlu0.b32.cont [4/16] 0.0, 128
  %403 = vxpose.xlu0.b32.cont [5/16] 0.0, 128
  %404 = vxpose.xlu0.b32.cont [6/16] 0.0, 128
  %405 = vxpose.xlu0.b32.cont [7/16] 0.0, 128
  %406 = vxpose.xlu0.b32.cont [8/16] 0.0, 128
  %407 = vxpose.xlu0.b32.cont [9/16] 0.0, 128
  %408 = vxpose.xlu0.b32.cont [10/16] 0.0, 128
  %409 = vxpose.xlu0.b32.cont [11/16] 0.0, 128
  %410 = vxpose.xlu0.b32.cont [12/16] 0.0, 128
  %411 = vxpose.xlu0.b32.cont [13/16] 0.0, 128
  %412 = vxpose.xlu0.b32.cont [14/16] 0.0, 128
  %413 = vxpose.xlu0.b32.cont [15/16] 0.0, 128
  %414 = vxpose.xlu0.b32.end [16/16] 0.0, 128
  %v415 = vpop.trf.xlu0
  %v416 = vpop.trf.xlu0
  %v417 = vpop.trf.xlu0
  %v418 = vpop.trf.xlu0
  %v419 = vpop.trf.xlu0
  %v420 = vpop.trf.xlu0
  %v421 = vpop.trf.xlu0
  %v422 = vpop.trf.xlu0
  %v423 = vpop.trf.xlu0
  %v424 = vpop.trf.xlu0
  %v425 = vpop.trf.xlu0
  %v426 = vpop.trf.xlu0
  %v427 = vpop.trf.xlu0
  %v428 = vpop.trf.xlu0
  %v429 = vpop.trf.xlu0
  %v430 = vpop.trf.xlu0
  %v432 = vsel %vm76, %v415, 0
  %v435 = vsel %vm76, %v416, 0
  %437 = vmatprep.subr.mxu0 0.0
  %438 = vmatpush1.msra.mxu0 %v319
  %439 = vmatprep.subr.mxu0 0.0
  %440 = vmatpush1.msra.mxu0 0.0
  %441 = vmatprep.subr.mxu0 0.0
  %442 = vmatpush1.msra.mxu0 0.0
  %443 = vmatprep.subr.mxu0 0.0
  %444 = vmatpush1.msra.mxu0 0.0
  %445 = vmatprep.subr.mxu0 0.0
  %446 = vmatpush1.msra.mxu0 0.0
  %447 = vmatprep.subr.mxu0 0.0
  %448 = vmatpush1.msra.mxu0 0.0
  %449 = vmatprep.subr.mxu0 0.0
  %450 = vmatpush1.msra.mxu0 0.0
  %451 = vmatprep.subr.mxu0 0.0
  %452 = vmatpush1.msra.mxu0 0.0
  %453 = vmatprep.subr.mxu0 0.0
  %454 = vmatpush1.msra.mxu0 0.0
  %455 = vmatprep.subr.mxu0 0.0
  %456 = vmatpush1.msra.mxu0 0.0
  %457 = vmatprep.subr.mxu0 0.0
  %458 = vmatpush1.msra.mxu0 0.0
  %459 = vmatprep.subr.mxu0 0.0
  %460 = vmatpush1.msra.mxu0 0.0
  %461 = vmatprep.subr.mxu0 0.0
  %462 = vmatpush1.msra.mxu0 0.0
  %463 = vmatprep.subr.mxu0 0.0
  %464 = vmatpush1.msra.mxu0 0.0
  %465 = vmatprep.subr.mxu0 0.0
  %466 = vmatpush1.msra.mxu0 0.0
  %467 = vmatprep.subr.mxu0 0.0
  %468 = vmatpush1.msra.mxu0 0.0
  %469 = vmatprep.subr.mxu0 0.0
  %470 = vmatpush1.msra.mxu0 0.0
  %471 = vmatprep.subr.mxu0 0.0
  %472 = vmatpush1.msra.mxu0 0.0
  %473 = vmatprep.subr.mxu0 0.0
  %474 = vmatpush1.msra.mxu0 0.0
  %475 = vmatprep.subr.mxu0 0.0
  %476 = vmatpush1.msra.mxu0 0.0
  %477 = vmatprep.subr.mxu0 0.0
  %478 = vmatpush1.msra.mxu0 0.0
  %479 = vmatprep.subr.mxu0 0.0
  %480 = vmatpush1.msra.mxu0 0.0
  %481 = vmatprep.subr.mxu0 0.0
  %482 = vmatpush1.msra.mxu0 0.0
  %483 = vmatprep.subr.mxu0 0.0
  %484 = vmatpush1.msra.mxu0 0.0
  %485 = vmatprep.subr.mxu0 0.0
  %486 = vmatpush1.msra.mxu0 0.0
  %487 = vmatprep.subr.mxu0 0.0
  %488 = vmatpush1.msra.mxu0 0.0
  %489 = vmatprep.subr.mxu0 0.0
  %490 = vmatpush1.msra.mxu0 0.0
  %491 = vmatprep.subr.mxu0 0.0
  %492 = vmatpush1.msra.mxu0 0.0
  %493 = vmatprep.subr.mxu0 0.0
  %494 = vmatpush1.msra.mxu0 0.0
  %495 = vmatprep.subr.mxu0 0.0
  %496 = vmatpush1.msra.mxu0 0.0
  %497 = vmatprep.subr.mxu0 0.0
  %498 = vmatpush1.msra.mxu0 0.0
  %499 = vmatprep.subr.mxu0 0.0
  %500 = vmatpush1.msra.mxu0 0.0
  %501 = vmatprep.mubr.f32.mxu0 0.0
  %502 = vmatmul.mubr.f32.gmra.mrb[0].mxu0 %v432
  %v503 = vpop.f32.mrb[0].mxu0
  %v504 = vadd.f32 0.0, %v503
  %v505 = vpop.f32.mrb[0].mxu0
  %506 = vmatprep.mubr.f32.mxu0 0.0
  %507 = vmatmul.mubr.f32.gmra.mrb[0].mxu0 %v435
  %v508 = vpop.f32.mrb[0].mxu0
  %v509 = vadd.f32 0.0, %v508
  %v510 = vpop.f32.mrb[0].mxu0
  %511 = vdwg.mxu0
  %512 = vxpose.xlu0.b32.start [1/16] %v398, 128
  %513 = vxpose.xlu0.b32.cont [2/16] 0.0, 128
  %514 = vxpose.xlu0.b32.cont [3/16] 0.0, 128
  %515 = vxpose.xlu0.b32.cont [4/16] 0.0, 128
  %516 = vxpose.xlu0.b32.cont [5/16] 0.0, 128
  %517 = vxpose.xlu0.b32.cont [6/16] 0.0, 128
  %518 = vxpose.xlu0.b32.cont [7/16] 0.0, 128
  %519 = vxpose.xlu0.b32.cont [8/16] 0.0, 128
  %520 = vxpose.xlu0.b32.cont [9/16] 0.0, 128
  %521 = vxpose.xlu0.b32.cont [10/16] 0.0, 128
  %522 = vxpose.xlu0.b32.cont [11/16] 0.0, 128
  %523 = vxpose.xlu0.b32.cont [12/16] 0.0, 128
  %524 = vxpose.xlu0.b32.cont [13/16] 0.0, 128
  %525 = vxpose.xlu0.b32.cont [14/16] 0.0, 128
  %526 = vxpose.xlu0.b32.cont [15/16] 0.0, 128
  %527 = vxpose.xlu0.b32.end [16/16] 0.0, 128
  %v528 = vpop.trf.xlu0
  %v529 = vpop.trf.xlu0
  %v530 = vpop.trf.xlu0
  %v531 = vpop.trf.xlu0
  %v532 = vpop.trf.xlu0
  %v533 = vpop.trf.xlu0
  %v534 = vpop.trf.xlu0
  %v535 = vpop.trf.xlu0
  %v536 = vpop.trf.xlu0
  %v537 = vpop.trf.xlu0
  %v538 = vpop.trf.xlu0
  %v539 = vpop.trf.xlu0
  %v540 = vpop.trf.xlu0
  %v541 = vpop.trf.xlu0
  %v542 = vpop.trf.xlu0
  %v543 = vpop.trf.xlu0
  %v545 = vsel %vm76, %v528, 0
  %v548 = vsel %vm76, %v529, 0
  %550 = vmatprep.subr.mxu0 0.0
  %551 = vmatpush1.msra.mxu0 %v319
  %552 = vmatprep.subr.mxu0 0.0
  %553 = vmatpush1.msra.mxu0 0.0
  %554 = vmatprep.subr.mxu0 0.0
  %555 = vmatpush1.msra.mxu0 0.0
  %556 = vmatprep.subr.mxu0 0.0
  %557 = vmatpush1.msra.mxu0 0.0
  %558 = vmatprep.subr.mxu0 0.0
  %559 = vmatpush1.msra.mxu0 0.0
  %560 = vmatprep.subr.mxu0 0.0
  %561 = vmatpush1.msra.mxu0 0.0
  %562 = vmatprep.subr.mxu0 0.0
  %563 = vmatpush1.msra.mxu0 0.0
  %564 = vmatprep.subr.mxu0 0.0
  %565 = vmatpush1.msra.mxu0 0.0
  %566 = vmatprep.subr.mxu0 0.0
  %567 = vmatpush1.msra.mxu0 0.0
  %568 = vmatprep.subr.mxu0 0.0
  %569 = vmatpush1.msra.mxu0 0.0
  %570 = vmatprep.subr.mxu0 0.0
  %571 = vmatpush1.msra.mxu0 0.0
  %572 = vmatprep.subr.mxu0 0.0
  %573 = vmatpush1.msra.mxu0 0.0
  %574 = vmatprep.subr.mxu0 0.0
  %575 = vmatpush1.msra.mxu0 0.0
  %576 = vmatprep.subr.mxu0 0.0
  %577 = vmatpush1.msra.mxu0 0.0
  %578 = vmatprep.subr.mxu0 0.0
  %579 = vmatpush1.msra.mxu0 0.0
  %580 = vmatprep.subr.mxu0 0.0
  %581 = vmatpush1.msra.mxu0 0.0
  %582 = vmatprep.subr.mxu0 0.0
  %583 = vmatpush1.msra.mxu0 0.0
  %584 = vmatprep.subr.mxu0 0.0
  %585 = vmatpush1.msra.mxu0 0.0
  %586 = vmatprep.subr.mxu0 0.0
  %587 = vmatpush1.msra.mxu0 0.0
  %588 = vmatprep.subr.mxu0 0.0
  %589 = vmatpush1.msra.mxu0 0.0
  %590 = vmatprep.subr.mxu0 0.0
  %591 = vmatpush1.msra.mxu0 0.0
  %592 = vmatprep.subr.mxu0 0.0
  %593 = vmatpush1.msra.mxu0 0.0
  %594 = vmatprep.subr.mxu0 0.0
  %595 = vmatpush1.msra.mxu0 0.0
  %596 = vmatprep.subr.mxu0 0.0
  %597 = vmatpush1.msra.mxu0 0.0
  %598 = vmatprep.subr.mxu0 0.0
  %599 = vmatpush1.msra.mxu0 0.0
  %600 = vmatprep.subr.mxu0 0.0
  %601 = vmatpush1.msra.mxu0 0.0
  %602 = vmatprep.subr.mxu0 0.0
  %603 = vmatpush1.msra.mxu0 0.0
  %604 = vmatprep.subr.mxu0 0.0
  %605 = vmatpush1.msra.mxu0 0.0
  %606 = vmatprep.subr.mxu0 0.0
  %607 = vmatpush1.msra.mxu0 0.0
  %608 = vmatprep.subr.mxu0 0.0
  %609 = vmatpush1.msra.mxu0 0.0
  %610 = vmatprep.subr.mxu0 0.0
  %611 = vmatpush1.msra.mxu0 0.0
  %612 = vmatprep.subr.mxu0 0.0
  %613 = vmatpush1.msra.mxu0 0.0
  %614 = vmatprep.mubr.f32.mxu0 0.0
  %615 = vmatmul.mubr.f32.gmra.mrb[0].mxu0 %v545
  %v616 = vpop.f32.mrb[0].mxu0
  %v617 = vadd.f32 0.0, %v616
  %v618 = vpop.f32.mrb[0].mxu0
  %619 = vmatprep.mubr.f32.mxu0 0.0
  %620 = vmatmul.mubr.f32.gmra.mrb[0].mxu0 %v548
  %v621 = vpop.f32.mrb[0].mxu0
  %v622 = vadd.f32 0.0, %v621
  %v623 = vpop.f32.mrb[0].mxu0
  %624 = vdwg.mxu0
  %v626 = vsel %vm248, %v398, 0
  %628 = vmatprep.subr.mxu0 0.0
  %629 = vmatpush1.msra.mxu0 %v617
  %630 = vmatprep.subr.mxu0 0.0
  %631 = vmatpush1.msra.mxu0 %v622
  %632 = vmatprep.subr.mxu0 0.0
  %633 = vmatpush1.msra.mxu0 0.0
  %634 = vmatprep.subr.mxu0 0.0
  %635 = vmatpush1.msra.mxu0 0.0
  %636 = vmatprep.subr.mxu0 0.0
  %637 = vmatpush1.msra.mxu0 0.0
  %638 = vmatprep.subr.mxu0 0.0
  %639 = vmatpush1.msra.mxu0 0.0
  %640 = vmatprep.subr.mxu0 0.0
  %641 = vmatpush1.msra.mxu0 0.0
  %642 = vmatprep.subr.mxu0 0.0
  %643 = vmatpush1.msra.mxu0 0.0
  %644 = vmatprep.subr.mxu0 0.0
  %645 = vmatpush1.msra.mxu0 0.0
  %646 = vmatprep.subr.mxu0 0.0
  %647 = vmatpush1.msra.mxu0 0.0
  %648 = vmatprep.subr.mxu0 0.0
  %649 = vmatpush1.msra.mxu0 0.0
  %650 = vmatprep.subr.mxu0 0.0
  %651 = vmatpush1.msra.mxu0 0.0
  %652 = vmatprep.subr.mxu0 0.0
  %653 = vmatpush1.msra.mxu0 0.0
  %654 = vmatprep.subr.mxu0 0.0
  %655 = vmatpush1.msra.mxu0 0.0
  %656 = vmatprep.subr.mxu0 0.0
  %657 = vmatpush1.msra.mxu0 0.0
  %658 = vmatprep.subr.mxu0 0.0
  %659 = vmatpush1.msra.mxu0 0.0
  %660 = vmatprep.subr.mxu0 0.0
  %661 = vmatpush1.msra.mxu0 0.0
  %662 = vmatprep.subr.mxu0 0.0
  %663 = vmatpush1.msra.mxu0 0.0
  %664 = vmatprep.subr.mxu0 0.0
  %665 = vmatpush1.msra.mxu0 0.0
  %666 = vmatprep.subr.mxu0 0.0
  %667 = vmatpush1.msra.mxu0 0.0
  %668 = vmatprep.subr.mxu0 0.0
  %669 = vmatpush1.msra.mxu0 0.0
  %670 = vmatprep.subr.mxu0 0.0
  %671 = vmatpush1.msra.mxu0 0.0
  %672 = vmatprep.subr.mxu0 0.0
  %673 = vmatpush1.msra.mxu0 0.0
  %674 = vmatprep.subr.mxu0 0.0
  %675 = vmatpush1.msra.mxu0 0.0
  %676 = vmatprep.subr.mxu0 0.0
  %677 = vmatpush1.msra.mxu0 0.0
  %678 = vmatprep.subr.mxu0 0.0
  %679 = vmatpush1.msra.mxu0 0.0
  %680 = vmatprep.subr.mxu0 0.0
  %681 = vmatpush1.msra.mxu0 0.0
  %682 = vmatprep.subr.mxu0 0.0
  %683 = vmatpush1.msra.mxu0 0.0
  %684 = vmatprep.subr.mxu0 0.0
  %685 = vmatpush1.msra.mxu0 0.0
  %686 = vmatprep.subr.mxu0 0.0
  %687 = vmatpush1.msra.mxu0 0.0
  %688 = vmatprep.subr.mxu0 0.0
  %689 = vmatpush1.msra.mxu0 0.0
  %690 = vmatprep.subr.mxu0 0.0
  %691 = vmatpush1.msra.mxu0 0.0
  %692 = vmatprep.mubr.f32.mxu0 0.0
  %693 = vmatmul.mubr.f32.gmra.mrb[0].mxu0 %v626
  %v694 = vpop.f32.mrb[0].mxu0
  %v695 = vadd.f32 0.0, %v694
  %v696 = vpop.f32.mrb[0].mxu0
  %697 = vdwg.mxu0
  %698 = vmatprep.subr.mxu0 0.0
  %699 = vmatpush1.msra.mxu0 %v695
  %700 = vmatprep.subr.mxu0 0.0
  %701 = vmatpush1.msra.mxu0 0.0
  %702 = vmatprep.subr.mxu0 0.0
  %703 = vmatpush1.msra.mxu0 0.0
  %704 = vmatprep.subr.mxu0 0.0
  %705 = vmatpush1.msra.mxu0 0.0
  %706 = vmatprep.subr.mxu0 0.0
  %707 = vmatpush1.msra.mxu0 0.0
  %708 = vmatprep.subr.mxu0 0.0
  %709 = vmatpush1.msra.mxu0 0.0
  %710 = vmatprep.subr.mxu0 0.0
  %711 = vmatpush1.msra.mxu0 0.0
  %712 = vmatprep.subr.mxu0 0.0
  %713 = vmatpush1.msra.mxu0 0.0
  %714 = vmatprep.subr.mxu0 0.0
  %715 = vmatpush1.msra.mxu0 0.0
  %716 = vmatprep.subr.mxu0 0.0
  %717 = vmatpush1.msra.mxu0 0.0
  %718 = vmatprep.subr.mxu0 0.0
  %719 = vmatpush1.msra.mxu0 0.0
  %720 = vmatprep.subr.mxu0 0.0
  %721 = vmatpush1.msra.mxu0 0.0
  %722 = vmatprep.subr.mxu0 0.0
  %723 = vmatpush1.msra.mxu0 0.0
  %724 = vmatprep.subr.mxu0 0.0
  %725 = vmatpush1.msra.mxu0 0.0
  %726 = vmatprep.subr.mxu0 0.0
  %727 = vmatpush1.msra.mxu0 0.0
  %728 = vmatprep.subr.mxu0 0.0
  %729 = vmatpush1.msra.mxu0 0.0
  %730 = vmatprep.subr.mxu0 0.0
  %731 = vmatpush1.msra.mxu0 0.0
  %732 = vmatprep.subr.mxu0 0.0
  %733 = vmatpush1.msra.mxu0 0.0
  %734 = vmatprep.subr.mxu0 0.0
  %735 = vmatpush1.msra.mxu0 0.0
  %736 = vmatprep.subr.mxu0 0.0
  %737 = vmatpush1.msra.mxu0 0.0
  %738 = vmatprep.subr.mxu0 0.0
  %739 = vmatpush1.msra.mxu0 0.0
  %740 = vmatprep.subr.mxu0 0.0
  %741 = vmatpush1.msra.mxu0 0.0
  %742 = vmatprep.subr.mxu0 0.0
  %743 = vmatpush1.msra.mxu0 0.0
  %744 = vmatprep.subr.mxu0 0.0
  %745 = vmatpush1.msra.mxu0 0.0
  %746 = vmatprep.subr.mxu0 0.0
  %747 = vmatpush1.msra.mxu0 0.0
  %748 = vmatprep.subr.mxu0 0.0
  %749 = vmatpush1.msra.mxu0 0.0
  %750 = vmatprep.subr.mxu0 0.0
  %751 = vmatpush1.msra.mxu0 0.0
  %752 = vmatprep.subr.mxu0 0.0
  %753 = vmatpush1.msra.mxu0 0.0
  %754 = vmatprep.subr.mxu0 0.0
  %755 = vmatpush1.msra.mxu0 0.0
  %756 = vmatprep.subr.mxu0 0.0
  %757 = vmatpush1.msra.mxu0 0.0
  %758 = vmatprep.subr.mxu0 0.0
  %759 = vmatpush1.msra.mxu0 0.0
  %760 = vmatprep.subr.mxu0 0.0
  %761 = vmatpush1.msra.mxu0 0.0
  %762 = vmatprep.mubr.f32.mxu0 0.0
  %763 = vmatmul.mubr.f32.gmra.mrb[0].mxu0 %v432
  %v764 = vpop.f32.mrb[0].mxu0
  %v765 = vadd.f32 0.0, %v764
  %v766 = vpop.f32.mrb[0].mxu0
  %767 = vmatprep.mubr.f32.mxu0 0.0
  %768 = vmatmul.mubr.f32.gmra.mrb[0].mxu0 %v435
  %v769 = vpop.f32.mrb[0].mxu0
  %v770 = vadd.f32 0.0, %v769
  %v771 = vpop.f32.mrb[0].mxu0
  %772 = vdwg.mxu0
  %773 = vst.msk [vmem:[%s8] sm:$0xff] %vm248, %v504
  %774 = vst.msk [vmem:[%s8 + $0x8] sm:$0xff] %vm248, %v509
  %777 = vrot.lane.b32.xlu0 %v765, 16
  %v778 = vpop.permute.xlu0 %777
  %779 = vrot.lane.b32.xlu0 %v770, 16
  %v780 = vpop.permute.xlu0 %779
  %vm783 = vcmask 261248
  %784 = vst.msk [vmem:[%s8] sm:$0xff] %vm783, %v778
  %785 = vst.msk [vmem:[%s8 + $0x8] sm:$0xff] %vm783, %v780
  %787 = vrot.lane.b32.xlu0 %v395, 32
  %v788 = vpop.permute.xlu0 %787
  %vm790 = vcmask 392448
  %791 = vst.msk [vmem:[%s8] sm:$0xff] %vm790, %v788
  %794 = vrot.lane.b32.xlu0 %v208, 48
  %v795 = vpop.permute.xlu0 %794
  %796 = vrot.lane.b32.xlu0 %v209, 48
  %v797 = vpop.permute.xlu0 %796
  %vm800 = vcmask 458112
  %801 = vst.msk [vmem:[%s8] sm:$0xff] %vm800, %v795
  %802 = vst.msk [vmem:[%s8 + $0x8] sm:$0xff] %vm800, %v797
  %804 = vrot.lane.b32.xlu0 %v168, 56
  %v805 = vpop.permute.xlu0 %804
  %vm807 = vcmask 516544
  %808 = vst.msk [vmem:[%s8] sm:$0x1] %vm807, %v805
  %810 = vrot.lane.b32.xlu0 %v190, 56
  %v811 = vpop.permute.xlu0 %810
  %813 = vst.msk [vmem:[%s8 + $0x1] sm:$0x1] %vm807, %v811
  %s814 = scalar_lea.vmem %s0, 8
  %v815 = vld [vmem:[%s814] sm:$0xff]
  %816 = vmatprep.subr.mxu0 0.0
  %817 = vmatpush1.msra.mxu0 %v815
  %818 = vmatprep.subr.mxu0 0.0
  %819 = vmatpush1.msra.mxu0 0.0
  %820 = vmatprep.subr.mxu0 0.0
  %821 = vmatpush1.msra.mxu0 0.0
  %822 = vmatprep.subr.mxu0 0.0
  %823 = vmatpush1.msra.mxu0 0.0
  %824 = vmatprep.subr.mxu0 0.0
  %825 = vmatpush1.msra.mxu0 0.0
  %826 = vmatprep.subr.mxu0 0.0
  %827 = vmatpush1.msra.mxu0 0.0
  %828 = vmatprep.subr.mxu0 0.0
  %829 = vmatpush1.msra.mxu0 0.0
  %830 = vmatprep.subr.mxu0 0.0
  %831 = vmatpush1.msra.mxu0 0.0
  %832 = vmatprep.subr.mxu0 0.0
  %833 = vmatpush1.msra.mxu0 0.0
  %834 = vmatprep.subr.mxu0 0.0
  %835 = vmatpush1.msra.mxu0 0.0
  %836 = vmatprep.subr.mxu0 0.0
  %837 = vmatpush1.msra.mxu0 0.0
  %838 = vmatprep.subr.mxu0 0.0
  %839 = vmatpush1.msra.mxu0 0.0
  %840 = vmatprep.subr.mxu0 0.0
  %841 = vmatpush1.msra.mxu0 0.0
  %842 = vmatprep.subr.mxu0 0.0
  %843 = vmatpush1.msra.mxu0 0.0
  %844 = vmatprep.subr.mxu0 0.0
  %845 = vmatpush1.msra.mxu0 0.0
  %846 = vmatprep.subr.mxu0 0.0
  %847 = vmatpush1.msra.mxu0 0.0
  %848 = vmatprep.subr.mxu0 0.0
  %849 = vmatpush1.msra.mxu0 0.0
  %850 = vmatprep.subr.mxu0 0.0
  %851 = vmatpush1.msra.mxu0 0.0
  %852 = vmatprep.subr.mxu0 0.0
  %853 = vmatpush1.msra.mxu0 0.0
  %854 = vmatprep.subr.mxu0 0.0
  %855 = vmatpush1.msra.mxu0 0.0
  %856 = vmatprep.subr.mxu0 0.0
  %857 = vmatpush1.msra.mxu0 0.0
  %858 = vmatprep.subr.mxu0 0.0
  %859 = vmatpush1.msra.mxu0 0.0
  %860 = vmatprep.subr.mxu0 0.0
  %861 = vmatpush1.msra.mxu0 0.0
  %862 = vmatprep.subr.mxu0 0.0
  %863 = vmatpush1.msra.mxu0 0.0
  %864 = vmatprep.subr.mxu0 0.0
  %865 = vmatpush1.msra.mxu0 0.0
  %866 = vmatprep.subr.mxu0 0.0
  %867 = vmatpush1.msra.mxu0 0.0
  %868 = vmatprep.subr.mxu0 0.0
  %869 = vmatpush1.msra.mxu0 0.0
  %870 = vmatprep.subr.mxu0 0.0
  %871 = vmatpush1.msra.mxu0 0.0
  %872 = vmatprep.subr.mxu0 0.0
  %873 = vmatpush1.msra.mxu0 0.0
  %874 = vmatprep.subr.mxu0 0.0
  %875 = vmatpush1.msra.mxu0 0.0
  %876 = vmatprep.subr.mxu0 0.0
  %877 = vmatpush1.msra.mxu0 0.0
  %878 = vmatprep.subr.mxu0 0.0
  %879 = vmatpush1.msra.mxu0 0.0
  %880 = vmatprep.mubr.f32.mxu0 0.0
  %881 = vmatmul.mubr.f32.gmra.mrb[0].mxu0 %v78
  %v882 = vpop.f32.mrb[0].mxu0
  %v883 = vadd.f32 0.0, %v882
  %v884 = vpop.f32.mrb[0].mxu0
  %885 = vmatprep.mubr.f32.mxu0 0.0
  %886 = vmatmul.mubr.f32.gmra.mrb[0].mxu0 %v81
  %v887 = vpop.f32.mrb[0].mxu0
  %v888 = vadd.f32 0.0, %v887
  %v889 = vpop.f32.mrb[0].mxu0
  %890 = vdwg.mxu0
  %v891 = vsel %vm76, %v883, 0.0
  %v892 = vsel %vm76, %v888, 0.0
  %v893 = vadd.f32 %v891, %v892
  %v894 = vrot.slane %v893, 4
  %v895 = vadd.f32 %v893, %v894
  %v896 = vrot.slane %v895, 2
  %v897 = vadd.f32 %v895, %v896
  %v898 = vrot.slane %v897, 1
  %v899 = vadd.f32 %v897, %v898
  %v900 = vmul.f32 %v899, %v167
  %v901 = vsub.f32 %v883, %v900
  %v902 = vsub.f32 %v888, %v900
  %v903 = vmul.f32 %v901, %v901
  %v904 = vmul.f32 %v902, %v902
  %v905 = vsel %vm76, %v903, 0.0
  %v906 = vsel %vm76, %v904, 0.0
  %v907 = vadd.f32 %v905, %v906
  %v908 = vrot.slane %v907, 4
  %v909 = vadd.f32 %v907, %v908
  %v910 = vrot.slane %v909, 2
  %v911 = vadd.f32 %v909, %v910
  %v912 = vrot.slane %v911, 1
  %v913 = vadd.f32 %v911, %v912
  %v914 = vmul.f32 %v913, %v167
  %v915 = vadd.f32 %v914, 1e-05
  %v916 = vrsqrt.pop %v915
  %v917 = vmul.f32 %v915, %v916
  %vm918 = vcmp.eq.f32.partialorder %v915, inf
  %v919 = vsel %vm918, %v915, %v917
  %vm920 = vcmp.eq.f32.partialorder %v915, 0.0
  %v921 = vand.u32 %v915, 2147483648
  %v922 = vsel %vm920, %v921, %v919
  %v923 = vrcp.pop %v922
  %v924 = vmul.f32 %v901, %v923
  %v925 = vmul.f32 %v902, %v923
  %v926 = vmul.f32 %v924, %v198
  %v927 = vmul.f32 %v925, %v198
  %v928 = vadd.f32 %v926, %v206
  %v929 = vadd.f32 %v927, %v206
  %930 = vxpose.xlu0.b32.start [1/16] %v928, 128
  %931 = vxpose.xlu0.b32.cont [2/16] %v929, 128
  %932 = vxpose.xlu0.b32.cont [3/16] 0.0, 128
  %933 = vxpose.xlu0.b32.cont [4/16] 0.0, 128
  %934 = vxpose.xlu0.b32.cont [5/16] 0.0, 128
  %935 = vxpose.xlu0.b32.cont [6/16] 0.0, 128
  %936 = vxpose.xlu0.b32.cont [7/16] 0.0, 128
  %937 = vxpose.xlu0.b32.cont [8/16] 0.0, 128
  %938 = vxpose.xlu0.b32.cont [9/16] 0.0, 128
  %939 = vxpose.xlu0.b32.cont [10/16] 0.0, 128
  %940 = vxpose.xlu0.b32.cont [11/16] 0.0, 128
  %941 = vxpose.xlu0.b32.cont [12/16] 0.0, 128
  %942 = vxpose.xlu0.b32.cont [13/16] 0.0, 128
  %943 = vxpose.xlu0.b32.cont [14/16] 0.0, 128
  %944 = vxpose.xlu0.b32.cont [15/16] 0.0, 128
  %945 = vxpose.xlu0.b32.end [16/16] 0.0, 128
  %v946 = vpop.trf.xlu0
  %v947 = vpop.trf.xlu0
  %v948 = vpop.trf.xlu0
  %v949 = vpop.trf.xlu0
  %v950 = vpop.trf.xlu0
  %v951 = vpop.trf.xlu0
  %v952 = vpop.trf.xlu0
  %v953 = vpop.trf.xlu0
  %v954 = vpop.trf.xlu0
  %v955 = vpop.trf.xlu0
  %v956 = vpop.trf.xlu0
  %v957 = vpop.trf.xlu0
  %v958 = vpop.trf.xlu0
  %v959 = vpop.trf.xlu0
  %v960 = vpop.trf.xlu0
  %v961 = vpop.trf.xlu0
  %v963 = vsel %vm248, %v946, 0
  %965 = vmatprep.subr.mxu0 0.0
  %966 = vmatpush1.msra.mxu0 %v32
  %967 = vmatprep.subr.mxu0 0.0
  %968 = vmatpush1.msra.mxu0 %v33
  %969 = vmatprep.subr.mxu0 0.0
  %970 = vmatpush1.msra.mxu0 0.0
  %971 = vmatprep.subr.mxu0 0.0
  %972 = vmatpush1.msra.mxu0 0.0
  %973 = vmatprep.subr.mxu0 0.0
  %974 = vmatpush1.msra.mxu0 0.0
  %975 = vmatprep.subr.mxu0 0.0
  %976 = vmatpush1.msra.mxu0 0.0
  %977 = vmatprep.subr.mxu0 0.0
  %978 = vmatpush1.msra.mxu0 0.0
  %979 = vmatprep.subr.mxu0 0.0
  %980 = vmatpush1.msra.mxu0 0.0
  %981 = vmatprep.subr.mxu0 0.0
  %982 = vmatpush1.msra.mxu0 0.0
  %983 = vmatprep.subr.mxu0 0.0
  %984 = vmatpush1.msra.mxu0 0.0
  %985 = vmatprep.subr.mxu0 0.0
  %986 = vmatpush1.msra.mxu0 0.0
  %987 = vmatprep.subr.mxu0 0.0
  %988 = vmatpush1.msra.mxu0 0.0
  %989 = vmatprep.subr.mxu0 0.0
  %990 = vmatpush1.msra.mxu0 0.0
  %991 = vmatprep.subr.mxu0 0.0
  %992 = vmatpush1.msra.mxu0 0.0
  %993 = vmatprep.subr.mxu0 0.0
  %994 = vmatpush1.msra.mxu0 0.0
  %995 = vmatprep.subr.mxu0 0.0
  %996 = vmatpush1.msra.mxu0 0.0
  %997 = vmatprep.subr.mxu0 0.0
  %998 = vmatpush1.msra.mxu0 0.0
  %999 = vmatprep.subr.mxu0 0.0
  %1000 = vmatpush1.msra.mxu0 0.0
  %1001 = vmatprep.subr.mxu0 0.0
  %1002 = vmatpush1.msra.mxu0 0.0
  %1003 = vmatprep.subr.mxu0 0.0
  %1004 = vmatpush1.msra.mxu0 0.0
  %1005 = vmatprep.subr.mxu0 0.0
  %1006 = vmatpush1.msra.mxu0 0.0
  %1007 = vmatprep.subr.mxu0 0.0
  %1008 = vmatpush1.msra.mxu0 0.0
  %1009 = vmatprep.subr.mxu0 0.0
  %1010 = vmatpush1.msra.mxu0 0.0
  %1011 = vmatprep.subr.mxu0 0.0
  %1012 = vmatpush1.msra.mxu0 0.0
  %1013 = vmatprep.subr.mxu0 0.0
  %1014 = vmatpush1.msra.mxu0 0.0
  %1015 = vmatprep.subr.mxu0 0.0
  %1016 = vmatpush1.msra.mxu0 0.0
  %1017 = vmatprep.subr.mxu0 0.0
  %1018 = vmatpush1.msra.mxu0 0.0
  %1019 = vmatprep.subr.mxu0 0.0
  %1020 = vmatpush1.msra.mxu0 0.0
  %1021 = vmatprep.subr.mxu0 0.0
  %1022 = vmatpush1.msra.mxu0 0.0
  %1023 = vmatprep.subr.mxu0 0.0
  %1024 = vmatpush1.msra.mxu0 0.0
  %1025 = vmatprep.subr.mxu0 0.0
  %1026 = vmatpush1.msra.mxu0 0.0
  %1027 = vmatprep.subr.mxu0 0.0
  %1028 = vmatpush1.msra.mxu0 0.0
  %1029 = vmatprep.mubr.f32.mxu0 0.0
  %1030 = vmatmul.mubr.f32.gmra.mrb[0].mxu0 %v963
  %v1031 = vpop.f32.mrb[0].mxu0
  %v1032 = vadd.f32 %v214, %v1031
  %v1033 = vpop.f32.mrb[0].mxu0
  %1034 = vdwg.mxu0
  %1035 = vmatprep.subr.mxu0 0.0
  %1036 = vmatpush1.msra.mxu0 %v35
  %1037 = vmatprep.subr.mxu0 0.0
  %1038 = vmatpush1.msra.mxu0 %v36
  %1039 = vmatprep.subr.mxu0 0.0
  %1040 = vmatpush1.msra.mxu0 0.0
  %1041 = vmatprep.subr.mxu0 0.0
  %1042 = vmatpush1.msra.mxu0 0.0
  %1043 = vmatprep.subr.mxu0 0.0
  %1044 = vmatpush1.msra.mxu0 0.0
  %1045 = vmatprep.subr.mxu0 0.0
  %1046 = vmatpush1.msra.mxu0 0.0
  %1047 = vmatprep.subr.mxu0 0.0
  %1048 = vmatpush1.msra.mxu0 0.0
  %1049 = vmatprep.subr.mxu0 0.0
  %1050 = vmatpush1.msra.mxu0 0.0
  %1051 = vmatprep.subr.mxu0 0.0
  %1052 = vmatpush1.msra.mxu0 0.0
  %1053 = vmatprep.subr.mxu0 0.0
  %1054 = vmatpush1.msra.mxu0 0.0
  %1055 = vmatprep.subr.mxu0 0.0
  %1056 = vmatpush1.msra.mxu0 0.0
  %1057 = vmatprep.subr.mxu0 0.0
  %1058 = vmatpush1.msra.mxu0 0.0
  %1059 = vmatprep.subr.mxu0 0.0
  %1060 = vmatpush1.msra.mxu0 0.0
  %1061 = vmatprep.subr.mxu0 0.0
  %1062 = vmatpush1.msra.mxu0 0.0
  %1063 = vmatprep.subr.mxu0 0.0
  %1064 = vmatpush1.msra.mxu0 0.0
  %1065 = vmatprep.subr.mxu0 0.0
  %1066 = vmatpush1.msra.mxu0 0.0
  %1067 = vmatprep.subr.mxu0 0.0
  %1068 = vmatpush1.msra.mxu0 0.0
  %1069 = vmatprep.subr.mxu0 0.0
  %1070 = vmatpush1.msra.mxu0 0.0
  %1071 = vmatprep.subr.mxu0 0.0
  %1072 = vmatpush1.msra.mxu0 0.0
  %1073 = vmatprep.subr.mxu0 0.0
  %1074 = vmatpush1.msra.mxu0 0.0
  %1075 = vmatprep.subr.mxu0 0.0
  %1076 = vmatpush1.msra.mxu0 0.0
  %1077 = vmatprep.subr.mxu0 0.0
  %1078 = vmatpush1.msra.mxu0 0.0
  %1079 = vmatprep.subr.mxu0 0.0
  %1080 = vmatpush1.msra.mxu0 0.0
  %1081 = vmatprep.subr.mxu0 0.0
  %1082 = vmatpush1.msra.mxu0 0.0
  %1083 = vmatprep.subr.mxu0 0.0
  %1084 = vmatpush1.msra.mxu0 0.0
  %1085 = vmatprep.subr.mxu0 0.0
  %1086 = vmatpush1.msra.mxu0 0.0
  %1087 = vmatprep.subr.mxu0 0.0
  %1088 = vmatpush1.msra.mxu0 0.0
  %1089 = vmatprep.subr.mxu0 0.0
  %1090 = vmatpush1.msra.mxu0 0.0
  %1091 = vmatprep.subr.mxu0 0.0
  %1092 = vmatpush1.msra.mxu0 0.0
  %1093 = vmatprep.subr.mxu0 0.0
  %1094 = vmatpush1.msra.mxu0 0.0
  %1095 = vmatprep.subr.mxu0 0.0
  %1096 = vmatpush1.msra.mxu0 0.0
  %1097 = vmatprep.subr.mxu0 0.0
  %1098 = vmatpush1.msra.mxu0 0.0
  %1099 = vmatprep.mubr.f32.mxu0 0.0
  %1100 = vmatmul.mubr.f32.gmra.mrb[0].mxu0 %v963
  %v1101 = vpop.f32.mrb[0].mxu0
  %v1102 = vadd.f32 %v326, %v1101
  %v1103 = vpop.f32.mrb[0].mxu0
  %1104 = vdwg.mxu0
  %v1105 = vmax.f32 %v1032, 0.0
  %1106 = vxpose.xlu0.b32.start [1/16] %v1032, 128
  %1107 = vxpose.xlu0.b32.cont [2/16] 0.0, 128
  %1108 = vxpose.xlu0.b32.cont [3/16] 0.0, 128
  %1109 = vxpose.xlu0.b32.cont [4/16] 0.0, 128
  %1110 = vxpose.xlu0.b32.cont [5/16] 0.0, 128
  %1111 = vxpose.xlu0.b32.cont [6/16] 0.0, 128
  %1112 = vxpose.xlu0.b32.cont [7/16] 0.0, 128
  %1113 = vxpose.xlu0.b32.cont [8/16] 0.0, 128
  %1114 = vxpose.xlu0.b32.cont [9/16] 0.0, 128
  %1115 = vxpose.xlu0.b32.cont [10/16] 0.0, 128
  %1116 = vxpose.xlu0.b32.cont [11/16] 0.0, 128
  %1117 = vxpose.xlu0.b32.cont [12/16] 0.0, 128
  %1118 = vxpose.xlu0.b32.cont [13/16] 0.0, 128
  %1119 = vxpose.xlu0.b32.cont [14/16] 0.0, 128
  %1120 = vxpose.xlu0.b32.cont [15/16] 0.0, 128
  %1121 = vxpose.xlu0.b32.end [16/16] 0.0, 128
  %v1122 = vpop.trf.xlu0
  %v1123 = vpop.trf.xlu0
  %v1124 = vpop.trf.xlu0
  %v1125 = vpop.trf.xlu0
  %v1126 = vpop.trf.xlu0
  %v1127 = vpop.trf.xlu0
  %v1128 = vpop.trf.xlu0
  %v1129 = vpop.trf.xlu0
  %v1130 = vpop.trf.xlu0
  %v1131 = vpop.trf.xlu0
  %v1132 = vpop.trf.xlu0
  %v1133 = vpop.trf.xlu0
  %v1134 = vpop.trf.xlu0
  %v1135 = vpop.trf.xlu0
  %v1136 = vpop.trf.xlu0
  %v1137 = vpop.trf.xlu0
  %v1139 = vsel %vm76, %v1122, 0
  %v1142 = vsel %vm76, %v1123, 0
  %1144 = vmatprep.subr.mxu0 0.0
  %1145 = vmatpush1.msra.mxu0 %v1032
  %1146 = vmatprep.subr.mxu0 0.0
  %1147 = vmatpush1.msra.mxu0 0.0
  %1148 = vmatprep.subr.mxu0 0.0
  %1149 = vmatpush1.msra.mxu0 0.0
  %1150 = vmatprep.subr.mxu0 0.0
  %1151 = vmatpush1.msra.mxu0 0.0
  %1152 = vmatprep.subr.mxu0 0.0
  %1153 = vmatpush1.msra.mxu0 0.0
  %1154 = vmatprep.subr.mxu0 0.0
  %1155 = vmatpush1.msra.mxu0 0.0
  %1156 = vmatprep.subr.mxu0 0.0
  %1157 = vmatpush1.msra.mxu0 0.0
  %1158 = vmatprep.subr.mxu0 0.0
  %1159 = vmatpush1.msra.mxu0 0.0
  %1160 = vmatprep.subr.mxu0 0.0
  %1161 = vmatpush1.msra.mxu0 0.0
  %1162 = vmatprep.subr.mxu0 0.0
  %1163 = vmatpush1.msra.mxu0 0.0
  %1164 = vmatprep.subr.mxu0 0.0
  %1165 = vmatpush1.msra.mxu0 0.0
  %1166 = vmatprep.subr.mxu0 0.0
  %1167 = vmatpush1.msra.mxu0 0.0
  %1168 = vmatprep.subr.mxu0 0.0
  %1169 = vmatpush1.msra.mxu0 0.0
  %1170 = vmatprep.subr.mxu0 0.0
  %1171 = vmatpush1.msra.mxu0 0.0
  %1172 = vmatprep.subr.mxu0 0.0
  %1173 = vmatpush1.msra.mxu0 0.0
  %1174 = vmatprep.subr.mxu0 0.0
  %1175 = vmatpush1.msra.mxu0 0.0
  %1176 = vmatprep.subr.mxu0 0.0
  %1177 = vmatpush1.msra.mxu0 0.0
  %1178 = vmatprep.subr.mxu0 0.0
  %1179 = vmatpush1.msra.mxu0 0.0
  %1180 = vmatprep.subr.mxu0 0.0
  %1181 = vmatpush1.msra.mxu0 0.0
  %1182 = vmatprep.subr.mxu0 0.0
  %1183 = vmatpush1.msra.mxu0 0.0
  %1184 = vmatprep.subr.mxu0 0.0
  %1185 = vmatpush1.msra.mxu0 0.0
  %1186 = vmatprep.subr.mxu0 0.0
  %1187 = vmatpush1.msra.mxu0 0.0
  %1188 = vmatprep.subr.mxu0 0.0
  %1189 = vmatpush1.msra.mxu0 0.0
  %1190 = vmatprep.subr.mxu0 0.0
  %1191 = vmatpush1.msra.mxu0 0.0
  %1192 = vmatprep.subr.mxu0 0.0
  %1193 = vmatpush1.msra.mxu0 0.0
  %1194 = vmatprep.subr.mxu0 0.0
  %1195 = vmatpush1.msra.mxu0 0.0
  %1196 = vmatprep.subr.mxu0 0.0
  %1197 = vmatpush1.msra.mxu0 0.0
  %1198 = vmatprep.subr.mxu0 0.0
  %1199 = vmatpush1.msra.mxu0 0.0
  %1200 = vmatprep.subr.mxu0 0.0
  %1201 = vmatpush1.msra.mxu0 0.0
  %1202 = vmatprep.subr.mxu0 0.0
  %1203 = vmatpush1.msra.mxu0 0.0
  %1204 = vmatprep.subr.mxu0 0.0
  %1205 = vmatpush1.msra.mxu0 0.0
  %1206 = vmatprep.subr.mxu0 0.0
  %1207 = vmatpush1.msra.mxu0 0.0
  %1208 = vmatprep.mubr.f32.mxu0 0.0
  %1209 = vmatmul.mubr.f32.gmra.mrb[0].mxu0 %v1139
  %v1210 = vpop.f32.mrb[0].mxu0
  %v1211 = vadd.f32 0.0, %v1210
  %v1212 = vpop.f32.mrb[0].mxu0
  %1213 = vmatprep.mubr.f32.mxu0 0.0
  %1214 = vmatmul.mubr.f32.gmra.mrb[0].mxu0 %v1142
  %v1215 = vpop.f32.mrb[0].mxu0
  %v1216 = vadd.f32 0.0, %v1215
  %v1217 = vpop.f32.mrb[0].mxu0
  %1218 = vdwg.mxu0
  %1219 = vxpose.xlu0.b32.start [1/16] %v1105, 128
  %1220 = vxpose.xlu0.b32.cont [2/16] 0.0, 128
  %1221 = vxpose.xlu0.b32.cont [3/16] 0.0, 128
  %1222 = vxpose.xlu0.b32.cont [4/16] 0.0, 128
  %1223 = vxpose.xlu0.b32.cont [5/16] 0.0, 128
  %1224 = vxpose.xlu0.b32.cont [6/16] 0.0, 128
  %1225 = vxpose.xlu0.b32.cont [7/16] 0.0, 128
  %1226 = vxpose.xlu0.b32.cont [8/16] 0.0, 128
  %1227 = vxpose.xlu0.b32.cont [9/16] 0.0, 128
  %1228 = vxpose.xlu0.b32.cont [10/16] 0.0, 128
  %1229 = vxpose.xlu0.b32.cont [11/16] 0.0, 128
  %1230 = vxpose.xlu0.b32.cont [12/16] 0.0, 128
  %1231 = vxpose.xlu0.b32.cont [13/16] 0.0, 128
  %1232 = vxpose.xlu0.b32.cont [14/16] 0.0, 128
  %1233 = vxpose.xlu0.b32.cont [15/16] 0.0, 128
  %1234 = vxpose.xlu0.b32.end [16/16] 0.0, 128
  %v1235 = vpop.trf.xlu0
  %v1236 = vpop.trf.xlu0
  %v1237 = vpop.trf.xlu0
  %v1238 = vpop.trf.xlu0
  %v1239 = vpop.trf.xlu0
  %v1240 = vpop.trf.xlu0
  %v1241 = vpop.trf.xlu0
  %v1242 = vpop.trf.xlu0
  %v1243 = vpop.trf.xlu0
  %v1244 = vpop.trf.xlu0
  %v1245 = vpop.trf.xlu0
  %v1246 = vpop.trf.xlu0
  %v1247 = vpop.trf.xlu0
  %v1248 = vpop.trf.xlu0
  %v1249 = vpop.trf.xlu0
  %v1250 = vpop.trf.xlu0
  %v1252 = vsel %vm76, %v1235, 0
  %v1255 = vsel %vm76, %v1236, 0
  %1257 = vmatprep.subr.mxu0 0.0
  %1258 = vmatpush1.msra.mxu0 %v1032
  %1259 = vmatprep.subr.mxu0 0.0
  %1260 = vmatpush1.msra.mxu0 0.0
  %1261 = vmatprep.subr.mxu0 0.0
  %1262 = vmatpush1.msra.mxu0 0.0
  %1263 = vmatprep.subr.mxu0 0.0
  %1264 = vmatpush1.msra.mxu0 0.0
  %1265 = vmatprep.subr.mxu0 0.0
  %1266 = vmatpush1.msra.mxu0 0.0
  %1267 = vmatprep.subr.mxu0 0.0
  %1268 = vmatpush1.msra.mxu0 0.0
  %1269 = vmatprep.subr.mxu0 0.0
  %1270 = vmatpush1.msra.mxu0 0.0
  %1271 = vmatprep.subr.mxu0 0.0
  %1272 = vmatpush1.msra.mxu0 0.0
  %1273 = vmatprep.subr.mxu0 0.0
  %1274 = vmatpush1.msra.mxu0 0.0
  %1275 = vmatprep.subr.mxu0 0.0
  %1276 = vmatpush1.msra.mxu0 0.0
  %1277 = vmatprep.subr.mxu0 0.0
  %1278 = vmatpush1.msra.mxu0 0.0
  %1279 = vmatprep.subr.mxu0 0.0
  %1280 = vmatpush1.msra.mxu0 0.0
  %1281 = vmatprep.subr.mxu0 0.0
  %1282 = vmatpush1.msra.mxu0 0.0
  %1283 = vmatprep.subr.mxu0 0.0
  %1284 = vmatpush1.msra.mxu0 0.0
  %1285 = vmatprep.subr.mxu0 0.0
  %1286 = vmatpush1.msra.mxu0 0.0
  %1287 = vmatprep.subr.mxu0 0.0
  %1288 = vmatpush1.msra.mxu0 0.0
  %1289 = vmatprep.subr.mxu0 0.0
  %1290 = vmatpush1.msra.mxu0 0.0
  %1291 = vmatprep.subr.mxu0 0.0
  %1292 = vmatpush1.msra.mxu0 0.0
  %1293 = vmatprep.subr.mxu0 0.0
  %1294 = vmatpush1.msra.mxu0 0.0
  %1295 = vmatprep.subr.mxu0 0.0
  %1296 = vmatpush1.msra.mxu0 0.0
  %1297 = vmatprep.subr.mxu0 0.0
  %1298 = vmatpush1.msra.mxu0 0.0
  %1299 = vmatprep.subr.mxu0 0.0
  %1300 = vmatpush1.msra.mxu0 0.0
  %1301 = vmatprep.subr.mxu0 0.0
  %1302 = vmatpush1.msra.mxu0 0.0
  %1303 = vmatprep.subr.mxu0 0.0
  %1304 = vmatpush1.msra.mxu0 0.0
  %1305 = vmatprep.subr.mxu0 0.0
  %1306 = vmatpush1.msra.mxu0 0.0
  %1307 = vmatprep.subr.mxu0 0.0
  %1308 = vmatpush1.msra.mxu0 0.0
  %1309 = vmatprep.subr.mxu0 0.0
  %1310 = vmatpush1.msra.mxu0 0.0
  %1311 = vmatprep.subr.mxu0 0.0
  %1312 = vmatpush1.msra.mxu0 0.0
  %1313 = vmatprep.subr.mxu0 0.0
  %1314 = vmatpush1.msra.mxu0 0.0
  %1315 = vmatprep.subr.mxu0 0.0
  %1316 = vmatpush1.msra.mxu0 0.0
  %1317 = vmatprep.subr.mxu0 0.0
  %1318 = vmatpush1.msra.mxu0 0.0
  %1319 = vmatprep.subr.mxu0 0.0
  %1320 = vmatpush1.msra.mxu0 0.0
  %1321 = vmatprep.mubr.f32.mxu0 0.0
  %1322 = vmatmul.mubr.f32.gmra.mrb[0].mxu0 %v1252
  %v1323 = vpop.f32.mrb[0].mxu0
  %v1324 = vadd.f32 0.0, %v1323
  %v1325 = vpop.f32.mrb[0].mxu0
  %1326 = vmatprep.mubr.f32.mxu0 0.0
  %1327 = vmatmul.mubr.f32.gmra.mrb[0].mxu0 %v1255
  %v1328 = vpop.f32.mrb[0].mxu0
  %v1329 = vadd.f32 0.0, %v1328
  %v1330 = vpop.f32.mrb[0].mxu0
  %1331 = vdwg.mxu0
  %v1333 = vsel %vm248, %v1105, 0
  %1335 = vmatprep.subr.mxu0 0.0
  %1336 = vmatpush1.msra.mxu0 %v1324
  %1337 = vmatprep.subr.mxu0 0.0
  %1338 = vmatpush1.msra.mxu0 %v1329
  %1339 = vmatprep.subr.mxu0 0.0
  %1340 = vmatpush1.msra.mxu0 0.0
  %1341 = vmatprep.subr.mxu0 0.0
  %1342 = vmatpush1.msra.mxu0 0.0
  %1343 = vmatprep.subr.mxu0 0.0
  %1344 = vmatpush1.msra.mxu0 0.0
  %1345 = vmatprep.subr.mxu0 0.0
  %1346 = vmatpush1.msra.mxu0 0.0
  %1347 = vmatprep.subr.mxu0 0.0
  %1348 = vmatpush1.msra.mxu0 0.0
  %1349 = vmatprep.subr.mxu0 0.0
  %1350 = vmatpush1.msra.mxu0 0.0
  %1351 = vmatprep.subr.mxu0 0.0
  %1352 = vmatpush1.msra.mxu0 0.0
  %1353 = vmatprep.subr.mxu0 0.0
  %1354 = vmatpush1.msra.mxu0 0.0
  %1355 = vmatprep.subr.mxu0 0.0
  %1356 = vmatpush1.msra.mxu0 0.0
  %1357 = vmatprep.subr.mxu0 0.0
  %1358 = vmatpush1.msra.mxu0 0.0
  %1359 = vmatprep.subr.mxu0 0.0
  %1360 = vmatpush1.msra.mxu0 0.0
  %1361 = vmatprep.subr.mxu0 0.0
  %1362 = vmatpush1.msra.mxu0 0.0
  %1363 = vmatprep.subr.mxu0 0.0
  %1364 = vmatpush1.msra.mxu0 0.0
  %1365 = vmatprep.subr.mxu0 0.0
  %1366 = vmatpush1.msra.mxu0 0.0
  %1367 = vmatprep.subr.mxu0 0.0
  %1368 = vmatpush1.msra.mxu0 0.0
  %1369 = vmatprep.subr.mxu0 0.0
  %1370 = vmatpush1.msra.mxu0 0.0
  %1371 = vmatprep.subr.mxu0 0.0
  %1372 = vmatpush1.msra.mxu0 0.0
  %1373 = vmatprep.subr.mxu0 0.0
  %1374 = vmatpush1.msra.mxu0 0.0
  %1375 = vmatprep.subr.mxu0 0.0
  %1376 = vmatpush1.msra.mxu0 0.0
  %1377 = vmatprep.subr.mxu0 0.0
  %1378 = vmatpush1.msra.mxu0 0.0
  %1379 = vmatprep.subr.mxu0 0.0
  %1380 = vmatpush1.msra.mxu0 0.0
  %1381 = vmatprep.subr.mxu0 0.0
  %1382 = vmatpush1.msra.mxu0 0.0
  %1383 = vmatprep.subr.mxu0 0.0
  %1384 = vmatpush1.msra.mxu0 0.0
  %1385 = vmatprep.subr.mxu0 0.0
  %1386 = vmatpush1.msra.mxu0 0.0
  %1387 = vmatprep.subr.mxu0 0.0
  %1388 = vmatpush1.msra.mxu0 0.0
  %1389 = vmatprep.subr.mxu0 0.0
  %1390 = vmatpush1.msra.mxu0 0.0
  %1391 = vmatprep.subr.mxu0 0.0
  %1392 = vmatpush1.msra.mxu0 0.0
  %1393 = vmatprep.subr.mxu0 0.0
  %1394 = vmatpush1.msra.mxu0 0.0
  %1395 = vmatprep.subr.mxu0 0.0
  %1396 = vmatpush1.msra.mxu0 0.0
  %1397 = vmatprep.subr.mxu0 0.0
  %1398 = vmatpush1.msra.mxu0 0.0
  %1399 = vmatprep.mubr.f32.mxu0 0.0
  %1400 = vmatmul.mubr.f32.gmra.mrb[0].mxu0 %v1333
  %v1401 = vpop.f32.mrb[0].mxu0
  %v1402 = vadd.f32 0.0, %v1401
  %v1403 = vpop.f32.mrb[0].mxu0
  %1404 = vdwg.mxu0
  %1405 = vmatprep.subr.mxu0 0.0
  %1406 = vmatpush1.msra.mxu0 %v1402
  %1407 = vmatprep.subr.mxu0 0.0
  %1408 = vmatpush1.msra.mxu0 0.0
  %1409 = vmatprep.subr.mxu0 0.0
  %1410 = vmatpush1.msra.mxu0 0.0
  %1411 = vmatprep.subr.mxu0 0.0
  %1412 = vmatpush1.msra.mxu0 0.0
  %1413 = vmatprep.subr.mxu0 0.0
  %1414 = vmatpush1.msra.mxu0 0.0
  %1415 = vmatprep.subr.mxu0 0.0
  %1416 = vmatpush1.msra.mxu0 0.0
  %1417 = vmatprep.subr.mxu0 0.0
  %1418 = vmatpush1.msra.mxu0 0.0
  %1419 = vmatprep.subr.mxu0 0.0
  %1420 = vmatpush1.msra.mxu0 0.0
  %1421 = vmatprep.subr.mxu0 0.0
  %1422 = vmatpush1.msra.mxu0 0.0
  %1423 = vmatprep.subr.mxu0 0.0
  %1424 = vmatpush1.msra.mxu0 0.0
  %1425 = vmatprep.subr.mxu0 0.0
  %1426 = vmatpush1.msra.mxu0 0.0
  %1427 = vmatprep.subr.mxu0 0.0
  %1428 = vmatpush1.msra.mxu0 0.0
  %1429 = vmatprep.subr.mxu0 0.0
  %1430 = vmatpush1.msra.mxu0 0.0
  %1431 = vmatprep.subr.mxu0 0.0
  %1432 = vmatpush1.msra.mxu0 0.0
  %1433 = vmatprep.subr.mxu0 0.0
  %1434 = vmatpush1.msra.mxu0 0.0
  %1435 = vmatprep.subr.mxu0 0.0
  %1436 = vmatpush1.msra.mxu0 0.0
  %1437 = vmatprep.subr.mxu0 0.0
  %1438 = vmatpush1.msra.mxu0 0.0
  %1439 = vmatprep.subr.mxu0 0.0
  %1440 = vmatpush1.msra.mxu0 0.0
  %1441 = vmatprep.subr.mxu0 0.0
  %1442 = vmatpush1.msra.mxu0 0.0
  %1443 = vmatprep.subr.mxu0 0.0
  %1444 = vmatpush1.msra.mxu0 0.0
  %1445 = vmatprep.subr.mxu0 0.0
  %1446 = vmatpush1.msra.mxu0 0.0
  %1447 = vmatprep.subr.mxu0 0.0
  %1448 = vmatpush1.msra.mxu0 0.0
  %1449 = vmatprep.subr.mxu0 0.0
  %1450 = vmatpush1.msra.mxu0 0.0
  %1451 = vmatprep.subr.mxu0 0.0
  %1452 = vmatpush1.msra.mxu0 0.0
  %1453 = vmatprep.subr.mxu0 0.0
  %1454 = vmatpush1.msra.mxu0 0.0
  %1455 = vmatprep.subr.mxu0 0.0
  %1456 = vmatpush1.msra.mxu0 0.0
  %1457 = vmatprep.subr.mxu0 0.0
  %1458 = vmatpush1.msra.mxu0 0.0
  %1459 = vmatprep.subr.mxu0 0.0
  %1460 = vmatpush1.msra.mxu0 0.0
  %1461 = vmatprep.subr.mxu0 0.0
  %1462 = vmatpush1.msra.mxu0 0.0
  %1463 = vmatprep.subr.mxu0 0.0
  %1464 = vmatpush1.msra.mxu0 0.0
  %1465 = vmatprep.subr.mxu0 0.0
  %1466 = vmatpush1.msra.mxu0 0.0
  %1467 = vmatprep.subr.mxu0 0.0
  %1468 = vmatpush1.msra.mxu0 0.0
  %1469 = vmatprep.mubr.f32.mxu0 0.0
  %1470 = vmatmul.mubr.f32.gmra.mrb[0].mxu0 %v1139
  %v1471 = vpop.f32.mrb[0].mxu0
  %v1472 = vadd.f32 0.0, %v1471
  %v1473 = vpop.f32.mrb[0].mxu0
  %1474 = vmatprep.mubr.f32.mxu0 0.0
  %1475 = vmatmul.mubr.f32.gmra.mrb[0].mxu0 %v1142
  %v1476 = vpop.f32.mrb[0].mxu0
  %v1477 = vadd.f32 0.0, %v1476
  %v1478 = vpop.f32.mrb[0].mxu0
  %1479 = vdwg.mxu0
  %s1480 = scalar_lea.vmem %s8, 16
  %1481 = vst.msk [vmem:[%s1480] sm:$0xff] %vm248, %v1211
  %1482 = vst.msk [vmem:[%s1480 + $0x8] sm:$0xff] %vm248, %v1216
  %1485 = vrot.lane.b32.xlu0 %v1472, 16
  %v1486 = vpop.permute.xlu0 %1485
  %1487 = vrot.lane.b32.xlu0 %v1477, 16
  %v1488 = vpop.permute.xlu0 %1487
  %1491 = vst.msk [vmem:[%s1480] sm:$0xff] %vm783, %v1486
  %1492 = vst.msk [vmem:[%s1480 + $0x8] sm:$0xff] %vm783, %v1488
  %1494 = vrot.lane.b32.xlu0 %v1102, 32
  %v1495 = vpop.permute.xlu0 %1494
  %1497 = vst.msk [vmem:[%s1480] sm:$0xff] %vm790, %v1495
  %1500 = vrot.lane.b32.xlu0 %v928, 48
  %v1501 = vpop.permute.xlu0 %1500
  %1502 = vrot.lane.b32.xlu0 %v929, 48
  %v1503 = vpop.permute.xlu0 %1502
  %1506 = vst.msk [vmem:[%s1480] sm:$0xff] %vm800, %v1501
  %1507 = vst.msk [vmem:[%s1480 + $0x8] sm:$0xff] %vm800, %v1503
  %1509 = vrot.lane.b32.xlu0 %v900, 56
  %v1510 = vpop.permute.xlu0 %1509
  %1512 = vst.msk [vmem:[%s1480] sm:$0x1] %vm807, %v1510
  %1514 = vrot.lane.b32.xlu0 %v922, 56
  %v1515 = vpop.permute.xlu0 %1514
  %1517 = vst.msk [vmem:[%s1480 + $0x1] sm:$0x1] %vm807, %v1515
  // Predicated region
  $region34: #{sgsc_forward.3} parent=0 // pred_check
    _
  $region35: #{sgsc_forward.3} parent=0 // pred_check_branch
    %1519 = sbr.rel (0) target = $region37
  $region36: #{sgsc_forward.3} parent=0 // pred_region
    _
  $region37: #{sgsc_forward.3} parent=0 // pred_fallthru
    _
  // Predicated region
  $region38: #{sgsc_forward.3} parent=0 // pred_check
    _
  $region39: #{sgsc_forward.3} parent=0 // pred_check_branch
    %1521 = sbr.rel (0) target = $region41
  $region40: #{sgsc_forward.3} parent=0 // pred_region
    _
  $region41: #{sgsc_forward.3} parent=0 // pred_fallthru
    _

// kernel: sgsc_forward.5
$region0: #{sgsc_forward.5}
  #allocation0 [shape = 'u32[]', space=smem, size = 0x4, offset = 0x4, fixed_abs, tag = 'smem constant byte address 0x4 - core index']
  #allocation1 [shape = 'u32[144,128]{1,0:T(1,128)}', space=vmem, size = 0x12000, scoped, tag = 'internal scratch']
  %s0 = inlined_call_operand.vmem [shape: f32[2,1,16], index: 0, kind: input, shape index: {}]
  %s1 = inlined_call_operand.vmem [shape: f32[2,16,16], index: 1, kind: input, shape index: {}]
  %s2 = inlined_call_operand.vmem [shape: f32[2,16,16], index: 2, kind: input, shape index: {}]
  %s3 = inlined_call_operand.vmem [shape: f32[2,16,64], index: 3, kind: input, shape index: {}]
  %s4 = inlined_call_operand.vmem [shape: f32[8,16], index: 4, kind: input, shape index: {}]
  %s5 = inlined_call_operand.vmem [shape: f32[1,16], index: 5, kind: input, shape index: {}]
  %s6 = inlined_call_operand.vmem [shape: f32[8,16], index: 6, kind: input, shape index: {}]
  %s7 = inlined_call_operand.vmem [shape: f32[1,16], index: 7, kind: input, shape index: {}]
  %s8 = inlined_call_operand.vmem [shape: f32[1,8], index: 8, kind: input, shape index: {}]
  %s9 = inlined_call_operand.vmem [shape: f32[1,8], index: 9, kind: input, shape index: {}]
  %s10 = inlined_call_operand.vmem [shape: f32[2,12], index: 10, kind: input, shape index: {}]
  %s11 = inlined_call_operand.vmem [shape: f32[1,12], index: 11, kind: input, shape index: {}]
  %s12 = inlined_call_operand.vmem [shape: f32[8,16,12], index: 12, kind: output, shape index: {}]
  %s13 = sld [smem:[#allocation0]]
  $region58: #{sgsc_forward.5} parent=0
    _
  %s15 = ssub.s32 1, %s13
  %s16 = scalar_select 0, %s15, %s13
  // Predicated region
  $region2: #{sgsc_forward.5} parent=0 // pred_check
    _
  $region3: #{sgsc_forward.5} parent=0 // pred_check_branch
    %18 = sbr.rel (0) target = $region5
  $region4: #{sgsc_forward.5} parent=0 // pred_region
    _
  $region5: #{sgsc_forward.5} parent=0 // pred_fallthru
    _
  // Predicated region
  $region6: #{sgsc_forward.5} parent=0 // pred_check
    _
  $region7: #{sgsc_forward.5} parent=0 // pred_check_branch
    %20 = sbr.rel (0) target = $region9
  $region8: #{sgsc_forward.5} parent=0 // pred_region
    _
  $region9: #{sgsc_forward.5} parent=0 // pred_fallthru
    _
  // Predicated region
  $region10: #{sgsc_forward.5} parent=0 // pred_check
    _
  $region11: #{sgsc_forward.5} parent=0 // pred_check_branch
    %22 = sbr.rel (0) target = $region13
  $region12: #{sgsc_forward.5} parent=0 // pred_region
    _
  $region13: #{sgsc_forward.5} parent=0 // pred_fallthru
    _
  // Predicated region
  $region14: #{sgsc_forward.5} parent=0 // pred_check
    _
  $region15: #{sgsc_forward.5} parent=0 // pred_check_branch
    %24 = sbr.rel (0) target = $region17
  $region16: #{sgsc_forward.5} parent=0 // pred_region
    _
  $region17: #{sgsc_forward.5} parent=0 // pred_fallthru
    _
  // Predicated region
  $region18: #{sgsc_forward.5} parent=0 // pred_check
    _
  $region19: #{sgsc_forward.5} parent=0 // pred_check_branch
    %26 = sbr.rel (0) target = $region21
  $region20: #{sgsc_forward.5} parent=0 // pred_region
    _
  $region21: #{sgsc_forward.5} parent=0 // pred_fallthru
    _
  // Predicated region
  $region22: #{sgsc_forward.5} parent=0 // pred_check
    _
  $region23: #{sgsc_forward.5} parent=0 // pred_check_branch
    %28 = sbr.rel (0) target = $region25
  $region24: #{sgsc_forward.5} parent=0 // pred_region
    _
  $region25: #{sgsc_forward.5} parent=0 // pred_fallthru
    _
  // Predicated region
  $region26: #{sgsc_forward.5} parent=0 // pred_check
    _
  $region27: #{sgsc_forward.5} parent=0 // pred_check_branch
    %30 = sbr.rel (0) target = $region29
  $region28: #{sgsc_forward.5} parent=0 // pred_region
    _
  $region29: #{sgsc_forward.5} parent=0 // pred_fallthru
    _
  // Predicated region
  $region30: #{sgsc_forward.5} parent=0 // pred_check
    _
  $region31: #{sgsc_forward.5} parent=0 // pred_check_branch
    %32 = sbr.rel (0) target = $region33
  $region32: #{sgsc_forward.5} parent=0 // pred_region
    _
  $region33: #{sgsc_forward.5} parent=0 // pred_fallthru
    _
  // Predicated region
  $region34: #{sgsc_forward.5} parent=0 // pred_check
    _
  $region35: #{sgsc_forward.5} parent=0 // pred_check_branch
    %34 = sbr.rel (0) target = $region37
  $region36: #{sgsc_forward.5} parent=0 // pred_region
    _
  $region37: #{sgsc_forward.5} parent=0 // pred_fallthru
    _
  // Predicated region
  $region38: #{sgsc_forward.5} parent=0 // pred_check
    _
  $region39: #{sgsc_forward.5} parent=0 // pred_check_branch
    %36 = sbr.rel (0) target = $region41
  $region40: #{sgsc_forward.5} parent=0 // pred_region
    _
  $region41: #{sgsc_forward.5} parent=0 // pred_fallthru
    _
  // Predicated region
  $region42: #{sgsc_forward.5} parent=0 // pred_check
    _
  $region43: #{sgsc_forward.5} parent=0 // pred_check_branch
    %38 = sbr.rel (0) target = $region45
  $region44: #{sgsc_forward.5} parent=0 // pred_region
    _
  $region45: #{sgsc_forward.5} parent=0 // pred_fallthru
    _
  // Predicated region
  $region46: #{sgsc_forward.5} parent=0 // pred_check
    _
  $region47: #{sgsc_forward.5} parent=0 // pred_check_branch
    %40 = sbr.rel (0) target = $region49
  $region48: #{sgsc_forward.5} parent=0 // pred_region
    _
  $region49: #{sgsc_forward.5} parent=0 // pred_fallthru
    _
  %v41 = vld [vmem:[%s4] sm:$0xff]
  %v42 = vld [vmem:[%s5] sm:$0x1]
  %v43 = vld [vmem:[%s6] sm:$0xff]
  %v44 = vld [vmem:[%s7] sm:$0x1]
  %v45 = vld [vmem:[%s8] sm:$0x1]
  %v46 = vld [vmem:[%s9] sm:$0x1]
  %v47 = vld [vmem:[%s10] sm:$0x3]
  %v48 = vld [vmem:[%s11] sm:$0x1]
  %v49 = vld [vmem:[%s0] sm:$0x1]
  %vm50 = vcmp.ge.f32.partialorder %v49, 0.0
  %v51 = vmul.f32 %v49, 0.01
  %v52 = vsel %vm50, %v49, %v51
  %v53 = vadd.f32 %v52, 0.1
  %v54 = vrsqrt.pop %v53
  %v55 = vmul.f32 %v54, 0.02
  %v56 = vld [vmem:[%s1] sm:$0xff]
  %v57 = vld [vmem:[%s1 + $0x8] sm:$0xff]
  %v59 = vlaneseq
  %v60 = vshrl.u32 %v59, 7
  %v61 = vsub.s32 0, %v60
  %v62 = vrot.slane %v55, %v61
  %v64 = vmul.f32 %v56, %v62
  %v65 = vmul.f32 %v57, %v62
  %vm66 = vcmask 130048
  %v68 = vsel %vm66, %v64, 0
  %v71 = vsel %vm66, %v65, 0
  %v74 = vsel %vm66, %v56, 0
  %v77 = vsel %vm66, %v57, 0
  %79 = vmatprep.subr.mxu0 0.0
  %80 = vmatpush1.xpose.msra.mxu0 %v74
  %81 = vmatprep.subr.mxu0 0.0
  %82 = vmatpush1.xpose.msra.mxu0 %v77
  %83 = vmatprep.subr.mxu0 0.0
  %84 = vmatpush1.xpose.msra.mxu0 0.0
  %85 = vmatprep.subr.mxu0 0.0
  %86 = vmatpush1.xpose.msra.mxu0 0.0
  %87 = vmatprep.subr.mxu0 0.0
  %88 = vmatpush1.xpose.msra.mxu0 0.0
  %89 = vmatprep.subr.mxu0 0.0
  %90 = vmatpush1.xpose.msra.mxu0 0.0
  %91 = vmatprep.subr.mxu0 0.0
  %92 = vmatpush1.xpose.msra.mxu0 0.0
  %93 = vmatprep.subr.mxu0 0.0
  %94 = vmatpush1.xpose.msra.mxu0 0.0
  %95 = vmatprep.subr.mxu0 0.0
  %96 = vmatpush1.xpose.msra.mxu0 0.0
  %97 = vmatprep.subr.mxu0 0.0
  %98 = vmatpush1.xpose.msra.mxu0 0.0
  %99 = vmatprep.subr.mxu0 0.0
  %100 = vmatpush1.xpose.msra.mxu0 0.0
  %101 = vmatprep.subr.mxu0 0.0
  %102 = vmatpush1.xpose.msra.mxu0 0.0
  %103 = vmatprep.subr.mxu0 0.0
  %104 = vmatpush1.xpose.msra.mxu0 0.0
  %105 = vmatprep.subr.mxu0 0.0
  %106 = vmatpush1.xpose.msra.mxu0 0.0
  %107 = vmatprep.subr.mxu0 0.0
  %108 = vmatpush1.xpose.msra.mxu0 0.0
  %109 = vmatprep.subr.mxu0 0.0
  %110 = vmatpush1.xpose.msra.mxu0 0.0
  %111 = vmatprep.subr.mxu0 0.0
  %112 = vmatpush1.xpose.msra.mxu0 0.0
  %113 = vmatprep.subr.mxu0 0.0
  %114 = vmatpush1.xpose.msra.mxu0 0.0
  %115 = vmatprep.subr.mxu0 0.0
  %116 = vmatpush1.xpose.msra.mxu0 0.0
  %117 = vmatprep.subr.mxu0 0.0
  %118 = vmatpush1.xpose.msra.mxu0 0.0
  %119 = vmatprep.subr.mxu0 0.0
  %120 = vmatpush1.xpose.msra.mxu0 0.0
  %121 = vmatprep.subr.mxu0 0.0
  %122 = vmatpush1.xpose.msra.mxu0 0.0
  %123 = vmatprep.subr.mxu0 0.0
  %124 = vmatpush1.xpose.msra.mxu0 0.0
  %125 = vmatprep.subr.mxu0 0.0
  %126 = vmatpush1.xpose.msra.mxu0 0.0
  %127 = vmatprep.subr.mxu0 0.0
  %128 = vmatpush1.xpose.msra.mxu0 0.0
  %129 = vmatprep.subr.mxu0 0.0
  %130 = vmatpush1.xpose.msra.mxu0 0.0
  %131 = vmatprep.subr.mxu0 0.0
  %132 = vmatpush1.xpose.msra.mxu0 0.0
  %133 = vmatprep.subr.mxu0 0.0
  %134 = vmatpush1.xpose.msra.mxu0 0.0
  %135 = vmatprep.subr.mxu0 0.0
  %136 = vmatpush1.xpose.msra.mxu0 0.0
  %137 = vmatprep.subr.mxu0 0.0
  %138 = vmatpush1.xpose.msra.mxu0 0.0
  %139 = vmatprep.subr.mxu0 0.0
  %140 = vmatpush1.xpose.msra.mxu0 0.0
  %141 = vmatprep.subr.mxu0 0.0
  %142 = vmatpush1.xpose.msra.mxu0 0.0
  %143 = vmatprep.mubr.f32.mxu0 0.0
  %144 = vmatmul.mubr.f32.gmra.mrb[0].mxu0 %v68
  %v145 = vpop.f32.mrb[0].mxu0
  %v146 = vadd.f32 0.0, %v145
  %v147 = vpop.f32.mrb[0].mxu0
  %148 = vmatprep.mubr.f32.mxu0 0.0
  %149 = vmatmul.mubr.f32.gmra.mrb[0].mxu0 %v71
  %v150 = vpop.f32.mrb[0].mxu0
  %v151 = vadd.f32 0.0, %v150
  %v152 = vpop.f32.mrb[0].mxu0
  %153 = vdwg.mxu0
  %v154 = vld [vmem:[%s2] sm:$0xff]
  %v155 = vld [vmem:[%s2 + $0x8] sm:$0xff]
  %v156 = vmul.f32 %v146, %v154
  %v157 = vmul.f32 %v151, %v155
  %v158 = vsel %vm66, %v156, 0.0
  %v159 = vsel %vm66, %v157, 0.0
  %v160 = vadd.f32 %v158, %v159
  %v161 = vrot.slane %v160, 4
  %v162 = vadd.f32 %v160, %v161
  %v163 = vrot.slane %v162, 2
  %v164 = vadd.f32 %v162, %v163
  %v165 = vrot.slane %v164, 1
  %v166 = vadd.f32 %v164, %v165
  %v167 = vmul.f32 %v166, 0.02
  %v168 = vld [vmem:[%s3] sm:$0xff]
  %v169 = vld [vmem:[%s3 + $0x8] sm:$0xff]
  %171 = vrot.lane.b32.xlu0 %v167, 32
  %v172 = vpop.permute.xlu0 %171
  %v174 = vmul.f32 %v168, %v172
  %176 = vrot.lane.b32.xlu0 %v168, 96
  %v177 = vpop.permute.xlu0 %176
  %179 = vxpose.xlu0.b32.start [1/16] %v177, 128
  %180 = vxpose.xlu0.b32.cont [2/16] 0.0, 128
  %181 = vxpose.xlu0.b32.cont [3/16] 0.0, 128
  %182 = vxpose.xlu0.b32.cont [4/16] 0.0, 128
  %183 = vxpose.xlu0.b32.cont [5/16] 0.0, 128
  %184 = vxpose.xlu0.b32.cont [6/16] 0.0, 128
  %185 = vxpose.xlu0.b32.cont [7/16] 0.0, 128
  %186 = vxpose.xlu0.b32.cont [8/16] 0.0, 128
  %187 = vxpose.xlu0.b32.cont [9/16] 0.0, 128
  %188 = vxpose.xlu0.b32.cont [10/16] 0.0, 128
  %189 = vxpose.xlu0.b32.cont [11/16] 0.0, 128
  %190 = vxpose.xlu0.b32.cont [12/16] 0.0, 128
  %191 = vxpose.xlu0.b32.cont [13/16] 0.0, 128
  %192 = vxpose.xlu0.b32.cont [14/16] 0.0, 128
  %193 = vxpose.xlu0.b32.cont [15/16] 0.0, 128
  %194 = vxpose.xlu0.b32.end [16/16] 0.0, 128
  %v195 = vpop.trf.xlu0
  %v196 = vpop.trf.xlu0
  %v197 = vpop.trf.xlu0
  %v198 = vpop.trf.xlu0
  %v199 = vpop.trf.xlu0
  %v200 = vpop.trf.xlu0
  %v201 = vpop.trf.xlu0
  %v202 = vpop.trf.xlu0
  %v203 = vpop.trf.xlu0
  %v204 = vpop.trf.xlu0
  %v205 = vpop.trf.xlu0
  %v206 = vpop.trf.xlu0
  %v207 = vpop.trf.xlu0
  %v208 = vpop.trf.xlu0
  %v209 = vpop.trf.xlu0
  %v210 = vpop.trf.xlu0
  %212 = vrot.lane.b32.xlu0 %v174, 96
  %v213 = vpop.permute.xlu0 %212
  %vm215 = vcmask 64512
  %v217 = vsel %vm215, %v195, 0
  %v220 = vsel %vm215, %v196, 0
  %222 = vmatprep.subr.mxu0 0.0
  %223 = vmatpush1.msra.mxu0 %v213
  %224 = vmatprep.subr.mxu0 0.0
  %225 = vmatpush1.msra.mxu0 0.0
  %226 = vmatprep.subr.mxu0 0.0
  %227 = vmatpush1.msra.mxu0 0.0
  %228 = vmatprep.subr.mxu0 0.0
  %229 = vmatpush1.msra.mxu0 0.0
  %230 = vmatprep.subr.mxu0 0.0
  %231 = vmatpush1.msra.mxu0 0.0
  %232 = vmatprep.subr.mxu0 0.0
  %233 = vmatpush1.msra.mxu0 0.0
  %234 = vmatprep.subr.mxu0 0.0
  %235 = vmatpush1.msra.mxu0 0.0
  %236 = vmatprep.subr.mxu0 0.0
  %237 = vmatpush1.msra.mxu0 0.0
  %238 = vmatprep.subr.mxu0 0.0
  %239 = vmatpush1.msra.mxu0 0.0
  %240 = vmatprep.subr.mxu0 0.0
  %241 = vmatpush1.msra.mxu0 0.0
  %242 = vmatprep.subr.mxu0 0.0
  %243 = vmatpush1.msra.mxu0 0.0
  %244 = vmatprep.subr.mxu0 0.0
  %245 = vmatpush1.msra.mxu0 0.0
  %246 = vmatprep.subr.mxu0 0.0
  %247 = vmatpush1.msra.mxu0 0.0
  %248 = vmatprep.subr.mxu0 0.0
  %249 = vmatpush1.msra.mxu0 0.0
  %250 = vmatprep.subr.mxu0 0.0
  %251 = vmatpush1.msra.mxu0 0.0
  %252 = vmatprep.subr.mxu0 0.0
  %253 = vmatpush1.msra.mxu0 0.0
  %254 = vmatprep.subr.mxu0 0.0
  %255 = vmatpush1.msra.mxu0 0.0
  %256 = vmatprep.subr.mxu0 0.0
  %257 = vmatpush1.msra.mxu0 0.0
  %258 = vmatprep.subr.mxu0 0.0
  %259 = vmatpush1.msra.mxu0 0.0
  %260 = vmatprep.subr.mxu0 0.0
  %261 = vmatpush1.msra.mxu0 0.0
  %262 = vmatprep.subr.mxu0 0.0
  %263 = vmatpush1.msra.mxu0 0.0
  %264 = vmatprep.subr.mxu0 0.0
  %265 = vmatpush1.msra.mxu0 0.0
  %266 = vmatprep.subr.mxu0 0.0
  %267 = vmatpush1.msra.mxu0 0.0
  %268 = vmatprep.subr.mxu0 0.0
  %269 = vmatpush1.msra.mxu0 0.0
  %270 = vmatprep.subr.mxu0 0.0
  %271 = vmatpush1.msra.mxu0 0.0
  %272 = vmatprep.subr.mxu0 0.0
  %273 = vmatpush1.msra.mxu0 0.0
  %274 = vmatprep.subr.mxu0 0.0
  %275 = vmatpush1.msra.mxu0 0.0
  %276 = vmatprep.subr.mxu0 0.0
  %277 = vmatpush1.msra.mxu0 0.0
  %278 = vmatprep.subr.mxu0 0.0
  %279 = vmatpush1.msra.mxu0 0.0
  %280 = vmatprep.subr.mxu0 0.0
  %281 = vmatpush1.msra.mxu0 0.0
  %282 = vmatprep.subr.mxu0 0.0
  %283 = vmatpush1.msra.mxu0 0.0
  %284 = vmatprep.subr.mxu0 0.0
  %285 = vmatpush1.msra.mxu0 0.0
  %286 = vmatprep.mubr.f32.mxu0 0.0
  %287 = vmatmul.mubr.f32.gmra.mrb[0].mxu0 %v217
  %v288 = vpop.f32.mrb[0].mxu0
  %v289 = vadd.f32 0.0, %v288
  %v290 = vpop.f32.mrb[0].mxu0
  %291 = vmatprep.mubr.f32.mxu0 0.0
  %292 = vmatmul.mubr.f32.gmra.mrb[0].mxu0 %v220
  %v293 = vpop.f32.mrb[0].mxu0
  %v294 = vadd.f32 0.0, %v293
  %v295 = vpop.f32.mrb[0].mxu0
  %296 = vdwg.mxu0
  %vm297 = vcmask 392448
  %v298 = vsel %vm297, %v174, -inf
  %299 = vmax.xlane.f32.xlu0 %v298
  %v300 = vpop.xlane.xlu0 %299
  %v301 = vsub.f32 %v174, %v300
  %v302 = vmul.f32 %v301, 1.442695
  %v303 = vpow.pop %v302
  %305 = vrot.lane.b32.xlu0 %v303, 96
  %v306 = vpop.permute.xlu0 %305
  %v308 = vsel %vm66, %v306, 0.0
  %309 = vadd.xlane.f32.xlu0 %v308
  %v310 = vpop.xlane.xlu0 %309
  %v311 = vrcp.pop %v310
  %v312 = vmul.f32 %v303, %v311
  %314 = vrot.lane.b32.xlu0 %v41, 32
  %v315 = vpop.permute.xlu0 %314
  %v317 = vmul.f32 %v312, %v315
  %v318 = vsel %vm297, %v317, 0.0
  %v319 = vrot.slane %v318, 4
  %v320 = vadd.f32 %v318, %v319
  %v321 = vrot.slane %v320, 2
  %v322 = vadd.f32 %v320, %v321
  %v323 = vrot.slane %v322, 1
  %v324 = vadd.f32 %v322, %v323
  %326 = vrot.lane.b32.xlu0 %v43, 32
  %v327 = vpop.permute.xlu0 %326
  %v329 = vmul.f32 %v312, %v327
  %v330 = vsel %vm297, %v329, 0.0
  %v331 = vrot.slane %v330, 4
  %v332 = vadd.f32 %v330, %v331
  %v333 = vrot.slane %v332, 2
  %v334 = vadd.f32 %v332, %v333
  %v335 = vrot.slane %v334, 1
  %v336 = vadd.f32 %v334, %v335
  %338 = vrot.lane.b32.xlu0 %v324, 96
  %v339 = vpop.permute.xlu0 %338
  %v341 = vmul.f32 %v289, %v339
  %v342 = vmul.f32 %v294, %v339
  %v344 = vlaneseq
  %v345 = vshrl.u32 %v344, 7
  %v346 = vsub.s32 0, %v345
  %v347 = vrot.slane %v42, %v346
  %v349 = vsub.f32 %v341, %v347
  %v350 = vsub.f32 %v342, %v347
  %352 = vrot.lane.b32.xlu0 %v336, 96
  %v353 = vpop.permute.xlu0 %352
  %v355 = vmul.f32 %v349, %v353
  %v356 = vmul.f32 %v350, %v353
  %v358 = vlaneseq
  %v359 = vshrl.u32 %v358, 7
  %v360 = vsub.s32 0, %v359
  %v361 = vrot.slane %v44, %v360
  %v363 = vsub.f32 %v355, %v361
  %v364 = vsub.f32 %v356, %v361
  %366 = vrot.lane.b32.xlu0 %v168, 80
  %v367 = vpop.permute.xlu0 %366
  %368 = vrot.lane.b32.xlu0 %v169, 80
  %v369 = vpop.permute.xlu0 %368
  %v373 = vsel %vm66, %v363, 0
  %v376 = vsel %vm66, %v364, 0
  %v378 = vsel %vm66, %v213, 0
  %380 = vmatprep.subr.mxu0 0.0
  %381 = vmatpush1.xpose.msra.mxu0 %v378
  %382 = vmatprep.subr.mxu0 0.0
  %383 = vmatpush1.xpose.msra.mxu0 0.0
  %384 = vmatprep.subr.mxu0 0.0
  %385 = vmatpush1.xpose.msra.mxu0 0.0
  %386 = vmatprep.subr.mxu0 0.0
  %387 = vmatpush1.xpose.msra.mxu0 0.0
  %388 = vmatprep.subr.mxu0 0.0
  %389 = vmatpush1.xpose.msra.mxu0 0.0
  %390 = vmatprep.subr.mxu0 0.0
  %391 = vmatpush1.xpose.msra.mxu0 0.0
  %392 = vmatprep.subr.mxu0 0.0
  %393 = vmatpush1.xpose.msra.mxu0 0.0
  %394 = vmatprep.subr.mxu0 0.0
  %395 = vmatpush1.xpose.msra.mxu0 0.0
  %396 = vmatprep.subr.mxu0 0.0
  %397 = vmatpush1.xpose.msra.mxu0 0.0
  %398 = vmatprep.subr.mxu0 0.0
  %399 = vmatpush1.xpose.msra.mxu0 0.0
  %400 = vmatprep.subr.mxu0 0.0
  %401 = vmatpush1.xpose.msra.mxu0 0.0
  %402 = vmatprep.subr.mxu0 0.0
  %403 = vmatpush1.xpose.msra.mxu0 0.0
  %404 = vmatprep.subr.mxu0 0.0
  %405 = vmatpush1.xpose.msra.mxu0 0.0
  %406 = vmatprep.subr.mxu0 0.0
  %407 = vmatpush1.xpose.msra.mxu0 0.0
  %408 = vmatprep.subr.mxu0 0.0
  %409 = vmatpush1.xpose.msra.mxu0 0.0
  %410 = vmatprep.subr.mxu0 0.0
  %411 = vmatpush1.xpose.msra.mxu0 0.0
  %412 = vmatprep.subr.mxu0 0.0
  %413 = vmatpush1.xpose.msra.mxu0 0.0
  %414 = vmatprep.subr.mxu0 0.0
  %415 = vmatpush1.xpose.msra.mxu0 0.0
  %416 = vmatprep.subr.mxu0 0.0
  %417 = vmatpush1.xpose.msra.mxu0 0.0
  %418 = vmatprep.subr.mxu0 0.0
  %419 = vmatpush1.xpose.msra.mxu0 0.0
  %420 = vmatprep.subr.mxu0 0.0
  %421 = vmatpush1.xpose.msra.mxu0 0.0
  %422 = vmatprep.subr.mxu0 0.0
  %423 = vmatpush1.xpose.msra.mxu0 0.0
  %424 = vmatprep.subr.mxu0 0.0
  %425 = vmatpush1.xpose.msra.mxu0 0.0
  %426 = vmatprep.subr.mxu0 0.0
  %427 = vmatpush1.xpose.msra.mxu0 0.0
  %428 = vmatprep.subr.mxu0 0.0
  %429 = vmatpush1.xpose.msra.mxu0 0.0
  %430 = vmatprep.subr.mxu0 0.0
  %431 = vmatpush1.xpose.msra.mxu0 0.0
  %432 = vmatprep.subr.mxu0 0.0
  %433 = vmatpush1.xpose.msra.mxu0 0.0
  %434 = vmatprep.subr.mxu0 0.0
  %435 = vmatpush1.xpose.msra.mxu0 0.0
  %436 = vmatprep.subr.mxu0 0.0
  %437 = vmatpush1.xpose.msra.mxu0 0.0
  %438 = vmatprep.subr.mxu0 0.0
  %439 = vmatpush1.xpose.msra.mxu0 0.0
  %440 = vmatprep.subr.mxu0 0.0
  %441 = vmatpush1.xpose.msra.mxu0 0.0
  %442 = vmatprep.subr.mxu0 0.0
  %443 = vmatpush1.xpose.msra.mxu0 0.0
  %444 = vmatprep.mubr.f32.mxu0 0.0
  %445 = vmatmul.mubr.f32.gmra.mrb[0].mxu0 %v373
  %v446 = vpop.f32.mrb[0].mxu0
  %v447 = vadd.f32 %v367, %v446
  %v448 = vpop.f32.mrb[0].mxu0
  %449 = vmatprep.mubr.f32.mxu0 0.0
  %450 = vmatmul.mubr.f32.gmra.mrb[0].mxu0 %v376
  %v451 = vpop.f32.mrb[0].mxu0
  %v452 = vadd.f32 %v369, %v451
  %v453 = vpop.f32.mrb[0].mxu0
  %454 = vdwg.mxu0
  %v456 = vlaneseq
  %v457 = vshrl.u32 %v456, 7
  %v458 = vsub.s32 0, %v457
  %v459 = vrot.slane %v46, %v458
  %v461 = vsub.f32 %v447, %v459
  %v462 = vsub.f32 %v452, %v459
  %v463 = vadd.f32 %v45, 1e-10
  %v465 = vlaneseq
  %v466 = vshrl.u32 %v465, 7
  %v467 = vsub.s32 0, %v466
  %v468 = vrot.slane %v463, %v467
  %v470 = vrcp.pop %v468
  %v471 = vmul.f32 %v461, %v470
  %v472 = vmul.f32 %v462, %v470
  %v473 = vlaneseq
  %v474 = vshrl.u32 %v473, 7
  %v475 = vsub.s32 1, %v474
  %v476 = vrot.slane %v168, %v475
  %478 = vrot.lane.b32.xlu0 %v476, 72
  %v479 = vpop.permute.xlu0 %478
  %v481 = vmul.f32 %v471, %v479
  %v482 = vmul.f32 %v472, %v479
  %v483 = vlaneseq
  %v484 = vshrl.u32 %v483, 7
  %v485 = vsub.s32 0, %v484
  %v486 = vrot.slane %v168, %v485
  %488 = vrot.lane.b32.xlu0 %v486, 72
  %v489 = vpop.permute.xlu0 %488
  %v491 = vadd.f32 %v481, %v489
  %v492 = vadd.f32 %v482, %v489
  %494 = vset.pattern.permute.xlu0 0
  %495 = vperm.xlu0 %494, %v491
  %v496 = vpop.permute.xlu0 %495
  %499 = vset.pattern.permute.xlu0 0
  %500 = vperm.xlu0 %499, %v492
  %v501 = vpop.permute.xlu0 %500
  %v503 = vlaneseq
  %v504 = vshrl.u32 %v503, 7
  %v505 = vsub.s32 0, %v504
  %v506 = vrot.slane %v47, %v505
  %v507 = vmul.f32 %v496, %v506
  %v508 = vmul.f32 %v501, %v506
  %v510 = vlaneseq
  %v511 = vshrl.u32 %v510, 7
  %v512 = vsub.s32 0, %v511
  %v513 = vrot.slane %v48, %v512
  %v515 = vadd.f32 %v507, %v513
  %v516 = vadd.f32 %v508, %v513
  %517 = vset.pattern.permute.xlu0 1
  %518 = vperm.xlu0 %517, %v491
  %v519 = vpop.permute.xlu0 %518
  %521 = vset.pattern.permute.xlu0 1
  %522 = vperm.xlu0 %521, %v492
  %v523 = vpop.permute.xlu0 %522
  %v525 = vlaneseq
  %v526 = vshrl.u32 %v525, 7
  %v527 = vsub.s32 1, %v526
  %v528 = vrot.slane %v47, %v527
  %v529 = vmul.f32 %v519, %v528
  %v530 = vmul.f32 %v523, %v528
  %v531 = vadd.f32 %v515, %v529
  %v532 = vadd.f32 %v516, %v530
  %vm533 = vcmask 97280
  %534 = vst.msk [vmem:[%s12] sm:$0xff] %vm533, %v531
  %535 = vst.msk [vmem:[%s12 + $0x8] sm:$0xff] %vm533, %v532
  %536 = vset.pattern.permute.xlu0 2
  %537 = vperm.xlu0 %536, %v491
  %v538 = vpop.permute.xlu0 %537
  %540 = vset.pattern.permute.xlu0 2
  %541 = vperm.xlu0 %540, %v492
  %v542 = vpop.permute.xlu0 %541
  %v544 = vmul.f32 %v538, %v506
  %v545 = vmul.f32 %v542, %v506
  %v546 = vadd.f32 %v544, %v513
  %v547 = vadd.f32 %v545, %v513
  %548 = vset.pattern.permute.xlu0 3
  %549 = vperm.xlu0 %548, %v491
  %v550 = vpop.permute.xlu0 %549
  %552 = vset.pattern.permute.xlu0 3
  %553 = vperm.xlu0 %552, %v492
  %v554 = vpop.permute.xlu0 %553
  %v556 = vmul.f32 %v550, %v528
  %v557 = vmul.f32 %v554, %v528
  %v558 = vadd.f32 %v546, %v556
  %v559 = vadd.f32 %v547, %v557
  %s560 = scalar_lea.vmem %s12, 16
  %561 = vst.msk [vmem:[%s560] sm:$0xff] %vm533, %v558
  %562 = vst.msk [vmem:[%s560 + $0x8] sm:$0xff] %vm533, %v559
  %563 = vset.pattern.permute.xlu0 4
  %564 = vperm.xlu0 %563, %v491
  %v565 = vpop.permute.xlu0 %564
  %567 = vset.pattern.permute.xlu0 4
  %568 = vperm.xlu0 %567, %v492
  %v569 = vpop.permute.xlu0 %568
  %v571 = vmul.f32 %v565, %v506
  %v572 = vmul.f32 %v569, %v506
  %v573 = vadd.f32 %v571, %v513
  %v574 = vadd.f32 %v572, %v513
  %575 = vset.pattern.permute.xlu0 5
  %576 = vperm.xlu0 %575, %v491
  %v577 = vpop.permute.xlu0 %576
  %579 = vset.pattern.permute.xlu0 5
  %580 = vperm.xlu0 %579, %v492
  %v581 = vpop.permute.xlu0 %580
  %v583 = vmul.f32 %v577, %v528
  %v584 = vmul.f32 %v581, %v528
  %v585 = vadd.f32 %v573, %v583
  %v586 = vadd.f32 %v574, %v584
  %s587 = scalar_lea.vmem %s12, 32
  %588 = vst.msk [vmem:[%s587] sm:$0xff] %vm533, %v585
  %589 = vst.msk [vmem:[%s587 + $0x8] sm:$0xff] %vm533, %v586
  %590 = vset.pattern.permute.xlu0 6
  %591 = vperm.xlu0 %590, %v491
  %v592 = vpop.permute.xlu0 %591
  %594 = vset.pattern.permute.xlu0 6
  %595 = vperm.xlu0 %594, %v492
  %v596 = vpop.permute.xlu0 %595
  %v598 = vmul.f32 %v592, %v506
  %v599 = vmul.f32 %v596, %v506
  %v600 = vadd.f32 %v598, %v513
  %v601 = vadd.f32 %v599, %v513
  %602 = vset.pattern.permute.xlu0 7
  %603 = vperm.xlu0 %602, %v491
  %v604 = vpop.permute.xlu0 %603
  %606 = vset.pattern.permute.xlu0 7
  %607 = vperm.xlu0 %606, %v492
  %v608 = vpop.permute.xlu0 %607
  %v610 = vmul.f32 %v604, %v528
  %v611 = vmul.f32 %v608, %v528
  %v612 = vadd.f32 %v600, %v610
  %v613 = vadd.f32 %v601, %v611
  %s614 = scalar_lea.vmem %s12, 48
  %615 = vst.msk [vmem:[%s614] sm:$0xff] %vm533, %v612
  %616 = vst.msk [vmem:[%s614 + $0x8] sm:$0xff] %vm533, %v613
  %s617 = scalar_lea.vmem %s0, 1
  %v618 = vld [vmem:[%s617] sm:$0x1]
  %vm619 = vcmp.ge.f32.partialorder %v618, 0.0
  %v620 = vmul.f32 %v618, 0.01
  %v621 = vsel %vm619, %v618, %v620
  %v622 = vadd.f32 %v621, 0.1
  %v623 = vrsqrt.pop %v622
  %v624 = vmul.f32 %v623, 0.02
  %s625 = scalar_lea.vmem %s1, 16
  %v626 = vld [vmem:[%s625] sm:$0xff]
  %v627 = vld [vmem:[%s625 + $0x8] sm:$0xff]
  %v629 = vlaneseq
  %v630 = vshrl.u32 %v629, 7
  %v631 = vsub.s32 0, %v630
  %v632 = vrot.slane %v624, %v631
  %v634 = vmul.f32 %v626, %v632
  %v635 = vmul.f32 %v627, %v632
  %v637 = vsel %vm66, %v634, 0
  %v640 = vsel %vm66, %v635, 0
  %v643 = vsel %vm66, %v626, 0
  %v646 = vsel %vm66, %v627, 0
  %648 = vmatprep.subr.mxu0 0.0
  %649 = vmatpush1.xpose.msra.mxu0 %v643
  %650 = vmatprep.subr.mxu0 0.0
  %651 = vmatpush1.xpose.msra.mxu0 %v646
  %652 = vmatprep.subr.mxu0 0.0
  %653 = vmatpush1.xpose.msra.mxu0 0.0
  %654 = vmatprep.subr.mxu0 0.0
  %655 = vmatpush1.xpose.msra.mxu0 0.0
  %656 = vmatprep.subr.mxu0 0.0
  %657 = vmatpush1.xpose.msra.mxu0 0.0
  %658 = vmatprep.subr.mxu0 0.0
  %659 = vmatpush1.xpose.msra.mxu0 0.0
  %660 = vmatprep.subr.mxu0 0.0
  %661 = vmatpush1.xpose.msra.mxu0 0.0
  %662 = vmatprep.subr.mxu0 0.0
  %663 = vmatpush1.xpose.msra.mxu0 0.0
  %664 = vmatprep.subr.mxu0 0.0
  %665 = vmatpush1.xpose.msra.mxu0 0.0
  %666 = vmatprep.subr.mxu0 0.0
  %667 = vmatpush1.xpose.msra.mxu0 0.0
  %668 = vmatprep.subr.mxu0 0.0
  %669 = vmatpush1.xpose.msra.mxu0 0.0
  %670 = vmatprep.subr.mxu0 0.0
  %671 = vmatpush1.xpose.msra.mxu0 0.0
  %672 = vmatprep.subr.mxu0 0.0
  %673 = vmatpush1.xpose.msra.mxu0 0.0
  %674 = vmatprep.subr.mxu0 0.0
  %675 = vmatpush1.xpose.msra.mxu0 0.0
  %676 = vmatprep.subr.mxu0 0.0
  %677 = vmatpush1.xpose.msra.mxu0 0.0
  %678 = vmatprep.subr.mxu0 0.0
  %679 = vmatpush1.xpose.msra.mxu0 0.0
  %680 = vmatprep.subr.mxu0 0.0
  %681 = vmatpush1.xpose.msra.mxu0 0.0
  %682 = vmatprep.subr.mxu0 0.0
  %683 = vmatpush1.xpose.msra.mxu0 0.0
  %684 = vmatprep.subr.mxu0 0.0
  %685 = vmatpush1.xpose.msra.mxu0 0.0
  %686 = vmatprep.subr.mxu0 0.0
  %687 = vmatpush1.xpose.msra.mxu0 0.0
  %688 = vmatprep.subr.mxu0 0.0
  %689 = vmatpush1.xpose.msra.mxu0 0.0
  %690 = vmatprep.subr.mxu0 0.0
  %691 = vmatpush1.xpose.msra.mxu0 0.0
  %692 = vmatprep.subr.mxu0 0.0
  %693 = vmatpush1.xpose.msra.mxu0 0.0
  %694 = vmatprep.subr.mxu0 0.0
  %695 = vmatpush1.xpose.msra.mxu0 0.0
  %696 = vmatprep.subr.mxu0 0.0
  %697 = vmatpush1.xpose.msra.mxu0 0.0
  %698 = vmatprep.subr.mxu0 0.0
  %699 = vmatpush1.xpose.msra.mxu0 0.0
  %700 = vmatprep.subr.mxu0 0.0
  %701 = vmatpush1.xpose.msra.mxu0 0.0
  %702 = vmatprep.subr.mxu0 0.0
  %703 = vmatpush1.xpose.msra.mxu0 0.0
  %704 = vmatprep.subr.mxu0 0.0
  %705 = vmatpush1.xpose.msra.mxu0 0.0
  %706 = vmatprep.subr.mxu0 0.0
  %707 = vmatpush1.xpose.msra.mxu0 0.0
  %708 = vmatprep.subr.mxu0 0.0
  %709 = vmatpush1.xpose.msra.mxu0 0.0
  %710 = vmatprep.subr.mxu0 0.0
  %711 = vmatpush1.xpose.msra.mxu0 0.0
  %712 = vmatprep.mubr.f32.mxu0 0.0
  %713 = vmatmul.mubr.f32.gmra.mrb[0].mxu0 %v637
  %v714 = vpop.f32.mrb[0].mxu0
  %v715 = vadd.f32 0.0, %v714
  %v716 = vpop.f32.mrb[0].mxu0
  %717 = vmatprep.mubr.f32.mxu0 0.0
  %718 = vmatmul.mubr.f32.gmra.mrb[0].mxu0 %v640
  %v719 = vpop.f32.mrb[0].mxu0
  %v720 = vadd.f32 0.0, %v719
  %v721 = vpop.f32.mrb[0].mxu0
  %722 = vdwg.mxu0
  %s723 = scalar_lea.vmem %s2, 16
  %v724 = vld [vmem:[%s723] sm:$0xff]
  %v725 = vld [vmem:[%s723 + $0x8] sm:$0xff]
  %v726 = vmul.f32 %v715, %v724
  %v727 = vmul.f32 %v720, %v725
  %v728 = vsel %vm66, %v726, 0.0
  %v729 = vsel %vm66, %v727, 0.0
  %v730 = vadd.f32 %v728, %v729
  %v731 = vrot.slane %v730, 4
  %v732 = vadd.f32 %v730, %v731
  %v733 = vrot.slane %v732, 2
  %v734 = vadd.f32 %v732, %v733
  %v735 = vrot.slane %v734, 1
  %v736 = vadd.f32 %v734, %v735
  %v737 = vmul.f32 %v736, 0.02
  %s738 = scalar_lea.vmem %s3, 16
  %v739 = vld [vmem:[%s738] sm:$0xff]
  %v740 = vld [vmem:[%s738 + $0x8] sm:$0xff]
  %742 = vrot.lane.b32.xlu0 %v737, 32
  %v743 = vpop.permute.xlu0 %742
  %v745 = vmul.f32 %v739, %v743
  %747 = vrot.lane.b32.xlu0 %v739, 96
  %v748 = vpop.permute.xlu0 %747
  %750 = vxpose.xlu0.b32.start [1/16] %v748, 128
  %751 = vxpose.xlu0.b32.cont [2/16] 0.0, 128
  %752 = vxpose.xlu0.b32.cont [3/16] 0.0, 128
  %753 = vxpose.xlu0.b32.cont [4/16] 0.0, 128
  %754 = vxpose.xlu0.b32.cont [5/16] 0.0, 128
  %755 = vxpose.xlu0.b32.cont [6/16] 0.0, 128
  %756 = vxpose.xlu0.b32.cont [7/16] 0.0, 128
  %757 = vxpose.xlu0.b32.cont [8/16] 0.0, 128
  %758 = vxpose.xlu0.b32.cont [9/16] 0.0, 128
  %759 = vxpose.xlu0.b32.cont [10/16] 0.0, 128
  %760 = vxpose.xlu0.b32.cont [11/16] 0.0, 128
  %761 = vxpose.xlu0.b32.cont [12/16] 0.0, 128
  %762 = vxpose.xlu0.b32.cont [13/16] 0.0, 128
  %763 = vxpose.xlu0.b32.cont [14/16] 0.0, 128
  %764 = vxpose.xlu0.b32.cont [15/16] 0.0, 128
  %765 = vxpose.xlu0.b32.end [16/16] 0.0, 128
  %v766 = vpop.trf.xlu0
  %v767 = vpop.trf.xlu0
  %v768 = vpop.trf.xlu0
  %v769 = vpop.trf.xlu0
  %v770 = vpop.trf.xlu0
  %v771 = vpop.trf.xlu0
  %v772 = vpop.trf.xlu0
  %v773 = vpop.trf.xlu0
  %v774 = vpop.trf.xlu0
  %v775 = vpop.trf.xlu0
  %v776 = vpop.trf.xlu0
  %v777 = vpop.trf.xlu0
  %v778 = vpop.trf.xlu0
  %v779 = vpop.trf.xlu0
  %v780 = vpop.trf.xlu0
  %v781 = vpop.trf.xlu0
  %783 = vrot.lane.b32.xlu0 %v745, 96
  %v784 = vpop.permute.xlu0 %783
  %v787 = vsel %vm215, %v766, 0
  %v790 = vsel %vm215, %v767, 0
  %792 = vmatprep.subr.mxu0 0.0
  %793 = vmatpush1.msra.mxu0 %v784
  %794 = vmatprep.subr.mxu0 0.0
  %795 = vmatpush1.msra.mxu0 0.0
  %796 = vmatprep.subr.mxu0 0.0
  %797 = vmatpush1.msra.mxu0 0.0
  %798 = vmatprep.subr.mxu0 0.0
  %799 = vmatpush1.msra.mxu0 0.0
  %800 = vmatprep.subr.mxu0 0.0
  %801 = vmatpush1.msra.mxu0 0.0
  %802 = vmatprep.subr.mxu0 0.0
  %803 = vmatpush1.msra.mxu0 0.0
  %804 = vmatprep.subr.mxu0 0.0
  %805 = vmatpush1.msra.mxu0 0.0
  %806 = vmatprep.subr.mxu0 0.0
  %807 = vmatpush1.msra.mxu0 0.0
  %808 = vmatprep.subr.mxu0 0.0
  %809 = vmatpush1.msra.mxu0 0.0
  %810 = vmatprep.subr.mxu0 0.0
  %811 = vmatpush1.msra.mxu0 0.0
  %812 = vmatprep.subr.mxu0 0.0
  %813 = vmatpush1.msra.mxu0 0.0
  %814 = vmatprep.subr.mxu0 0.0
  %815 = vmatpush1.msra.mxu0 0.0
  %816 = vmatprep.subr.mxu0 0.0
  %817 = vmatpush1.msra.mxu0 0.0
  %818 = vmatprep.subr.mxu0 0.0
  %819 = vmatpush1.msra.mxu0 0.0
  %820 = vmatprep.subr.mxu0 0.0
  %821 = vmatpush1.msra.mxu0 0.0
  %822 = vmatprep.subr.mxu0 0.0
  %823 = vmatpush1.msra.mxu0 0.0
  %824 = vmatprep.subr.mxu0 0.0
  %825 = vmatpush1.msra.mxu0 0.0
  %826 = vmatprep.subr.mxu0 0.0
  %827 = vmatpush1.msra.mxu0 0.0
  %828 = vmatprep.subr.mxu0 0.0
  %829 = vmatpush1.msra.mxu0 0.0
  %830 = vmatprep.subr.mxu0 0.0
  %831 = vmatpush1.msra.mxu0 0.0
  %832 = vmatprep.subr.mxu0 0.0
  %833 = vmatpush1.msra.mxu0 0.0
  %834 = vmatprep.subr.mxu0 0.0
  %835 = vmatpush1.msra.mxu0 0.0
  %836 = vmatprep.subr.mxu0 0.0
  %837 = vmatpush1.msra.mxu0 0.0
  %838 = vmatprep.subr.mxu0 0.0
  %839 = vmatpush1.msra.mxu0 0.0
  %840 = vmatprep.subr.mxu0 0.0
  %841 = vmatpush1.msra.mxu0 0.0
  %842 = vmatprep.subr.mxu0 0.0
  %843 = vmatpush1.msra.mxu0 0.0
  %844 = vmatprep.subr.mxu0 0.0
  %845 = vmatpush1.msra.mxu0 0.0
  %846 = vmatprep.subr.mxu0 0.0
  %847 = vmatpush1.msra.mxu0 0.0
  %848 = vmatprep.subr.mxu0 0.0
  %849 = vmatpush1.msra.mxu0 0.0
  %850 = vmatprep.subr.mxu0 0.0
  %851 = vmatpush1.msra.mxu0 0.0
  %852 = vmatprep.subr.mxu0 0.0
  %853 = vmatpush1.msra.mxu0 0.0
  %854 = vmatprep.subr.mxu0 0.0
  %855 = vmatpush1.msra.mxu0 0.0
  %856 = vmatprep.mubr.f32.mxu0 0.0
  %857 = vmatmul.mubr.f32.gmra.mrb[0].mxu0 %v787
  %v858 = vpop.f32.mrb[0].mxu0
  %v859 = vadd.f32 0.0, %v858
  %v860 = vpop.f32.mrb[0].mxu0
  %861 = vmatprep.mubr.f32.mxu0 0.0
  %862 = vmatmul.mubr.f32.gmra.mrb[0].mxu0 %v790
  %v863 = vpop.f32.mrb[0].mxu0
  %v864 = vadd.f32 0.0, %v863
  %v865 = vpop.f32.mrb[0].mxu0
  %866 = vdwg.mxu0
  %v867 = vsel %vm297, %v745, -inf
  %868 = vmax.xlane.f32.xlu0 %v867
  %v869 = vpop.xlane.xlu0 %868
  %v870 = vsub.f32 %v745, %v869
  %v871 = vmul.f32 %v870, 1.442695
  %v872 = vpow.pop %v871
  %874 = vrot.lane.b32.xlu0 %v872, 96
  %v875 = vpop.permute.xlu0 %874
  %v877 = vsel %vm66, %v875, 0.0
  %878 = vadd.xlane.f32.xlu0 %v877
  %v879 = vpop.xlane.xlu0 %878
  %v880 = vrcp.pop %v879
  %v881 = vmul.f32 %v872, %v880
  %v882 = vmul.f32 %v881, %v315
  %v883 = vsel %vm297, %v882, 0.0
  %v884 = vrot.slane %v883, 4
  %v885 = vadd.f32 %v883, %v884
  %v886 = vrot.slane %v885, 2
  %v887 = vadd.f32 %v885, %v886
  %v888 = vrot.slane %v887, 1
  %v889 = vadd.f32 %v887, %v888
  %v890 = vmul.f32 %v881, %v327
  %v891 = vsel %vm297, %v890, 0.0
  %v892 = vrot.slane %v891, 4
  %v893 = vadd.f32 %v891, %v892
  %v894 = vrot.slane %v893, 2
  %v895 = vadd.f32 %v893, %v894
  %v896 = vrot.slane %v895, 1
  %v897 = vadd.f32 %v895, %v896
  %899 = vrot.lane.b32.xlu0 %v889, 96
  %v900 = vpop.permute.xlu0 %899
  %v902 = vmul.f32 %v859, %v900
  %v903 = vmul.f32 %v864, %v900
  %v904 = vsub.f32 %v902, %v347
  %v905 = vsub.f32 %v903, %v347
  %907 = vrot.lane.b32.xlu0 %v897, 96
  %v908 = vpop.permute.xlu0 %907
  %v910 = vmul.f32 %v904, %v908
  %v911 = vmul.f32 %v905, %v908
  %v912 = vsub.f32 %v910, %v361
  %v913 = vsub.f32 %v911, %v361
  %915 = vrot.lane.b32.xlu0 %v739, 80
  %v916 = vpop.permute.xlu0 %915
  %917 = vrot.lane.b32.xlu0 %v740, 80
  %v918 = vpop.permute.xlu0 %917
  %v922 = vsel %vm66, %v912, 0
  %v925 = vsel %vm66, %v913, 0
  %v927 = vsel %vm66, %v784, 0
  %929 = vmatprep.subr.mxu0 0.0
  %930 = vmatpush1.xpose.msra.mxu0 %v927
  %931 = vmatprep.subr.mxu0 0.0
  %932 = vmatpush1.xpose.msra.mxu0 0.0
  %933 = vmatprep.subr.mxu0 0.0
  %934 = vmatpush1.xpose.msra.mxu0 0.0
  %935 = vmatprep.subr.mxu0 0.0
  %936 = vmatpush1.xpose.msra.mxu0 0.0
  %937 = vmatprep.subr.mxu0 0.0
  %938 = vmatpush1.xpose.msra.mxu0 0.0
  %939 = vmatprep.subr.mxu0 0.0
  %940 = vmatpush1.xpose.msra.mxu0 0.0
  %941 = vmatprep.subr.mxu0 0.0
  %942 = vmatpush1.xpose.msra.mxu0 0.0
  %943 = vmatprep.subr.mxu0 0.0
  %944 = vmatpush1.xpose.msra.mxu0 0.0
  %945 = vmatprep.subr.mxu0 0.0
  %946 = vmatpush1.xpose.msra.mxu0 0.0
  %947 = vmatprep.subr.mxu0 0.0
  %948 = vmatpush1.xpose.msra.mxu0 0.0
  %949 = vmatprep.subr.mxu0 0.0
  %950 = vmatpush1.xpose.msra.mxu0 0.0
  %951 = vmatprep.subr.mxu0 0.0
  %952 = vmatpush1.xpose.msra.mxu0 0.0
  %953 = vmatprep.subr.mxu0 0.0
  %954 = vmatpush1.xpose.msra.mxu0 0.0
  %955 = vmatprep.subr.mxu0 0.0
  %956 = vmatpush1.xpose.msra.mxu0 0.0
  %957 = vmatprep.subr.mxu0 0.0
  %958 = vmatpush1.xpose.msra.mxu0 0.0
  %959 = vmatprep.subr.mxu0 0.0
  %960 = vmatpush1.xpose.msra.mxu0 0.0
  %961 = vmatprep.subr.mxu0 0.0
  %962 = vmatpush1.xpose.msra.mxu0 0.0
  %963 = vmatprep.subr.mxu0 0.0
  %964 = vmatpush1.xpose.msra.mxu0 0.0
  %965 = vmatprep.subr.mxu0 0.0
  %966 = vmatpush1.xpose.msra.mxu0 0.0
  %967 = vmatprep.subr.mxu0 0.0
  %968 = vmatpush1.xpose.msra.mxu0 0.0
  %969 = vmatprep.subr.mxu0 0.0
  %970 = vmatpush1.xpose.msra.mxu0 0.0
  %971 = vmatprep.subr.mxu0 0.0
  %972 = vmatpush1.xpose.msra.mxu0 0.0
  %973 = vmatprep.subr.mxu0 0.0
  %974 = vmatpush1.xpose.msra.mxu0 0.0
  %975 = vmatprep.subr.mxu0 0.0
  %976 = vmatpush1.xpose.msra.mxu0 0.0
  %977 = vmatprep.subr.mxu0 0.0
  %978 = vmatpush1.xpose.msra.mxu0 0.0
  %979 = vmatprep.subr.mxu0 0.0
  %980 = vmatpush1.xpose.msra.mxu0 0.0
  %981 = vmatprep.subr.mxu0 0.0
  %982 = vmatpush1.xpose.msra.mxu0 0.0
  %983 = vmatprep.subr.mxu0 0.0
  %984 = vmatpush1.xpose.msra.mxu0 0.0
  %985 = vmatprep.subr.mxu0 0.0
  %986 = vmatpush1.xpose.msra.mxu0 0.0
  %987 = vmatprep.subr.mxu0 0.0
  %988 = vmatpush1.xpose.msra.mxu0 0.0
  %989 = vmatprep.subr.mxu0 0.0
  %990 = vmatpush1.xpose.msra.mxu0 0.0
  %991 = vmatprep.subr.mxu0 0.0
  %992 = vmatpush1.xpose.msra.mxu0 0.0
  %993 = vmatprep.mubr.f32.mxu0 0.0
  %994 = vmatmul.mubr.f32.gmra.mrb[0].mxu0 %v922
  %v995 = vpop.f32.mrb[0].mxu0
  %v996 = vadd.f32 %v916, %v995
  %v997 = vpop.f32.mrb[0].mxu0
  %998 = vmatprep.mubr.f32.mxu0 0.0
  %999 = vmatmul.mubr.f32.gmra.mrb[0].mxu0 %v925
  %v1000 = vpop.f32.mrb[0].mxu0
  %v1001 = vadd.f32 %v918, %v1000
  %v1002 = vpop.f32.mrb[0].mxu0
  %1003 = vdwg.mxu0
  %v1004 = vsub.f32 %v996, %v459
  %v1005 = vsub.f32 %v1001, %v459
  %v1006 = vmul.f32 %v1004, %v470
  %v1007 = vmul.f32 %v1005, %v470
  %v1008 = vlaneseq
  %v1009 = vshrl.u32 %v1008, 7
  %v1010 = vsub.s32 1, %v1009
  %v1011 = vrot.slane %v739, %v1010
  %1013 = vrot.lane.b32.xlu0 %v1011, 72
  %v1014 = vpop.permute.xlu0 %1013
  %v1016 = vmul.f32 %v1006, %v1014
  %v1017 = vmul.f32 %v1007, %v1014
  %v1018 = vlaneseq
  %v1019 = vshrl.u32 %v1018, 7
  %v1020 = vsub.s32 0, %v1019
  %v1021 = vrot.slane %v739, %v1020
  %1023 = vrot.lane.b32.xlu0 %v1021, 72
  %v1024 = vpop.permute.xlu0 %1023
  %v1026 = vadd.f32 %v1016, %v1024
  %v1027 = vadd.f32 %v1017, %v1024
  %1029 = vset.pattern.permute.xlu0 0
  %1030 = vperm.xlu0 %1029, %v1026
  %v1031 = vpop.permute.xlu0 %1030
  %1034 = vset.pattern.permute.xlu0 0
  %1035 = vperm.xlu0 %1034, %v1027
  %v1036 = vpop.permute.xlu0 %1035
  %v1038 = vmul.f32 %v1031, %v506
  %v1039 = vmul.f32 %v1036, %v506
  %v1040 = vadd.f32 %v1038, %v513
  %v1041 = vadd.f32 %v1039, %v513
  %1042 = vset.pattern.permute.xlu0 1
  %1043 = vperm.xlu0 %1042, %v1026
  %v1044 = vpop.permute.xlu0 %1043
  %1046 = vset.pattern.permute.xlu0 1
  %1047 = vperm.xlu0 %1046, %v1027
  %v1048 = vpop.permute.xlu0 %1047
  %v1050 = vmul.f32 %v1044, %v528
  %v1051 = vmul.f32 %v1048, %v528
  %v1052 = vadd.f32 %v1040, %v1050
  %v1053 = vadd.f32 %v1041, %v1051
  %s1054 = scalar_lea.vmem %s12, 64
  %1055 = vst.msk [vmem:[%s1054] sm:$0xff] %vm533, %v1052
  %1056 = vst.msk [vmem:[%s1054 + $0x8] sm:$0xff] %vm533, %v1053
  %1057 = vset.pattern.permute.xlu0 2
  %1058 = vperm.xlu0 %1057, %v1026
  %v1059 = vpop.permute.xlu0 %1058
  %1061 = vset.pattern.permute.xlu0 2
  %1062 = vperm.xlu0 %1061, %v1027
  %v1063 = vpop.permute.xlu0 %1062
  %v1065 = vmul.f32 %v1059, %v506
  %v1066 = vmul.f32 %v1063, %v506
  %v1067 = vadd.f32 %v1065, %v513
  %v1068 = vadd.f32 %v1066, %v513
  %1069 = vset.pattern.permute.xlu0 3
  %1070 = vperm.xlu0 %1069, %v1026
  %v1071 = vpop.permute.xlu0 %1070
  %1073 = vset.pattern.permute.xlu0 3
  %1074 = vperm.xlu0 %1073, %v1027
  %v1075 = vpop.permute.xlu0 %1074
  %v1077 = vmul.f32 %v1071, %v528
  %v1078 = vmul.f32 %v1075, %v528
  %v1079 = vadd.f32 %v1067, %v1077
  %v1080 = vadd.f32 %v1068, %v1078
  %s1081 = scalar_lea.vmem %s12, 80
  %1082 = vst.msk [vmem:[%s1081] sm:$0xff] %vm533, %v1079
  %1083 = vst.msk [vmem:[%s1081 + $0x8] sm:$0xff] %vm533, %v1080
  %1084 = vset.pattern.permute.xlu0 4
  %1085 = vperm.xlu0 %1084, %v1026
  %v1086 = vpop.permute.xlu0 %1085
  %1088 = vset.pattern.permute.xlu0 4
  %1089 = vperm.xlu0 %1088, %v1027
  %v1090 = vpop.permute.xlu0 %1089
  %v1092 = vmul.f32 %v1086, %v506
  %v1093 = vmul.f32 %v1090, %v506
  %v1094 = vadd.f32 %v1092, %v513
  %v1095 = vadd.f32 %v1093, %v513
  %1096 = vset.pattern.permute.xlu0 5
  %1097 = vperm.xlu0 %1096, %v1026
  %v1098 = vpop.permute.xlu0 %1097
  %1100 = vset.pattern.permute.xlu0 5
  %1101 = vperm.xlu0 %1100, %v1027
  %v1102 = vpop.permute.xlu0 %1101
  %v1104 = vmul.f32 %v1098, %v528
  %v1105 = vmul.f32 %v1102, %v528
  %v1106 = vadd.f32 %v1094, %v1104
  %v1107 = vadd.f32 %v1095, %v1105
  %s1108 = scalar_lea.vmem %s12, 96
  %1109 = vst.msk [vmem:[%s1108] sm:$0xff] %vm533, %v1106
  %1110 = vst.msk [vmem:[%s1108 + $0x8] sm:$0xff] %vm533, %v1107
  %1111 = vset.pattern.permute.xlu0 6
  %1112 = vperm.xlu0 %1111, %v1026
  %v1113 = vpop.permute.xlu0 %1112
  %1115 = vset.pattern.permute.xlu0 6
  %1116 = vperm.xlu0 %1115, %v1027
  %v1117 = vpop.permute.xlu0 %1116
  %v1119 = vmul.f32 %v1113, %v506
  %v1120 = vmul.f32 %v1117, %v506
  %v1121 = vadd.f32 %v1119, %v513
  %v1122 = vadd.f32 %v1120, %v513
  %1123 = vset.pattern.permute.xlu0 7
  %1124 = vperm.xlu0 %1123, %v1026
  %v1125 = vpop.permute.xlu0 %1124
  %1127 = vset.pattern.permute.xlu0 7
  %1128 = vperm.xlu0 %1127, %v1027
  %v1129 = vpop.permute.xlu0 %1128
  %v1131 = vmul.f32 %v1125, %v528
  %v1132 = vmul.f32 %v1129, %v528
  %v1133 = vadd.f32 %v1121, %v1131
  %v1134 = vadd.f32 %v1122, %v1132
  %s1135 = scalar_lea.vmem %s12, 112
  %1136 = vst.msk [vmem:[%s1135] sm:$0xff] %vm533, %v1133
  %1137 = vst.msk [vmem:[%s1135 + $0x8] sm:$0xff] %vm533, %v1134
  // Predicated region
  $region50: #{sgsc_forward.5} parent=0 // pred_check
    _
  $region51: #{sgsc_forward.5} parent=0 // pred_check_branch
    %1139 = sbr.rel (0) target = $region53
  $region52: #{sgsc_forward.5} parent=0 // pred_region
    _
  $region53: #{sgsc_forward.5} parent=0 // pred_fallthru
    _
  // Predicated region
  $region54: #{sgsc_forward.5} parent=0 // pred_check
    _
  $region55: #{sgsc_forward.5} parent=0 // pred_check_branch
    %1141 = sbr.rel (0) target = $region57
  $region56: #{sgsc_forward.5} parent=0 // pred_region
    _
  $region57: #{sgsc_forward.5} parent=0 // pred_fallthru
    _

</llo_original>
